<compile_context>
chip_gen: v6e
topology: v6e:2x2x1
jax: 0.10.0
libtpu: 0.0.40
codegen_flags: <defaults>
</compile_context>

<pallas_src>
import math
import jax
import jax.numpy as jnp
from jax.experimental import pallas as pl
from jax.experimental.pallas import tpu as pltpu


def _round_up(x, m):
    return ((x + m - 1) // m) * m


def _kaiming_normal(key, shape):
    # nn.init.kaiming_normal_ defaults: fan_in mode, gain = sqrt(2).
    fan_in = shape[1]
    return jax.random.normal(key, shape, jnp.float32) * math.sqrt(2.0 / fan_in)


def init_fnode_params(key, in_chs, cout, compute_dtype):
    """Matches PointGiraffeLayer.init_weights() in eval mode:
    kaiming_normal_ conv weights, zero conv bias, BN(gamma=1, beta=0) with
    default running stats (mean=0, var=1, eps=1e-5) folded to scale/bias.
    The BN scale is folded into W1 (in f32, before the compute-dtype cast);
    BN bias and conv2 bias are packed into one (Cout, 2) array."""
    cin = sum(in_chs)
    k1, k2 = jax.random.split(key)
    w1 = _kaiming_normal(k1, (cout, cin))      # conv1 weight (Cout, Cin), no bias
    w2 = _kaiming_normal(k2, (cout, cout))     # conv2 weight (Cout, Cout)
    b2 = jnp.zeros((cout,), jnp.float32)       # conv2 bias, init to 0
    eps = 1e-5
    gamma = jnp.ones((cout,), jnp.float32)
    beta = jnp.zeros((cout,), jnp.float32)
    mean = jnp.zeros((cout,), jnp.float32)
    var = jnp.ones((cout,), jnp.float32)
    scale = gamma / jnp.sqrt(var + eps)                 # (Cout,)
    bn_bias = beta - mean * scale                       # (Cout,)
    w1_folded = (w1 * scale[:, None]).astype(compute_dtype)   # fold in f32 first
    biases = jnp.stack([bn_bias, b2], axis=1)           # (Cout, 2) f32
    return dict(
        w1=w1_folded,                          # (Cout, Cin) compute dtype, BN-folded
        w2=w2.astype(compute_dtype),           # (Cout, Cout) compute dtype
        biases=biases,                         # (Cout, 2) f32: [:,0]=BN bias, [:,1]=b2
        # full precision copies for the pure-JAX reference (unfolded math)
        w1_f32=w1, w2_f32=w2,
        bn_scale=scale[:, None], bn_bias=bn_bias[:, None], b2_f32=b2[:, None],
    )


class PointGiraffeLayerPallas:
    """same_grid_for_all_levels=True forward of PointGiraffeLayer.

    Features are channel-major (C, N) — PyTorch's Conv1d NCL layout (the
    layout the module's after_combine computes in).  Pass
    channels_first=False to use the module's external (N, C) list layout
    (note: those boundary transposes are full-array HBM copies)."""

    def __init__(self, feature_info, fpn_config, inner_fpn_channels,
                 outer_fpn_channels, num_levels, key, *,
                 tile_n=8192, compute_dtype=jnp.bfloat16, out_dtype=None,
                 vmem_workset_bytes=20 * 1024 * 1024):
        self.num_levels = num_levels
        self.tile_n = tile_n
        self.compute_dtype = compute_dtype
        # bf16 (compute dtype) outputs by default: this op is HBM-bound and
        # f32 outputs would dominate the HBM byte count.
        self.out_dtype = compute_dtype if out_dtype is None else out_dtype
        self.vmem_workset_bytes = vmem_workset_bytes
        self.vmem_limit_bytes = max(32 * 1024 * 1024,
                                    vmem_workset_bytes + 8 * 1024 * 1024)
        self.num_input_levels = len(feature_info)

        level_chs = [f['num_chs'] for f in feature_info]   # per x-list entry
        reduction_base = feature_info[0]['reduction']
        self.nodes = []
        for _, cfg in fpn_config.items():
            assert cfg['weight_method'] == 'concat', \
                "only the same-grid 'concat' combine is implemented"
            fpn_channels = (outer_fpn_channels if cfg['is_out'] == 1
                            else inner_fpn_channels)
            ch_idx = int(math.log(cfg['reduction'] // reduction_base, 2))
            offsets = tuple(cfg['inputs_offsets'])
            in_chs = tuple(level_chs[o] for o in offsets)
            cout = fpn_channels[ch_idx]
            key, sub = jax.random.split(key)
            params = init_fnode_params(sub, in_chs, cout, compute_dtype)
            self.nodes.append(dict(offsets=offsets, in_chs=in_chs, cout=cout,
                                   **params))
            level_chs.append(cout)

        self.level_chs = level_chs
        self.total_levels = len(level_chs)
        self.out_level_indices = list(range(self.total_levels))[-num_levels:]
        # Only node outputs that survive to the final slice are written to
        # HBM; everything else stays in VMEM / vregs.
        self.out_node_levels = [l for l in self.out_level_indices
                                if l >= self.num_input_levels]

    # --------------------------- tile selection ---------------------------
    def _pick_tile(self, n, in_dtypes):
        """Largest tile_n (multiple of 128) that (a) keeps the per-step VMEM
        working set under budget on every generation (incl. v7x's 64 MiB),
        and (b) leaves >= 2 grid tiles so megacore / v7x's two TCs get work."""
        in_bytes = sum(c * jnp.dtype(dt).itemsize
                       for c, dt in zip(self.level_chs, in_dtypes))
        out_bytes = sum(self.level_chs[l] for l in self.out_node_levels) \
            * jnp.dtype(self.out_dtype).itemsize
        cbytes = jnp.dtype(self.compute_dtype).itemsize
        live = sum(nd['cout'] for nd in self.nodes) * cbytes     # resident levels
        transient = max(sum(nd['in_chs']) * cbytes + 2 * nd['cout'] * 4
                        for nd in self.nodes)                    # concat + h/o f32
        per_col = 2 * (in_bytes + out_bytes) + live + transient  # 2x = dbl-buffer IO
        tmax = max(128, (self.vmem_workset_bytes // per_col) // 128 * 128)
        tile = min(self.tile_n, tmax)
        tile = min(tile, max(128, _round_up(pl.cdiv(n, 2), 128)))  # >= 2 tiles
        tile = min(tile, _round_up(n, 128))
        return max(128, tile)

    # ------------------------------- kernel -------------------------------
    def _kernel(self, *refs):
        num_in = self.num_input_levels
        n_in_refs = num_in + 3 * len(self.nodes)
        in_refs = refs[:n_in_refs]
        out_refs = refs[n_in_refs:]
        out_pos = {lvl: j for j, lvl in enumerate(self.out_node_levels)}

        feats = {}
        for l in range(num_in):
            # DMA'd in native dtype; cast on the VPU (free under the DMA bound).
            feats[l] = in_refs[l][...].astype(self.compute_dtype)

        pos = num_in
        for j, nd in enumerate(self.nodes):
            w1_ref, bias_ref, w2_ref = in_refs[pos:pos + 3]
            pos += 3

            # FpnCombine ('concat'): in-VMEM channel concat, then ONE wide-K
            # MXU matmul for Conv1d(Cin->Cout, k=1, no bias) with the BN scale
            # pre-folded into W1 (f32 accumulation).
            cat = jnp.concatenate([feats[o] for o in nd['offsets']], axis=0)
            h = jnp.dot(w1_ref[...], cat, preferred_element_type=jnp.float32)
            # Folded BatchNorm1d bias + ReLU (+ Dropout(p=0) = identity), f32.
            h = jnp.maximum(h + bias_ref[:, 0:1], 0.0)
            # Conv1d(Cout->Cout, k=1, bias=True).
            o = jnp.dot(w2_ref[...], h.astype(self.compute_dtype),
                        preferred_element_type=jnp.float32) + bias_ref[:, 1:2]

            lvl = num_in + j
            feats[lvl] = o.astype(self.compute_dtype)   # VMEM-resident level
            if lvl in out_pos:                          # only finals hit HBM
                oref = out_refs[out_pos[lvl]]
                oref[...] = o.astype(oref.dtype)

    # ------------------------------ wrapper --------------------------------
    def __call__(self, x, *, channels_first=True):
        if not channels_first:
            x = [jnp.transpose(xi) for xi in x]          # (N,C) -> (C,N) HBM copy
        assert len(x) == self.num_input_levels
        n = x[0].shape[1]
        for xi, c in zip(x, self.level_chs):
            assert xi.shape == (c, n)

        tile_n = self._pick_tile(n, [xi.dtype for xi in x])
        grid = (pl.cdiv(n, tile_n),)                     # ragged last tile OK:
        # Pallas pads the last block's reads and drops out-of-bounds stores;
        # the math is per-point-column, so padded lanes never contaminate
        # valid outputs.  No wrapper pad / slice copies.

        inputs, in_specs = [], []
        for l in range(self.num_input_levels):
            inputs.append(x[l])                          # no wrapper cast
            in_specs.append(pl.BlockSpec((self.level_chs[l], tile_n),
                                         lambda i: (0, i)))
        for nd in self.nodes:
            for name in ('w1', 'biases', 'w2'):
                arr = nd[name]
                inputs.append(arr)
                # Constant index_map -> weights stay VMEM-resident, no re-DMA.
                in_specs.append(pl.BlockSpec(arr.shape, lambda i: (0, 0)))

        out_shapes, out_specs = [], []
        for lvl in self.out_node_levels:
            c = self.level_chs[lvl]
            out_shapes.append(jax.ShapeDtypeStruct((c, n), self.out_dtype))
            out_specs.append(pl.BlockSpec((c, tile_n), lambda i: (0, i)))

        outs = pl.pallas_call(
            self._kernel,
            out_shape=tuple(out_shapes),
            grid_spec=pltpu.PrefetchScalarGridSpec(
                num_scalar_prefetch=0,
                grid=grid,
                in_specs=in_specs,
                out_specs=out_specs,
            ),
            compiler_params=pltpu.CompilerParams(
                # Independent N-tiles: megacore / v7x's two TCs split the grid.
                dimension_semantics=("parallel",),
                vmem_limit_bytes=self.vmem_limit_bytes),
        )(*inputs)
        if not isinstance(outs, (list, tuple)):
            outs = (outs,)

        node_out = dict(zip(self.out_node_levels, outs))
        result = []
        for lvl in self.out_level_indices:
            if lvl < self.num_input_levels:
                result.append(x[lvl])            # pass-through input level
            else:
                result.append(node_out[lvl])
        if not channels_first:
            result = [jnp.transpose(r) for r in result]
        return result

    # ----------------- pure-JAX f32 reference (module math) ----------------
    def reference(self, x, *, channels_first=True):
        if not channels_first:
            x = [jnp.transpose(xi) for xi in x]
        feats = [xi.astype(jnp.float32) for xi in x]
        for nd in self.nodes:
            cat = jnp.concatenate([feats[o] for o in nd['offsets']], axis=0)
            h = nd['w1_f32'] @ cat
            h = h * nd['bn_scale'] + nd['bn_bias']
            h = jnp.maximum(h, 0.0)
            o = nd['w2_f32'] @ h + nd['b2_f32']
            feats.append(o)
        out = feats[-self.num_levels:]
        if not channels_first:
            out = [jnp.transpose(o) for o in out]
        return out


def _check(name, o, r, rel_tol):
    assert o.shape == r.shape, (name, o.shape, r.shape)
    num = float(jnp.linalg.norm((o.astype(jnp.float32) - r).astype(jnp.float32)))
    den = float(jnp.linalg.norm(r.astype(jnp.float32))) + 1e-6
    rel = num / den
    assert rel < rel_tol, (name, rel)


if __name__ == "__main__":
    key = jax.random.PRNGKey(0)

    # Small synthetic config: 2 input levels, 3 fpn nodes, same grid.
    num_levels = 2
    N = 2000    # NOT a multiple of 128/tile_n -> exercises the ragged last tile
    feature_info = [
        {'num_chs': 16, 'reduction': 1},
        {'num_chs': 32, 'reduction': 2},
    ]
    inner_fpn_channels = [16, 32]
    outer_fpn_channels = [16, 32]
    fpn_config = {
        2: {'reduction': 2, 'inputs_offsets': [0, 1], 'is_out': 0,
            'weight_method': 'concat'},
        3: {'reduction': 1, 'inputs_offsets': [0, 2], 'is_out': 1,
            'weight_method': 'concat'},
        4: {'reduction': 2, 'inputs_offsets': [1, 2, 3], 'is_out': 1,
            'weight_method': 'concat'},
    }

    key, kp, k0, k1 = jax.random.split(key, 4)

    # Same weights, two compute precisions: f32 for a tight structural check,
    # bf16 (the production setting, bf16 outputs) with a loosened tolerance.
    layer_f32 = PointGiraffeLayerPallas(
        feature_info, fpn_config, inner_fpn_channels, outer_fpn_channels,
        num_levels, kp, compute_dtype=jnp.float32)
    layer_bf16 = PointGiraffeLayerPallas(
        feature_info, fpn_config, inner_fpn_channels, outer_fpn_channels,
        num_levels, kp, compute_dtype=jnp.bfloat16)

    # Channel-major (C, N) point features (PyTorch Conv1d NCL layout).
    x_in = [
        jax.random.normal(k0, (feature_info[0]['num_chs'], N), jnp.float32),
        jax.random.normal(k1, (feature_info[1]['num_chs'], N), jnp.float32),
    ]

    refs = layer_f32.reference(x_in)

    outs_f32 = jax.block_until_ready(layer_f32(x_in))
    for i, (o, r) in enumerate(zip(outs_f32, refs)):
        _check(f"f32_level{i}", o, r, rel_tol=1e-4)

    outs_bf16 = jax.block_until_ready(layer_bf16(x_in))
    for i, (o, r) in enumerate(zip(outs_bf16, refs)):
        # NOTE: intermediate node outputs are re-cast to bf16 before being
        # consumed downstream; error compounds with fpn DAG depth.
        _check(f"bf16_level{i}", o, r, rel_tol=2e-2)

    # Original module interface: list of (N, C) tensors.
    x_nc = [jnp.transpose(xi) for xi in x_in]
    outs_nc = jax.block_until_ready(layer_f32(x_nc, channels_first=False))
    for i, (o, r) in enumerate(zip(outs_nc, refs)):
        _check(f"nc_level{i}", jnp.transpose(o), r, rel_tol=1e-4)

    print("KERNEL_OK")
</pallas_src>

<mosaic_0001>
module attributes {stable_mosaic.version = 11 : i64} {
  func.func @_kernel(%arg0: i32, %arg1: memref<16x1024xf32, #tpu.memory_space<vmem>>, %arg2: memref<32x1024xf32, #tpu.memory_space<vmem>>, %arg3: memref<32x48xf32, #tpu.memory_space<vmem>>, %arg4: memref<32x2xf32, #tpu.memory_space<vmem>>, %arg5: memref<32x32xf32, #tpu.memory_space<vmem>>, %arg6: memref<16x48xf32, #tpu.memory_space<vmem>>, %arg7: memref<16x2xf32, #tpu.memory_space<vmem>>, %arg8: memref<16x16xf32, #tpu.memory_space<vmem>>, %arg9: memref<32x80xf32, #tpu.memory_space<vmem>>, %arg10: memref<32x2xf32, #tpu.memory_space<vmem>>, %arg11: memref<32x32xf32, #tpu.memory_space<vmem>>, %arg12: memref<16x1024xf32, #tpu.memory_space<vmem>>, %arg13: memref<32x1024xf32, #tpu.memory_space<vmem>>) attributes {dimension_semantics = [#tpu.dimension_semantics<parallel>], iteration_bounds = array<i64: 2>, scalar_prefetch = 0 : i64, scratch_operands = 0 : i64, tpu.core_type = #tpu.core_type<tc>, window_params = [{transform_indices = @transform_0, window_bounds = array<i64: 16, 1024>}, {transform_indices = @transform_1, window_bounds = array<i64: 32, 1024>}, {pipeline_mode = #tpu.pipeline_mode<synchronous>, transform_indices = @transform_2, window_bounds = array<i64: 32, 48>}, {pipeline_mode = #tpu.pipeline_mode<synchronous>, transform_indices = @transform_3, window_bounds = array<i64: 32, 2>}, {pipeline_mode = #tpu.pipeline_mode<synchronous>, transform_indices = @transform_4, window_bounds = array<i64: 32, 32>}, {pipeline_mode = #tpu.pipeline_mode<synchronous>, transform_indices = @transform_5, window_bounds = array<i64: 16, 48>}, {pipeline_mode = #tpu.pipeline_mode<synchronous>, transform_indices = @transform_6, window_bounds = array<i64: 16, 2>}, {pipeline_mode = #tpu.pipeline_mode<synchronous>, transform_indices = @transform_7, window_bounds = array<i64: 16, 16>}, {pipeline_mode = #tpu.pipeline_mode<synchronous>, transform_indices = @transform_8, window_bounds = array<i64: 32, 80>}, {pipeline_mode = #tpu.pipeline_mode<synchronous>, transform_indices = @transform_9, window_bounds = array<i64: 32, 2>}, {pipeline_mode = #tpu.pipeline_mode<synchronous>, transform_indices = @transform_10, window_bounds = array<i64: 32, 32>}, {transform_indices = @transform_11, window_bounds = array<i64: 16, 1024>}, {transform_indices = @transform_12, window_bounds = array<i64: 32, 1024>}]} {
    %c0 = arith.constant 0 : index
    %c0_0 = arith.constant 0 : index
    %0 = vector.load %arg1[%c0, %c0_0] : memref<16x1024xf32, #tpu.memory_space<vmem>>, vector<16x1024xf32>
    %c0_1 = arith.constant 0 : index
    %c0_2 = arith.constant 0 : index
    %1 = vector.load %arg2[%c0_1, %c0_2] : memref<32x1024xf32, #tpu.memory_space<vmem>>, vector<32x1024xf32>
    %2 = tpu.concatenate %0, %1 in 0 : vector<16x1024xf32>, vector<32x1024xf32> -> vector<48x1024xf32>
    %c0_3 = arith.constant 0 : index
    %c0_4 = arith.constant 0 : index
    %3 = vector.load %arg3[%c0_3, %c0_4] : memref<32x48xf32, #tpu.memory_space<vmem>>, vector<32x48xf32>
    %cst = arith.constant dense<0.000000e+00> : vector<32x1024xf32>
    %4 = tpu.matmul %3, %2, %cst {dimension_numbers = #tpu.dot_dimension_numbers<[1], [0], [0], [1], [0, 0, 1, 1], [], []>} : vector<32x48xf32>, vector<48x1024xf32>, vector<32x1024xf32> -> vector<32x1024xf32>
    %c0_5 = arith.constant 0 : index
    %c0_6 = arith.constant 0 : index
    %5 = vector.load %arg4[%c0_5, %c0_6] : memref<32x2xf32, #tpu.memory_space<vmem>>, vector<32x1xf32>
    %6 = vector.broadcast %5 : vector<32x1xf32> to vector<32x1024xf32>
    %7 = arith.addf %4, %6 : vector<32x1024xf32>
    %cst_7 = arith.constant 0.000000e+00 : f32
    %8 = vector.broadcast %cst_7 : f32 to vector<32x1024xf32>
    %9 = arith.maximumf %7, %8 : vector<32x1024xf32>
    %c0_8 = arith.constant 0 : index
    %c0_9 = arith.constant 0 : index
    %10 = vector.load %arg5[%c0_8, %c0_9] : memref<32x32xf32, #tpu.memory_space<vmem>>, vector<32x32xf32>
    %cst_10 = arith.constant dense<0.000000e+00> : vector<32x1024xf32>
    %11 = tpu.matmul %10, %9, %cst_10 {dimension_numbers = #tpu.dot_dimension_numbers<[1], [0], [0], [1], [0, 0, 1, 1], [], []>} : vector<32x32xf32>, vector<32x1024xf32>, vector<32x1024xf32> -> vector<32x1024xf32>
    %c0_11 = arith.constant 0 : index
    %c1 = arith.constant 1 : index
    %12 = vector.load %arg4[%c0_11, %c1] : memref<32x2xf32, #tpu.memory_space<vmem>>, vector<32x1xf32>
    %13 = vector.broadcast %12 : vector<32x1xf32> to vector<32x1024xf32>
    %14 = arith.addf %11, %13 : vector<32x1024xf32>
    %15 = tpu.concatenate %0, %14 in 0 : vector<16x1024xf32>, vector<32x1024xf32> -> vector<48x1024xf32>
    %c0_12 = arith.constant 0 : index
    %c0_13 = arith.constant 0 : index
    %16 = vector.load %arg6[%c0_12, %c0_13] : memref<16x48xf32, #tpu.memory_space<vmem>>, vector<16x48xf32>
    %cst_14 = arith.constant dense<0.000000e+00> : vector<16x1024xf32>
    %17 = tpu.matmul %16, %15, %cst_14 {dimension_numbers = #tpu.dot_dimension_numbers<[1], [0], [0], [1], [0, 0, 1, 1], [], []>} : vector<16x48xf32>, vector<48x1024xf32>, vector<16x1024xf32> -> vector<16x1024xf32>
    %c0_15 = arith.constant 0 : index
    %c0_16 = arith.constant 0 : index
    %18 = vector.load %arg7[%c0_15, %c0_16] : memref<16x2xf32, #tpu.memory_space<vmem>>, vector<16x1xf32>
    %19 = vector.broadcast %18 : vector<16x1xf32> to vector<16x1024xf32>
    %20 = arith.addf %17, %19 : vector<16x1024xf32>
    %cst_17 = arith.constant 0.000000e+00 : f32
    %21 = vector.broadcast %cst_17 : f32 to vector<16x1024xf32>
    %22 = arith.maximumf %20, %21 : vector<16x1024xf32>
    %c0_18 = arith.constant 0 : index
    %c0_19 = arith.constant 0 : index
    %23 = vector.load %arg8[%c0_18, %c0_19] : memref<16x16xf32, #tpu.memory_space<vmem>>, vector<16x16xf32>
    %cst_20 = arith.constant dense<0.000000e+00> : vector<16x1024xf32>
    %24 = tpu.matmul %23, %22, %cst_20 {dimension_numbers = #tpu.dot_dimension_numbers<[1], [0], [0], [1], [0, 0, 1, 1], [], []>} : vector<16x16xf32>, vector<16x1024xf32>, vector<16x1024xf32> -> vector<16x1024xf32>
    %c0_21 = arith.constant 0 : index
    %c1_22 = arith.constant 1 : index
    %25 = vector.load %arg7[%c0_21, %c1_22] : memref<16x2xf32, #tpu.memory_space<vmem>>, vector<16x1xf32>
    %26 = vector.broadcast %25 : vector<16x1xf32> to vector<16x1024xf32>
    %27 = arith.addf %24, %26 : vector<16x1024xf32>
    %c0_23 = arith.constant 0 : index
    %c0_24 = arith.constant 0 : index
    %28 = vector.load %arg12[%c0_23, %c0_24] : memref<16x1024xf32, #tpu.memory_space<vmem>>, vector<16x1024xf32>
    tpu.vector_store %arg12[%c0_23, %c0_24], %27 {strides = array<i32>} : memref<16x1024xf32, #tpu.memory_space<vmem>>, vector<16x1024xf32>,
    %29 = tpu.concatenate %1, %14, %27 in 0 : vector<32x1024xf32>, vector<32x1024xf32>, vector<16x1024xf32> -> vector<80x1024xf32>
    %c0_25 = arith.constant 0 : index
    %c0_26 = arith.constant 0 : index
    %30 = vector.load %arg9[%c0_25, %c0_26] : memref<32x80xf32, #tpu.memory_space<vmem>>, vector<32x80xf32>
    %cst_27 = arith.constant dense<0.000000e+00> : vector<32x1024xf32>
    %31 = tpu.matmul %30, %29, %cst_27 {dimension_numbers = #tpu.dot_dimension_numbers<[1], [0], [0], [1], [0, 0, 1, 1], [], []>} : vector<32x80xf32>, vector<80x1024xf32>, vector<32x1024xf32> -> vector<32x1024xf32>
    %c0_28 = arith.constant 0 : index
    %c0_29 = arith.constant 0 : index
    %32 = vector.load %arg10[%c0_28, %c0_29] : memref<32x2xf32, #tpu.memory_space<vmem>>, vector<32x1xf32>
    %33 = vector.broadcast %32 : vector<32x1xf32> to vector<32x1024xf32>
    %34 = arith.addf %31, %33 : vector<32x1024xf32>
    %cst_30 = arith.constant 0.000000e+00 : f32
    %35 = vector.broadcast %cst_30 : f32 to vector<32x1024xf32>
    %36 = arith.maximumf %34, %35 : vector<32x1024xf32>
    %c0_31 = arith.constant 0 : index
    %c0_32 = arith.constant 0 : index
    %37 = vector.load %arg11[%c0_31, %c0_32] : memref<32x32xf32, #tpu.memory_space<vmem>>, vector<32x32xf32>
    %cst_33 = arith.constant dense<0.000000e+00> : vector<32x1024xf32>
    %38 = tpu.matmul %37, %36, %cst_33 {dimension_numbers = #tpu.dot_dimension_numbers<[1], [0], [0], [1], [0, 0, 1, 1], [], []>} : vector<32x32xf32>, vector<32x1024xf32>, vector<32x1024xf32> -> vector<32x1024xf32>
    %c0_34 = arith.constant 0 : index
    %c1_35 = arith.constant 1 : index
    %39 = vector.load %arg10[%c0_34, %c1_35] : memref<32x2xf32, #tpu.memory_space<vmem>>, vector<32x1xf32>
    %40 = vector.broadcast %39 : vector<32x1xf32> to vector<32x1024xf32>
    %41 = arith.addf %38, %40 : vector<32x1024xf32>
    %c0_36 = arith.constant 0 : index
    %c0_37 = arith.constant 0 : index
    %42 = vector.load %arg13[%c0_36, %c0_37] : memref<32x1024xf32, #tpu.memory_space<vmem>>, vector<32x1024xf32>
    tpu.vector_store %arg13[%c0_36, %c0_37], %41 {strides = array<i32>} : memref<32x1024xf32, #tpu.memory_space<vmem>>, vector<32x1024xf32>,
    return
  }
  func.func @transform_0(%arg0: i32) -> (i32, i32) {
    %c0_i32 = arith.constant 0 : i32
    %c0_i32_0 = arith.constant 0 : i32
    return %c0_i32, %arg0 : i32, i32
  }
  func.func @transform_1(%arg0: i32) -> (i32, i32) {
    %c0_i32 = arith.constant 0 : i32
    %c0_i32_0 = arith.constant 0 : i32
    return %c0_i32, %arg0 : i32, i32
  }
  func.func @transform_2(%arg0: i32) -> (i32, i32) {
    %c0_i32 = arith.constant 0 : i32
    %c0_i32_0 = arith.constant 0 : i32
    %c0_i32_1 = arith.constant 0 : i32
    return %c0_i32, %c0_i32_0 : i32, i32
  }
  func.func @transform_3(%arg0: i32) -> (i32, i32) {
    %c0_i32 = arith.constant 0 : i32
    %c0_i32_0 = arith.constant 0 : i32
    %c0_i32_1 = arith.constant 0 : i32
    return %c0_i32, %c0_i32_0 : i32, i32
  }
  func.func @transform_4(%arg0: i32) -> (i32, i32) {
    %c0_i32 = arith.constant 0 : i32
    %c0_i32_0 = arith.constant 0 : i32
    %c0_i32_1 = arith.constant 0 : i32
    return %c0_i32, %c0_i32_0 : i32, i32
  }
  func.func @transform_5(%arg0: i32) -> (i32, i32) {
    %c0_i32 = arith.constant 0 : i32
    %c0_i32_0 = arith.constant 0 : i32
    %c0_i32_1 = arith.constant 0 : i32
    return %c0_i32, %c0_i32_0 : i32, i32
  }
  func.func @transform_6(%arg0: i32) -> (i32, i32) {
    %c0_i32 = arith.constant 0 : i32
    %c0_i32_0 = arith.constant 0 : i32
    %c0_i32_1 = arith.constant 0 : i32
    return %c0_i32, %c0_i32_0 : i32, i32
  }
  func.func @transform_7(%arg0: i32) -> (i32, i32) {
    %c0_i32 = arith.constant 0 : i32
    %c0_i32_0 = arith.constant 0 : i32
    %c0_i32_1 = arith.constant 0 : i32
    return %c0_i32, %c0_i32_0 : i32, i32
  }
  func.func @transform_8(%arg0: i32) -> (i32, i32) {
    %c0_i32 = arith.constant 0 : i32
    %c0_i32_0 = arith.constant 0 : i32
    %c0_i32_1 = arith.constant 0 : i32
    return %c0_i32, %c0_i32_0 : i32, i32
  }
  func.func @transform_9(%arg0: i32) -> (i32, i32) {
    %c0_i32 = arith.constant 0 : i32
    %c0_i32_0 = arith.constant 0 : i32
    %c0_i32_1 = arith.constant 0 : i32
    return %c0_i32, %c0_i32_0 : i32, i32
  }
  func.func @transform_10(%arg0: i32) -> (i32, i32) {
    %c0_i32 = arith.constant 0 : i32
    %c0_i32_0 = arith.constant 0 : i32
    %c0_i32_1 = arith.constant 0 : i32
    return %c0_i32, %c0_i32_0 : i32, i32
  }
  func.func @transform_11(%arg0: i32) -> (i32, i32) {
    %c0_i32 = arith.constant 0 : i32
    %c0_i32_0 = arith.constant 0 : i32
    return %c0_i32, %arg0 : i32, i32
  }
  func.func @transform_12(%arg0: i32) -> (i32, i32) {
    %c0_i32 = arith.constant 0 : i32
    %c0_i32_0 = arith.constant 0 : i32
    return %c0_i32, %arg0 : i32, i32
  }
}

</mosaic_0001>

<llo_original>
// kernel: tpu_custom_call.1
$region0: #{tpu_custom_call.1}
  #allocation0 [shape = 'u32[]', space=smem, size = 0x4, offset = 0x4, fixed_abs, tag = 'smem constant byte address 0x4 - core index']
  #allocation1 [shape = 'u32[144,128]{1,0:T(1,128)}', space=vmem, size = 0x12000, scoped, tag = 'internal scratch']
  %s0 = inlined_call_operand.hbm [shape: f32[16,2000], index: 0, kind: input, shape index: {}]
  %s1 = inlined_call_operand.hbm [shape: f32[32,2000], index: 1, kind: input, shape index: {}]
  %s2 = inlined_call_operand.vmem [shape: f32[32,48], index: 2, kind: input, shape index: {}]
  %s3 = inlined_call_operand.vmem [shape: f32[32,2], index: 3, kind: input, shape index: {}]
  %s4 = inlined_call_operand.vmem [shape: f32[32,32], index: 4, kind: input, shape index: {}]
  %s5 = inlined_call_operand.hbm [shape: f32[16,48], index: 5, kind: input, shape index: {}]
  %s6 = inlined_call_operand.vmem [shape: f32[16,2], index: 6, kind: input, shape index: {}]
  %s7 = inlined_call_operand.hbm [shape: f32[16,16], index: 7, kind: input, shape index: {}]
  %s8 = inlined_call_operand.vmem [shape: f32[32,80], index: 8, kind: input, shape index: {}]
  %s9 = inlined_call_operand.vmem [shape: f32[32,2], index: 9, kind: input, shape index: {}]
  %s10 = inlined_call_operand.hbm [shape: f32[32,32], index: 10, kind: input, shape index: {}]
  %s11 = inlined_call_operand.hbm [shape: f32[16,2000], index: 11, kind: output, shape index: {0}]
  %s12 = inlined_call_operand.hbm [shape: f32[32,2000], index: 12, kind: output, shape index: {1}]
  %13 = xla_tuple %s11, %s12
  %s14 = sld [smem:[#allocation0]]
  $region105: #{tpu_custom_call.1} parent=0
    _
  %s16 = ssub.s32 1, %s14
  %s17 = scalar_select 0, %s16, %s14
  $region1: #{tpu_custom_call.1} parent=0
    #allocation2 [shape = 'u8[131072]{0}', space=vmem, size = 0x20000, scoped, tag = 'input window, operand 0']
    #allocation3 [shape = 's32[2]{0}', space=sflag, size = 0x8, scoped, tag = 'scoped memory for tpu_custom_call.1']
    #allocation4 [shape = 's32[2]{0}', space=sflag, size = 0x8, scoped, tag = 'scoped memory for tpu_custom_call.1']
    #allocation5 [shape = 'u8[262144]{0}', space=vmem, size = 0x40000, scoped, tag = 'input window, operand 1']
    #allocation6 [shape = 's32[2]{0}', space=sflag, size = 0x8, scoped, tag = 'scoped memory for tpu_custom_call.1']
    #allocation7 [shape = 'u8[8192]{0}', space=vmem, size = 0x2000, scoped, tag = 'input window, operand 5, single buffered']
    #allocation8 [shape = 'u8[8192]{0}', space=vmem, size = 0x2000, scoped, tag = 'input window, operand 7, single buffered']
    #allocation9 [shape = 's32[1]{0}', space=sflag, size = 0x4, scoped, tag = 'scoped memory for tpu_custom_call.1']
    #allocation10 [shape = 'u8[16384]{0}', space=vmem, size = 0x4000, scoped, tag = 'input window, operand 10, single buffered']
    #allocation11 [shape = 'u8[131072]{0}', space=vmem, size = 0x20000, scoped, tag = 'output window, operand 0']
    #allocation12 [shape = 'u8[262144]{0}', space=vmem, size = 0x40000, scoped, tag = 'output window, operand 1']
    #allocation13 [shape = 's32[2]{0}', space=sflag, size = 0x8, scoped, tag = 'scoped memory for tpu_custom_call.1']
    %18 = vsyncpa [#allocation3], 0
    %s19 = scalar_lea.sflag [#allocation3], 1
    %20 = vsyncpa %s19, 0
    %21 = vsyncpa [#allocation6], 0
    %s22 = scalar_lea.sflag [#allocation6], 1
    %23 = vsyncpa %s22, 0
    %24 = vsyncpa [#allocation9], 0
    %25 = vsyncpa [#allocation4], 0
    %s26 = scalar_lea.sflag [#allocation4], 1
    %27 = vsyncpa %s26, 0
    %28 = vsyncpa [#allocation13], 0
    %s29 = scalar_lea.sflag [#allocation13], 1
    %30 = vsyncpa %s29, 0
    loop: start=0, step=1, limit=4
    $region2: #{tpu_custom_call.1} parent=1 // loop_pre_header
      _
    $region3: #{tpu_custom_call.1} parent=1 // loop_header
      %s32 = sphi 0, %s36
      %p33 = scmp.ge.s32.totalorder %s32, 4
      %s42 = sphi 0, %s44
      %s45 = sphi 0, %s42
      %s46 = sphi 0, %s45
      %s62 = sphi 0, %s46
      %s68 = sphi 0, %s70
      %s71 = sphi 0, %s68
      %s72 = sphi 0, %s71
      %s88 = sphi 0, %s72
      %s92 = sphi 0, %s92
      %s94 = sphi 0, %s92
      %s95 = sphi 0, %s94
      %s109 = sphi 0, %s95
      %s113 = sphi 0, %s113
      %s115 = sphi 0, %s113
      %s116 = sphi 0, %s115
      %s130 = sphi 0, %s116
      %s134 = sphi 0, %s134
      %s136 = sphi 0, %s134
      %s137 = sphi 0, %s136
      %s151 = sphi 0, %s137
      %s155 = sphi 0, %s155
      %s157 = sphi 0, %s155
      %s158 = sphi 0, %s157
      %s172 = sphi 0, %s158
      %s176 = sphi 0, %s176
      %s178 = sphi 0, %s176
      %s179 = sphi 0, %s178
      %s193 = sphi 0, %s179
      %s197 = sphi 0, %s197
      %s199 = sphi 0, %s197
      %s200 = sphi 0, %s199
      %s214 = sphi 0, %s200
      %s218 = sphi 0, %s218
      %s220 = sphi 0, %s218
      %s221 = sphi 0, %s220
      %s235 = sphi 0, %s221
      %s239 = sphi 0, %s239
      %s241 = sphi 0, %s239
      %s242 = sphi 0, %s241
      %s256 = sphi 0, %s242
      %s260 = sphi 0, %s260
      %s262 = sphi 0, %s260
      %s263 = sphi 0, %s262
      %s277 = sphi 0, %s263
      %s283 = sphi 0, %s285
      %s286 = sphi 0, %s283
      %s287 = sphi 0, %s286
      %s303 = sphi 0, %s287
      %s309 = sphi 0, %s311
      %s312 = sphi 0, %s309
      %s313 = sphi 0, %s312
      %s329 = sphi 0, %s313
    $region4: #{tpu_custom_call.1} parent=1 // loop_header_branch
      %35 = sbr.rel (%p33) target = $region8
    $region5: #{tpu_custom_call.1} parent=1 // loop_body
      %s37 = ssub.s32 %s32, 1
      %s38 = ssub.s32 %s32, 2
      %s39 = sadd.s32 %s32, 1
      %s40 = ssub.s32 %s32, %s39
      %p41 = scmp.eq.s32.totalorder %s40, 0
      %s43 = sadd.s32 %s42, 1
      %s44 = scalar_select %p41, %s42, %s43
      %p47 = pneg %p41
      %p48 = scmp.eq.s32.totalorder %s32, 1
      %p49 = por %p47, %p48
      %p50 = scmp.ne.s32.totalorder %s42, %s45
      %p51 = scmp.eq.s32.totalorder %s32, 0
      %p52 = por %p50, %p51
      %p53 = scmp.ne.s32.totalorder %s42, %s45
      %p54 = scmp.eq.s32.totalorder %s37, 1
      %p55 = por %p53, %p54
      %p56 = scmp.ne.s32.totalorder %s45, %s46
      %p57 = scmp.eq.s32.totalorder %s37, 0
      %p58 = por %p56, %p57
      %p59 = scmp.ne.s32.totalorder %s45, %s46
      %p60 = scmp.eq.s32.totalorder %s38, 1
      %p61 = por %p59, %p60
      %p63 = scmp.ne.s32.totalorder %s46, %s62
      %p64 = scmp.eq.s32.totalorder %s38, 0
      %p65 = por %p63, %p64
      %s66 = ssub.s32 %s32, %s39
      %p67 = scmp.eq.s32.totalorder %s66, 0
      %s69 = sadd.s32 %s68, 1
      %s70 = scalar_select %p67, %s68, %s69
      %p73 = pneg %p67
      %p74 = scmp.eq.s32.totalorder %s32, 1
      %p75 = por %p73, %p74
      %p76 = scmp.ne.s32.totalorder %s68, %s71
      %p77 = scmp.eq.s32.totalorder %s32, 0
      %p78 = por %p76, %p77
      %p79 = scmp.ne.s32.totalorder %s68, %s71
      %p80 = scmp.eq.s32.totalorder %s37, 1
      %p81 = por %p79, %p80
      %p82 = scmp.ne.s32.totalorder %s71, %s72
      %p83 = scmp.eq.s32.totalorder %s37, 0
      %p84 = por %p82, %p83
      %p85 = scmp.ne.s32.totalorder %s71, %s72
      %p86 = scmp.eq.s32.totalorder %s38, 1
      %p87 = por %p85, %p86
      %p89 = scmp.ne.s32.totalorder %s72, %s88
      %p90 = scmp.eq.s32.totalorder %s38, 0
      %p91 = por %p89, %p90
      %s93 = sadd.s32 %s92, 1
      %p96 = scmp.eq.s32.totalorder %s32, 1
      %p97 = scmp.ne.s32.totalorder %s92, %s94
      %p98 = scmp.eq.s32.totalorder %s32, 0
      %p99 = por %p97, %p98
      %p100 = scmp.ne.s32.totalorder %s92, %s94
      %p101 = scmp.eq.s32.totalorder %s37, 1
      %p102 = por %p100, %p101
      %p103 = scmp.ne.s32.totalorder %s94, %s95
      %p104 = scmp.eq.s32.totalorder %s37, 0
      %p105 = por %p103, %p104
      %p106 = scmp.ne.s32.totalorder %s94, %s95
      %p107 = scmp.eq.s32.totalorder %s38, 1
      %p108 = por %p106, %p107
      %p110 = scmp.ne.s32.totalorder %s95, %s109
      %p111 = scmp.eq.s32.totalorder %s38, 0
      %p112 = por %p110, %p111
      %s114 = sadd.s32 %s113, 1
      %p117 = scmp.eq.s32.totalorder %s32, 1
      %p118 = scmp.ne.s32.totalorder %s113, %s115
      %p119 = scmp.eq.s32.totalorder %s32, 0
      %p120 = por %p118, %p119
      %p121 = scmp.ne.s32.totalorder %s113, %s115
      %p122 = scmp.eq.s32.totalorder %s37, 1
      %p123 = por %p121, %p122
      %p124 = scmp.ne.s32.totalorder %s115, %s116
      %p125 = scmp.eq.s32.totalorder %s37, 0
      %p126 = por %p124, %p125
      %p127 = scmp.ne.s32.totalorder %s115, %s116
      %p128 = scmp.eq.s32.totalorder %s38, 1
      %p129 = por %p127, %p128
      %p131 = scmp.ne.s32.totalorder %s116, %s130
      %p132 = scmp.eq.s32.totalorder %s38, 0
      %p133 = por %p131, %p132
      %s135 = sadd.s32 %s134, 1
      %p138 = scmp.eq.s32.totalorder %s32, 1
      %p139 = scmp.ne.s32.totalorder %s134, %s136
      %p140 = scmp.eq.s32.totalorder %s32, 0
      %p141 = por %p139, %p140
      %p142 = scmp.ne.s32.totalorder %s134, %s136
      %p143 = scmp.eq.s32.totalorder %s37, 1
      %p144 = por %p142, %p143
      %p145 = scmp.ne.s32.totalorder %s136, %s137
      %p146 = scmp.eq.s32.totalorder %s37, 0
      %p147 = por %p145, %p146
      %p148 = scmp.ne.s32.totalorder %s136, %s137
      %p149 = scmp.eq.s32.totalorder %s38, 1
      %p150 = por %p148, %p149
      %p152 = scmp.ne.s32.totalorder %s137, %s151
      %p153 = scmp.eq.s32.totalorder %s38, 0
      %p154 = por %p152, %p153
      %s156 = sadd.s32 %s155, 1
      %p159 = scmp.eq.s32.totalorder %s32, 1
      %p160 = scmp.ne.s32.totalorder %s155, %s157
      %p161 = scmp.eq.s32.totalorder %s32, 0
      %p162 = por %p160, %p161
      %p163 = scmp.ne.s32.totalorder %s155, %s157
      %p164 = scmp.eq.s32.totalorder %s37, 1
      %p165 = por %p163, %p164
      %p166 = scmp.ne.s32.totalorder %s157, %s158
      %p167 = scmp.eq.s32.totalorder %s37, 0
      %p168 = por %p166, %p167
      %p169 = scmp.ne.s32.totalorder %s157, %s158
      %p170 = scmp.eq.s32.totalorder %s38, 1
      %p171 = por %p169, %p170
      %p173 = scmp.ne.s32.totalorder %s158, %s172
      %p174 = scmp.eq.s32.totalorder %s38, 0
      %p175 = por %p173, %p174
      %s177 = sadd.s32 %s176, 1
      %p180 = scmp.eq.s32.totalorder %s32, 1
      %p181 = scmp.ne.s32.totalorder %s176, %s178
      %p182 = scmp.eq.s32.totalorder %s32, 0
      %p183 = por %p181, %p182
      %p184 = scmp.ne.s32.totalorder %s176, %s178
      %p185 = scmp.eq.s32.totalorder %s37, 1
      %p186 = por %p184, %p185
      %p187 = scmp.ne.s32.totalorder %s178, %s179
      %p188 = scmp.eq.s32.totalorder %s37, 0
      %p189 = por %p187, %p188
      %p190 = scmp.ne.s32.totalorder %s178, %s179
      %p191 = scmp.eq.s32.totalorder %s38, 1
      %p192 = por %p190, %p191
      %p194 = scmp.ne.s32.totalorder %s179, %s193
      %p195 = scmp.eq.s32.totalorder %s38, 0
      %p196 = por %p194, %p195
      %s198 = sadd.s32 %s197, 1
      %p201 = scmp.eq.s32.totalorder %s32, 1
      %p202 = scmp.ne.s32.totalorder %s197, %s199
      %p203 = scmp.eq.s32.totalorder %s32, 0
      %p204 = por %p202, %p203
      %p205 = scmp.ne.s32.totalorder %s197, %s199
      %p206 = scmp.eq.s32.totalorder %s37, 1
      %p207 = por %p205, %p206
      %p208 = scmp.ne.s32.totalorder %s199, %s200
      %p209 = scmp.eq.s32.totalorder %s37, 0
      %p210 = por %p208, %p209
      %p211 = scmp.ne.s32.totalorder %s199, %s200
      %p212 = scmp.eq.s32.totalorder %s38, 1
      %p213 = por %p211, %p212
      %p215 = scmp.ne.s32.totalorder %s200, %s214
      %p216 = scmp.eq.s32.totalorder %s38, 0
      %p217 = por %p215, %p216
      %s219 = sadd.s32 %s218, 1
      %p222 = scmp.eq.s32.totalorder %s32, 1
      %p223 = scmp.ne.s32.totalorder %s218, %s220
      %p224 = scmp.eq.s32.totalorder %s32, 0
      %p225 = por %p223, %p224
      %p226 = scmp.ne.s32.totalorder %s218, %s220
      %p227 = scmp.eq.s32.totalorder %s37, 1
      %p228 = por %p226, %p227
      %p229 = scmp.ne.s32.totalorder %s220, %s221
      %p230 = scmp.eq.s32.totalorder %s37, 0
      %p231 = por %p229, %p230
      %p232 = scmp.ne.s32.totalorder %s220, %s221
      %p233 = scmp.eq.s32.totalorder %s38, 1
      %p234 = por %p232, %p233
      %p236 = scmp.ne.s32.totalorder %s221, %s235
      %p237 = scmp.eq.s32.totalorder %s38, 0
      %p238 = por %p236, %p237
      %s240 = sadd.s32 %s239, 1
      %p243 = scmp.eq.s32.totalorder %s32, 1
      %p244 = scmp.ne.s32.totalorder %s239, %s241
      %p245 = scmp.eq.s32.totalorder %s32, 0
      %p246 = por %p244, %p245
      %p247 = scmp.ne.s32.totalorder %s239, %s241
      %p248 = scmp.eq.s32.totalorder %s37, 1
      %p249 = por %p247, %p248
      %p250 = scmp.ne.s32.totalorder %s241, %s242
      %p251 = scmp.eq.s32.totalorder %s37, 0
      %p252 = por %p250, %p251
      %p253 = scmp.ne.s32.totalorder %s241, %s242
      %p254 = scmp.eq.s32.totalorder %s38, 1
      %p255 = por %p253, %p254
      %p257 = scmp.ne.s32.totalorder %s242, %s256
      %p258 = scmp.eq.s32.totalorder %s38, 0
      %p259 = por %p257, %p258
      %s261 = sadd.s32 %s260, 1
      %p264 = scmp.eq.s32.totalorder %s32, 1
      %p265 = scmp.ne.s32.totalorder %s260, %s262
      %p266 = scmp.eq.s32.totalorder %s32, 0
      %p267 = por %p265, %p266
      %p268 = scmp.ne.s32.totalorder %s260, %s262
      %p269 = scmp.eq.s32.totalorder %s37, 1
      %p270 = por %p268, %p269
      %p271 = scmp.ne.s32.totalorder %s262, %s263
      %p272 = scmp.eq.s32.totalorder %s37, 0
      %p273 = por %p271, %p272
      %p274 = scmp.ne.s32.totalorder %s262, %s263
      %p275 = scmp.eq.s32.totalorder %s38, 1
      %p276 = por %p274, %p275
      %p278 = scmp.ne.s32.totalorder %s263, %s277
      %p279 = scmp.eq.s32.totalorder %s38, 0
      %p280 = por %p278, %p279
      %s281 = ssub.s32 %s32, %s39
      %p282 = scmp.eq.s32.totalorder %s281, 0
      %s284 = sadd.s32 %s283, 1
      %s285 = scalar_select %p282, %s283, %s284
      %p288 = pneg %p282
      %p289 = scmp.eq.s32.totalorder %s32, 1
      %p290 = por %p288, %p289
      %p291 = scmp.ne.s32.totalorder %s283, %s286
      %p292 = scmp.eq.s32.totalorder %s32, 0
      %p293 = por %p291, %p292
      %p294 = scmp.ne.s32.totalorder %s283, %s286
      %p295 = scmp.eq.s32.totalorder %s37, 1
      %p296 = por %p294, %p295
      %p297 = scmp.ne.s32.totalorder %s286, %s287
      %p298 = scmp.eq.s32.totalorder %s37, 0
      %p299 = por %p297, %p298
      %p300 = scmp.ne.s32.totalorder %s286, %s287
      %p301 = scmp.eq.s32.totalorder %s38, 1
      %p302 = por %p300, %p301
      %p304 = scmp.ne.s32.totalorder %s287, %s303
      %p305 = scmp.eq.s32.totalorder %s38, 0
      %p306 = por %p304, %p305
      %s307 = ssub.s32 %s32, %s39
      %p308 = scmp.eq.s32.totalorder %s307, 0
      %s310 = sadd.s32 %s309, 1
      %s311 = scalar_select %p308, %s309, %s310
      %p314 = pneg %p308
      %p315 = scmp.eq.s32.totalorder %s32, 1
      %p316 = por %p314, %p315
      %p317 = scmp.ne.s32.totalorder %s309, %s312
      %p318 = scmp.eq.s32.totalorder %s32, 0
      %p319 = por %p317, %p318
      %p320 = scmp.ne.s32.totalorder %s309, %s312
      %p321 = scmp.eq.s32.totalorder %s37, 1
      %p322 = por %p320, %p321
      %p323 = scmp.ne.s32.totalorder %s312, %s313
      %p324 = scmp.eq.s32.totalorder %s37, 0
      %p325 = por %p323, %p324
      %p326 = scmp.ne.s32.totalorder %s312, %s313
      %p327 = scmp.eq.s32.totalorder %s38, 1
      %p328 = por %p326, %p327
      %p330 = scmp.ne.s32.totalorder %s313, %s329
      %p331 = scmp.eq.s32.totalorder %s38, 0
      %p332 = por %p330, %p331
      %p333 = scmp.le.s32.totalorder 1, %s32
      %p334 = scmp.lt.s32.totalorder %s32, 3
      %p335 = pnand %p333, %p334
      %p336 = pneg %p335
      // Predicated region
      $region9: #{tpu_custom_call.1} parent=5 // pred_check
        _
      $region10: #{tpu_custom_call.1} parent=5 // pred_check_branch
        %338 = sbr.rel (%p335) target = $region12
      $region11: #{tpu_custom_call.1} parent=5 // pred_region
        %s339 = ssub.s32 %s32, 1
        // Predicated region
        $region13: #{tpu_custom_call.1} parent=11 // pred_check
          %p340 = pneg %p105
        $region14: #{tpu_custom_call.1} parent=11 // pred_check_branch
          %342 = sbr.rel (%p340) target = $region16
        $region15: #{tpu_custom_call.1} parent=11 // pred_region
          _
        $region16: #{tpu_custom_call.1} parent=11 // pred_fallthru
          _
        // Predicated region
        $region17: #{tpu_custom_call.1} parent=11 // pred_check
          %p343 = pneg %p126
        $region18: #{tpu_custom_call.1} parent=11 // pred_check_branch
          %345 = sbr.rel (%p343) target = $region20
        $region19: #{tpu_custom_call.1} parent=11 // pred_region
          _
        $region20: #{tpu_custom_call.1} parent=11 // pred_fallthru
          _
        // Predicated region
        $region21: #{tpu_custom_call.1} parent=11 // pred_check
          %p346 = pneg %p147
        $region22: #{tpu_custom_call.1} parent=11 // pred_check_branch
          %348 = sbr.rel (%p346) target = $region24
        $region23: #{tpu_custom_call.1} parent=11 // pred_region
          _
        $region24: #{tpu_custom_call.1} parent=11 // pred_fallthru
          _
        // Predicated region
        $region25: #{tpu_custom_call.1} parent=11 // pred_check
          %p349 = pneg %p168
        $region26: #{tpu_custom_call.1} parent=11 // pred_check_branch
          %351 = sbr.rel (%p349) target = $region28
        $region27: #{tpu_custom_call.1} parent=11 // pred_region
          %s353 = ssub.s32 256, 256
          %354 = vsyncadd [#allocation6], %s353
          %s355 = sshll.u32 [#allocation7], 4
          %s356 = int_to_ptr.vmem [resolvable:$true] %s355
          %361 = dma.hbm_to_vmem [thread:$0]  %s5, 256, %s356, [#allocation6], 128, 128, 8
        $region28: #{tpu_custom_call.1} parent=11 // pred_fallthru
          _
        // Predicated region
        $region29: #{tpu_custom_call.1} parent=11 // pred_check
          %p362 = pneg %p189
        $region30: #{tpu_custom_call.1} parent=11 // pred_check_branch
          %364 = sbr.rel (%p362) target = $region32
        $region31: #{tpu_custom_call.1} parent=11 // pred_region
          _
        $region32: #{tpu_custom_call.1} parent=11 // pred_fallthru
          _
        // Predicated region
        $region33: #{tpu_custom_call.1} parent=11 // pred_check
          %p365 = pneg %p210
        $region34: #{tpu_custom_call.1} parent=11 // pred_check_branch
          %367 = sbr.rel (%p365) target = $region36
        $region35: #{tpu_custom_call.1} parent=11 // pred_region
          %s369 = ssub.s32 256, 256
          %370 = vsyncadd [#allocation9], %s369
          %s371 = sshll.u32 [#allocation8], 4
          %s372 = int_to_ptr.vmem [resolvable:$true] %s371
          %377 = dma.hbm_to_vmem [thread:$0]  %s7, 256, %s372, [#allocation9], 128, 128, 8
        $region36: #{tpu_custom_call.1} parent=11 // pred_fallthru
          _
        // Predicated region
        $region37: #{tpu_custom_call.1} parent=11 // pred_check
          %p378 = pneg %p231
        $region38: #{tpu_custom_call.1} parent=11 // pred_check_branch
          %380 = sbr.rel (%p378) target = $region40
        $region39: #{tpu_custom_call.1} parent=11 // pred_region
          _
        $region40: #{tpu_custom_call.1} parent=11 // pred_fallthru
          _
        // Predicated region
        $region41: #{tpu_custom_call.1} parent=11 // pred_check
          %p381 = pneg %p252
        $region42: #{tpu_custom_call.1} parent=11 // pred_check_branch
          %383 = sbr.rel (%p381) target = $region44
        $region43: #{tpu_custom_call.1} parent=11 // pred_region
          _
        $region44: #{tpu_custom_call.1} parent=11 // pred_fallthru
          _
        // Predicated region
        $region45: #{tpu_custom_call.1} parent=11 // pred_check
          %p384 = pneg %p273
        $region46: #{tpu_custom_call.1} parent=11 // pred_check_branch
          %386 = sbr.rel (%p384) target = $region48
        $region47: #{tpu_custom_call.1} parent=11 // pred_region
          %s388 = ssub.s32 512, 512
          %389 = vsyncadd [#allocation9], %s388
          %s390 = sshll.u32 [#allocation10], 4
          %s391 = int_to_ptr.vmem [resolvable:$true] %s390
          %396 = dma.hbm_to_vmem [thread:$0]  %s10, 512, %s391, [#allocation9], 128, 128, 8
        $region48: #{tpu_custom_call.1} parent=11 // pred_fallthru
          _
      $region12: #{tpu_custom_call.1} parent=5 // pred_fallthru
        _
      %p397 = scmp.lt.s32.totalorder %s32, 2
      // Predicated region
      $region49: #{tpu_custom_call.1} parent=5 // pred_check
        %p398 = pneg %p397
      $region50: #{tpu_custom_call.1} parent=5 // pred_check_branch
        %400 = sbr.rel (%p398) target = $region52
      $region51: #{tpu_custom_call.1} parent=5 // pred_region
        // Predicated region
        $region53: #{tpu_custom_call.1} parent=51 // pred_check
          %p401 = pneg %p52
        $region54: #{tpu_custom_call.1} parent=51 // pred_check_branch
          %403 = sbr.rel (%p401) target = $region56
        $region55: #{tpu_custom_call.1} parent=51 // pred_region
          %s404 = sand.u32 %s42, 1
          %s405 = scalar_lea.sflag [#allocation3], %s404
          %s406 = sand.u32 %s42, 1
          %s407 = smul.addr %s406, 128
          %s408 = scalar_lea.vmem [#allocation2], %s407
          %s409 = smul.u32 8, %s32
          %s411 = ssub.s32 2048, 2048
          %412 = vsyncadd %s405, %s411
          %s413 = smul.addr %s409, 128
          %s414 = scalar_lea.hbm %s0, %s413
          %s415 = sshll.u32 %s408, 4
          %s416 = int_to_ptr.vmem [resolvable:$true] %s415
          %421 = dma.hbm_to_vmem [thread:$0]  %s414, 2048, %s416, %s405, 2048, 1024, 64
        $region56: #{tpu_custom_call.1} parent=51 // pred_fallthru
          _
        // Predicated region
        $region57: #{tpu_custom_call.1} parent=51 // pred_check
          %p422 = pneg %p78
        $region58: #{tpu_custom_call.1} parent=51 // pred_check_branch
          %424 = sbr.rel (%p422) target = $region60
        $region59: #{tpu_custom_call.1} parent=51 // pred_region
          %s425 = sand.u32 %s32, 1
          %s426 = scalar_lea.sflag [#allocation6], %s425
          %s427 = sand.u32 %s68, 1
          %s428 = smul.addr %s427, 256
          %s429 = scalar_lea.vmem [#allocation5], %s428
          %s430 = smul.u32 8, %s32
          %s432 = ssub.s32 4096, 4096
          %433 = vsyncadd %s426, %s432
          %s434 = smul.addr %s430, 128
          %s435 = scalar_lea.hbm %s1, %s434
          %s436 = sshll.u32 %s429, 4
          %s437 = int_to_ptr.vmem [resolvable:$true] %s436
          %442 = dma.hbm_to_vmem [thread:$0]  %s435, 4096, %s437, %s426, 2048, 1024, 64
        $region60: #{tpu_custom_call.1} parent=51 // pred_fallthru
          _
      $region52: #{tpu_custom_call.1} parent=5 // pred_fallthru
        _
      %p443 = scmp.le.s32.totalorder 1, %s32
      %p444 = scmp.lt.s32.totalorder %s32, 3
      %p445 = pnand %p443, %p444
      %p446 = pneg %p445
      // Predicated region
      $region61: #{tpu_custom_call.1} parent=5 // pred_check
        _
      $region62: #{tpu_custom_call.1} parent=5 // pred_check_branch
        %448 = sbr.rel (%p445) target = $region64
      $region63: #{tpu_custom_call.1} parent=5 // pred_region
        %s449 = ssub.s32 %s32, 1
        %s450 = sand.u32 %s45, 1
        %s451 = scalar_lea.sflag [#allocation3], %s450
        %s452 = sand.u32 %s45, 1
        %s453 = smul.addr %s452, 128
        %s454 = scalar_lea.vmem [#allocation2], %s453
        // Predicated region
        $region65: #{tpu_custom_call.1} parent=63 // pred_check
          %p455 = pneg %p58
        $region66: #{tpu_custom_call.1} parent=63 // pred_check_branch
          %457 = sbr.rel (%p455) target = $region68
        $region67: #{tpu_custom_call.1} parent=63 // pred_region
          %458 = dma.done %s451, 2048
        $region68: #{tpu_custom_call.1} parent=63 // pred_fallthru
          _
        %s459 = sand.u32 %s37, 1
        %s460 = scalar_lea.sflag [#allocation6], %s459
        %s461 = sand.u32 %s71, 1
        %s462 = smul.addr %s461, 256
        %s463 = scalar_lea.vmem [#allocation5], %s462
        // Predicated region
        $region69: #{tpu_custom_call.1} parent=63 // pred_check
          %p464 = pneg %p84
        $region70: #{tpu_custom_call.1} parent=63 // pred_check_branch
          %466 = sbr.rel (%p464) target = $region72
        $region71: #{tpu_custom_call.1} parent=63 // pred_region
          %467 = dma.done %s460, 4096
        $region72: #{tpu_custom_call.1} parent=63 // pred_fallthru
          _
        // Predicated region
        $region73: #{tpu_custom_call.1} parent=63 // pred_check
          %p468 = pneg %p168
        $region74: #{tpu_custom_call.1} parent=63 // pred_check_branch
          %470 = sbr.rel (%p468) target = $region76
        $region75: #{tpu_custom_call.1} parent=63 // pred_region
          %471 = dma.done [#allocation6], 256
        $region76: #{tpu_custom_call.1} parent=63 // pred_fallthru
          _
        // Predicated region
        $region77: #{tpu_custom_call.1} parent=63 // pred_check
          %p472 = pneg %p210
        $region78: #{tpu_custom_call.1} parent=63 // pred_check_branch
          %474 = sbr.rel (%p472) target = $region80
        $region79: #{tpu_custom_call.1} parent=63 // pred_region
          %475 = dma.done [#allocation9], 256
        $region80: #{tpu_custom_call.1} parent=63 // pred_fallthru
          _
        // Predicated region
        $region81: #{tpu_custom_call.1} parent=63 // pred_check
          %p476 = pneg %p273
        $region82: #{tpu_custom_call.1} parent=63 // pred_check_branch
          %478 = sbr.rel (%p476) target = $region84
        $region83: #{tpu_custom_call.1} parent=63 // pred_region
          %479 = dma.done [#allocation9], 512
        $region84: #{tpu_custom_call.1} parent=63 // pred_fallthru
          _
        %s480 = sand.u32 %s45, 1
        %s481 = scalar_lea.sflag [#allocation3], %s480
        %s482 = sand.u32 %s45, 1
        %s483 = smul.addr %s482, 128
        %s484 = scalar_lea.vmem [#allocation2], %s483
        %p485 = pneg %p58
        %p486 = pneg %p55
        %s487 = sand.u32 %s37, 1
        %s488 = scalar_lea.sflag [#allocation6], %s487
        %s489 = sand.u32 %s71, 1
        %s490 = smul.addr %s489, 256
        %s491 = scalar_lea.vmem [#allocation5], %s490
        %p492 = pneg %p84
        %p493 = pneg %p81
        %p494 = pneg %p105
        %p495 = pneg %p102
        %p496 = pneg %p126
        %p497 = pneg %p123
        %p498 = pneg %p147
        %p499 = pneg %p144
        %p500 = pneg %p168
        %p501 = pneg %p165
        %p502 = pneg %p189
        %p503 = pneg %p186
        %p504 = pneg %p210
        %p505 = pneg %p207
        %p506 = pneg %p231
        %p507 = pneg %p228
        %p508 = pneg %p252
        %p509 = pneg %p249
        %p510 = pneg %p273
        %p511 = pneg %p270
        %p512 = pneg %p299
        %p513 = pneg %p296
        %s514 = sand.u32 %s286, 1
        %s515 = scalar_lea.sflag [#allocation4], %s514
        %s516 = sand.u32 %s286, 1
        %s517 = smul.addr %s516, 128
        %s518 = scalar_lea.vmem [#allocation11], %s517
        %p519 = pneg %p325
        %p520 = pneg %p322
        %s521 = sand.u32 %s312, 1
        %s522 = scalar_lea.sflag [#allocation13], %s521
        %s523 = sand.u32 %s312, 1
        %s524 = smul.addr %s523, 256
        %s525 = scalar_lea.vmem [#allocation12], %s524
        %s526 = smul.u32 8, %s37
        %s527 = smul.u32 8, %s37
        %s528 = smul.u32 8, %s37
        %s529 = smul.u32 8, %s37
        %v530 = vld [vmem:[%s454] sm:$0xff]
        %v531 = vld [vmem:[%s454 + $0x8] sm:$0xff]
        %v532 = vld [vmem:[%s454 + $0x10] sm:$0xff]
        %v533 = vld [vmem:[%s454 + $0x18] sm:$0xff]
        %v534 = vld [vmem:[%s454 + $0x20] sm:$0xff]
        %v535 = vld [vmem:[%s454 + $0x28] sm:$0xff]
        %v536 = vld [vmem:[%s454 + $0x30] sm:$0xff]
        %v537 = vld [vmem:[%s454 + $0x38] sm:$0xff]
        %v538 = vld [vmem:[%s454 + $0x40] sm:$0xff]
        %v539 = vld [vmem:[%s454 + $0x48] sm:$0xff]
        %v540 = vld [vmem:[%s454 + $0x50] sm:$0xff]
        %v541 = vld [vmem:[%s454 + $0x58] sm:$0xff]
        %v542 = vld [vmem:[%s454 + $0x60] sm:$0xff]
        %v543 = vld [vmem:[%s454 + $0x68] sm:$0xff]
        %v544 = vld [vmem:[%s454 + $0x70] sm:$0xff]
        %v545 = vld [vmem:[%s454 + $0x78] sm:$0xff]
        %v546 = vld [vmem:[%s463] sm:$0xff]
        %v547 = vld [vmem:[%s463 + $0x8] sm:$0xff]
        %v548 = vld [vmem:[%s463 + $0x10] sm:$0xff]
        %v549 = vld [vmem:[%s463 + $0x18] sm:$0xff]
        %v550 = vld [vmem:[%s463 + $0x20] sm:$0xff]
        %v551 = vld [vmem:[%s463 + $0x28] sm:$0xff]
        %v552 = vld [vmem:[%s463 + $0x30] sm:$0xff]
        %v553 = vld [vmem:[%s463 + $0x38] sm:$0xff]
        %v554 = vld [vmem:[%s463 + $0x40] sm:$0xff]
        %v555 = vld [vmem:[%s463 + $0x48] sm:$0xff]
        %v556 = vld [vmem:[%s463 + $0x50] sm:$0xff]
        %v557 = vld [vmem:[%s463 + $0x58] sm:$0xff]
        %v558 = vld [vmem:[%s463 + $0x60] sm:$0xff]
        %v559 = vld [vmem:[%s463 + $0x68] sm:$0xff]
        %v560 = vld [vmem:[%s463 + $0x70] sm:$0xff]
        %v561 = vld [vmem:[%s463 + $0x78] sm:$0xff]
        %v562 = vld [vmem:[%s463 + $0x80] sm:$0xff]
        %v563 = vld [vmem:[%s463 + $0x88] sm:$0xff]
        %v564 = vld [vmem:[%s463 + $0x90] sm:$0xff]
        %v565 = vld [vmem:[%s463 + $0x98] sm:$0xff]
        %v566 = vld [vmem:[%s463 + $0xa0] sm:$0xff]
        %v567 = vld [vmem:[%s463 + $0xa8] sm:$0xff]
        %v568 = vld [vmem:[%s463 + $0xb0] sm:$0xff]
        %v569 = vld [vmem:[%s463 + $0xb8] sm:$0xff]
        %v570 = vld [vmem:[%s463 + $0xc0] sm:$0xff]
        %v571 = vld [vmem:[%s463 + $0xc8] sm:$0xff]
        %v572 = vld [vmem:[%s463 + $0xd0] sm:$0xff]
        %v573 = vld [vmem:[%s463 + $0xd8] sm:$0xff]
        %v574 = vld [vmem:[%s463 + $0xe0] sm:$0xff]
        %v575 = vld [vmem:[%s463 + $0xe8] sm:$0xff]
        %v576 = vld [vmem:[%s463 + $0xf0] sm:$0xff]
        %v577 = vld [vmem:[%s463 + $0xf8] sm:$0xff]
        %v578 = vld [vmem:[%s2] sm:$0xff]
        %v579 = vld [vmem:[%s2 + $0x8] sm:$0xff]
        %v580 = vld [vmem:[%s2 + $0x10] sm:$0xff]
        %v581 = vld [vmem:[%s2 + $0x18] sm:$0xff]
        %v582 = vld [vmem:[%s3] sm:$0xff]
        %v583 = vld [vmem:[%s3 + $0x8] sm:$0xff]
        %v584 = vld [vmem:[%s3 + $0x10] sm:$0xff]
        %v585 = vld [vmem:[%s3 + $0x18] sm:$0xff]
        %587 = vset.pattern.permute.xlu0 0
        %588 = vperm.xlu0 %587, %v582
        %v589 = vpop.permute.xlu0 %588
        %592 = vset.pattern.permute.xlu0 0
        %593 = vperm.xlu0 %592, %v583
        %v594 = vpop.permute.xlu0 %593
        %597 = vset.pattern.permute.xlu0 0
        %598 = vperm.xlu0 %597, %v584
        %v599 = vpop.permute.xlu0 %598
        %602 = vset.pattern.permute.xlu0 0
        %603 = vperm.xlu0 %602, %v585
        %v604 = vpop.permute.xlu0 %603
        %vm606 = vcmask 392192
        %v608 = vsel %vm606, %v578, 0
        %v611 = vsel %vm606, %v579, 0
        %v614 = vsel %vm606, %v580, 0
        %v617 = vsel %vm606, %v581, 0
        %619 = vmatprep.subr.mxu0 0.0
        %620 = vmatpush1.msra.mxu0 0.0
        %621 = vmatprep.subr.mxu0 0.0
        %622 = vmatpush1.msra.mxu0 0.0
        %623 = vmatprep.subr.mxu0 0.0
        %624 = vmatpush1.msra.mxu0 0.0
        %625 = vmatprep.subr.mxu0 0.0
        %626 = vmatpush1.msra.mxu0 0.0
        %627 = vmatprep.subr.mxu0 0.0
        %628 = vmatpush1.msra.mxu0 0.0
        %629 = vmatprep.subr.mxu0 0.0
        %630 = vmatpush1.msra.mxu0 0.0
        %631 = vmatprep.subr.mxu0 0.0
        %632 = vmatpush1.msra.mxu0 0.0
        %633 = vmatprep.subr.mxu0 0.0
        %634 = vmatpush1.msra.mxu0 0.0
        %635 = vmatprep.subr.mxu0 0.0
        %636 = vmatpush1.msra.mxu0 0.0
        %637 = vmatprep.subr.mxu0 0.0
        %638 = vmatpush1.msra.mxu0 0.0
        %639 = vmatprep.subr.mxu0 %v571
        %640 = vmatpush1.msra.mxu0 %v570
        %641 = vmatprep.subr.mxu0 %v563
        %642 = vmatpush1.msra.mxu0 %v562
        %643 = vmatprep.subr.mxu0 %v555
        %644 = vmatpush1.msra.mxu0 %v554
        %645 = vmatprep.subr.mxu0 %v547
        %646 = vmatpush1.msra.mxu0 %v546
        %647 = vmatprep.subr.mxu0 %v539
        %648 = vmatpush1.msra.mxu0 %v538
        %649 = vmatprep.subr.mxu0 %v531
        %650 = vmatpush1.msra.mxu0 %v530
        %651 = vmatprep.subr.mxu0 0.0
        %652 = vmatpush2.msra.mxu0 0.0
        %653 = vmatprep.subr.mxu0 0.0
        %654 = vmatpush2.msra.mxu0 0.0
        %655 = vmatprep.subr.mxu0 0.0
        %656 = vmatpush2.msra.mxu0 0.0
        %657 = vmatprep.subr.mxu0 0.0
        %658 = vmatpush2.msra.mxu0 0.0
        %659 = vmatprep.subr.mxu0 0.0
        %660 = vmatpush2.msra.mxu0 0.0
        %661 = vmatprep.subr.mxu0 0.0
        %662 = vmatpush2.msra.mxu0 0.0
        %663 = vmatprep.subr.mxu0 0.0
        %664 = vmatpush2.msra.mxu0 0.0
        %665 = vmatprep.subr.mxu0 0.0
        %666 = vmatpush2.msra.mxu0 0.0
        %667 = vmatprep.subr.mxu0 0.0
        %668 = vmatpush2.msra.mxu0 0.0
        %669 = vmatprep.subr.mxu0 0.0
        %670 = vmatpush2.msra.mxu0 0.0
        %671 = vmatprep.subr.mxu0 0.0
        %672 = vmatpush2.msra.mxu0 0.0
        %673 = vmatprep.subr.mxu0 0.0
        %674 = vmatpush2.msra.mxu0 0.0
        %675 = vmatprep.subr.mxu0 0.0
        %676 = vmatpush2.msra.mxu0 0.0
        %677 = vmatprep.subr.mxu0 0.0
        %678 = vmatpush2.msra.mxu0 0.0
        %679 = vmatprep.subr.mxu0 0.0
        %680 = vmatpush2.msra.mxu0 0.0
        %681 = vmatprep.subr.mxu0 0.0
        %682 = vmatpush2.msra.mxu0 0.0
        %683 = vmatprep.mubr.f32.mxu0 0.0
        %684 = vmatmul.mubr.f32.gmra.mxu0 %v608
        %v685 = vpop.f32.mrf.mxu0
        %v686 = vadd.f32 %v589, %v685
        %v687 = vpop.f32.mrf.mxu0
        %v688 = vadd.f32 %v589, %v687
        %689 = vmatprep.mubr.f32.mxu0 0.0
        %690 = vmatmul.mubr.f32.gmra.mxu0 %v611
        %v691 = vpop.f32.mrf.mxu0
        %v692 = vadd.f32 %v594, %v691
        %v693 = vpop.f32.mrf.mxu0
        %v694 = vadd.f32 %v594, %v693
        %695 = vmatprep.mubr.f32.mxu0 0.0
        %696 = vmatmul.mubr.f32.gmra.mxu0 %v614
        %v697 = vpop.f32.mrf.mxu0
        %v698 = vadd.f32 %v599, %v697
        %v699 = vpop.f32.mrf.mxu0
        %v700 = vadd.f32 %v599, %v699
        %701 = vmatprep.mubr.f32.mxu0 0.0
        %702 = vmatmul.mubr.f32.gmra.mxu0 %v617
        %v703 = vpop.f32.mrf.mxu0
        %v704 = vadd.f32 %v604, %v703
        %v705 = vpop.f32.mrf.mxu0
        %v706 = vadd.f32 %v604, %v705
        %707 = vdwg.mxu0
        %708 = vmatprep.subr.mxu0 0.0
        %709 = vmatpush1.msra.mxu0 0.0
        %710 = vmatprep.subr.mxu0 0.0
        %711 = vmatpush1.msra.mxu0 0.0
        %712 = vmatprep.subr.mxu0 0.0
        %713 = vmatpush1.msra.mxu0 0.0
        %714 = vmatprep.subr.mxu0 0.0
        %715 = vmatpush1.msra.mxu0 0.0
        %716 = vmatprep.subr.mxu0 0.0
        %717 = vmatpush1.msra.mxu0 0.0
        %718 = vmatprep.subr.mxu0 0.0
        %719 = vmatpush1.msra.mxu0 0.0
        %720 = vmatprep.subr.mxu0 0.0
        %721 = vmatpush1.msra.mxu0 0.0
        %722 = vmatprep.subr.mxu0 0.0
        %723 = vmatpush1.msra.mxu0 0.0
        %724 = vmatprep.subr.mxu0 0.0
        %725 = vmatpush1.msra.mxu0 0.0
        %726 = vmatprep.subr.mxu0 0.0
        %727 = vmatpush1.msra.mxu0 0.0
        %728 = vmatprep.subr.mxu0 %v573
        %729 = vmatpush1.msra.mxu0 %v572
        %730 = vmatprep.subr.mxu0 %v565
        %731 = vmatpush1.msra.mxu0 %v564
        %732 = vmatprep.subr.mxu0 %v557
        %733 = vmatpush1.msra.mxu0 %v556
        %734 = vmatprep.subr.mxu0 %v549
        %735 = vmatpush1.msra.mxu0 %v548
        %736 = vmatprep.subr.mxu0 %v541
        %737 = vmatpush1.msra.mxu0 %v540
        %738 = vmatprep.subr.mxu0 %v533
        %739 = vmatpush1.msra.mxu0 %v532
        %740 = vmatprep.subr.mxu0 0.0
        %741 = vmatpush2.msra.mxu0 0.0
        %742 = vmatprep.subr.mxu0 0.0
        %743 = vmatpush2.msra.mxu0 0.0
        %744 = vmatprep.subr.mxu0 0.0
        %745 = vmatpush2.msra.mxu0 0.0
        %746 = vmatprep.subr.mxu0 0.0
        %747 = vmatpush2.msra.mxu0 0.0
        %748 = vmatprep.subr.mxu0 0.0
        %749 = vmatpush2.msra.mxu0 0.0
        %750 = vmatprep.subr.mxu0 0.0
        %751 = vmatpush2.msra.mxu0 0.0
        %752 = vmatprep.subr.mxu0 0.0
        %753 = vmatpush2.msra.mxu0 0.0
        %754 = vmatprep.subr.mxu0 0.0
        %755 = vmatpush2.msra.mxu0 0.0
        %756 = vmatprep.subr.mxu0 0.0
        %757 = vmatpush2.msra.mxu0 0.0
        %758 = vmatprep.subr.mxu0 0.0
        %759 = vmatpush2.msra.mxu0 0.0
        %760 = vmatprep.subr.mxu0 0.0
        %761 = vmatpush2.msra.mxu0 0.0
        %762 = vmatprep.subr.mxu0 0.0
        %763 = vmatpush2.msra.mxu0 0.0
        %764 = vmatprep.subr.mxu0 0.0
        %765 = vmatpush2.msra.mxu0 0.0
        %766 = vmatprep.subr.mxu0 0.0
        %767 = vmatpush2.msra.mxu0 0.0
        %768 = vmatprep.subr.mxu0 0.0
        %769 = vmatpush2.msra.mxu0 0.0
        %770 = vmatprep.subr.mxu0 0.0
        %771 = vmatpush2.msra.mxu0 0.0
        %772 = vmatprep.mubr.f32.mxu0 0.0
        %773 = vmatmul.mubr.f32.gmra.mxu0 %v608
        %v774 = vpop.f32.mrf.mxu0
        %v775 = vadd.f32 %v589, %v774
        %v776 = vpop.f32.mrf.mxu0
        %v777 = vadd.f32 %v589, %v776
        %778 = vmatprep.mubr.f32.mxu0 0.0
        %779 = vmatmul.mubr.f32.gmra.mxu0 %v611
        %v780 = vpop.f32.mrf.mxu0
        %v781 = vadd.f32 %v594, %v780
        %v782 = vpop.f32.mrf.mxu0
        %v783 = vadd.f32 %v594, %v782
        %784 = vmatprep.mubr.f32.mxu0 0.0
        %785 = vmatmul.mubr.f32.gmra.mxu0 %v614
        %v786 = vpop.f32.mrf.mxu0
        %v787 = vadd.f32 %v599, %v786
        %v788 = vpop.f32.mrf.mxu0
        %v789 = vadd.f32 %v599, %v788
        %790 = vmatprep.mubr.f32.mxu0 0.0
        %791 = vmatmul.mubr.f32.gmra.mxu0 %v617
        %v792 = vpop.f32.mrf.mxu0
        %v793 = vadd.f32 %v604, %v792
        %v794 = vpop.f32.mrf.mxu0
        %v795 = vadd.f32 %v604, %v794
        %796 = vdwg.mxu0
        %797 = vmatprep.subr.mxu0 0.0
        %798 = vmatpush1.msra.mxu0 0.0
        %799 = vmatprep.subr.mxu0 0.0
        %800 = vmatpush1.msra.mxu0 0.0
        %801 = vmatprep.subr.mxu0 0.0
        %802 = vmatpush1.msra.mxu0 0.0
        %803 = vmatprep.subr.mxu0 0.0
        %804 = vmatpush1.msra.mxu0 0.0
        %805 = vmatprep.subr.mxu0 0.0
        %806 = vmatpush1.msra.mxu0 0.0
        %807 = vmatprep.subr.mxu0 0.0
        %808 = vmatpush1.msra.mxu0 0.0
        %809 = vmatprep.subr.mxu0 0.0
        %810 = vmatpush1.msra.mxu0 0.0
        %811 = vmatprep.subr.mxu0 0.0
        %812 = vmatpush1.msra.mxu0 0.0
        %813 = vmatprep.subr.mxu0 0.0
        %814 = vmatpush1.msra.mxu0 0.0
        %815 = vmatprep.subr.mxu0 0.0
        %816 = vmatpush1.msra.mxu0 0.0
        %817 = vmatprep.subr.mxu0 %v575
        %818 = vmatpush1.msra.mxu0 %v574
        %819 = vmatprep.subr.mxu0 %v567
        %820 = vmatpush1.msra.mxu0 %v566
        %821 = vmatprep.subr.mxu0 %v559
        %822 = vmatpush1.msra.mxu0 %v558
        %823 = vmatprep.subr.mxu0 %v551
        %824 = vmatpush1.msra.mxu0 %v550
        %825 = vmatprep.subr.mxu0 %v543
        %826 = vmatpush1.msra.mxu0 %v542
        %827 = vmatprep.subr.mxu0 %v535
        %828 = vmatpush1.msra.mxu0 %v534
        %829 = vmatprep.subr.mxu0 0.0
        %830 = vmatpush2.msra.mxu0 0.0
        %831 = vmatprep.subr.mxu0 0.0
        %832 = vmatpush2.msra.mxu0 0.0
        %833 = vmatprep.subr.mxu0 0.0
        %834 = vmatpush2.msra.mxu0 0.0
        %835 = vmatprep.subr.mxu0 0.0
        %836 = vmatpush2.msra.mxu0 0.0
        %837 = vmatprep.subr.mxu0 0.0
        %838 = vmatpush2.msra.mxu0 0.0
        %839 = vmatprep.subr.mxu0 0.0
        %840 = vmatpush2.msra.mxu0 0.0
        %841 = vmatprep.subr.mxu0 0.0
        %842 = vmatpush2.msra.mxu0 0.0
        %843 = vmatprep.subr.mxu0 0.0
        %844 = vmatpush2.msra.mxu0 0.0
        %845 = vmatprep.subr.mxu0 0.0
        %846 = vmatpush2.msra.mxu0 0.0
        %847 = vmatprep.subr.mxu0 0.0
        %848 = vmatpush2.msra.mxu0 0.0
        %849 = vmatprep.subr.mxu0 0.0
        %850 = vmatpush2.msra.mxu0 0.0
        %851 = vmatprep.subr.mxu0 0.0
        %852 = vmatpush2.msra.mxu0 0.0
        %853 = vmatprep.subr.mxu0 0.0
        %854 = vmatpush2.msra.mxu0 0.0
        %855 = vmatprep.subr.mxu0 0.0
        %856 = vmatpush2.msra.mxu0 0.0
        %857 = vmatprep.subr.mxu0 0.0
        %858 = vmatpush2.msra.mxu0 0.0
        %859 = vmatprep.subr.mxu0 0.0
        %860 = vmatpush2.msra.mxu0 0.0
        %861 = vmatprep.mubr.f32.mxu0 0.0
        %862 = vmatmul.mubr.f32.gmra.mxu0 %v608
        %v863 = vpop.f32.mrf.mxu0
        %v864 = vadd.f32 %v589, %v863
        %v865 = vpop.f32.mrf.mxu0
        %v866 = vadd.f32 %v589, %v865
        %867 = vmatprep.mubr.f32.mxu0 0.0
        %868 = vmatmul.mubr.f32.gmra.mxu0 %v611
        %v869 = vpop.f32.mrf.mxu0
        %v870 = vadd.f32 %v594, %v869
        %v871 = vpop.f32.mrf.mxu0
        %v872 = vadd.f32 %v594, %v871
        %873 = vmatprep.mubr.f32.mxu0 0.0
        %874 = vmatmul.mubr.f32.gmra.mxu0 %v614
        %v875 = vpop.f32.mrf.mxu0
        %v876 = vadd.f32 %v599, %v875
        %v877 = vpop.f32.mrf.mxu0
        %v878 = vadd.f32 %v599, %v877
        %879 = vmatprep.mubr.f32.mxu0 0.0
        %880 = vmatmul.mubr.f32.gmra.mxu0 %v617
        %v881 = vpop.f32.mrf.mxu0
        %v882 = vadd.f32 %v604, %v881
        %v883 = vpop.f32.mrf.mxu0
        %v884 = vadd.f32 %v604, %v883
        %885 = vdwg.mxu0
        %886 = vmatprep.subr.mxu0 0.0
        %887 = vmatpush1.msra.mxu0 0.0
        %888 = vmatprep.subr.mxu0 0.0
        %889 = vmatpush1.msra.mxu0 0.0
        %890 = vmatprep.subr.mxu0 0.0
        %891 = vmatpush1.msra.mxu0 0.0
        %892 = vmatprep.subr.mxu0 0.0
        %893 = vmatpush1.msra.mxu0 0.0
        %894 = vmatprep.subr.mxu0 0.0
        %895 = vmatpush1.msra.mxu0 0.0
        %896 = vmatprep.subr.mxu0 0.0
        %897 = vmatpush1.msra.mxu0 0.0
        %898 = vmatprep.subr.mxu0 0.0
        %899 = vmatpush1.msra.mxu0 0.0
        %900 = vmatprep.subr.mxu0 0.0
        %901 = vmatpush1.msra.mxu0 0.0
        %902 = vmatprep.subr.mxu0 0.0
        %903 = vmatpush1.msra.mxu0 0.0
        %904 = vmatprep.subr.mxu0 0.0
        %905 = vmatpush1.msra.mxu0 0.0
        %906 = vmatprep.subr.mxu0 %v577
        %907 = vmatpush1.msra.mxu0 %v576
        %908 = vmatprep.subr.mxu0 %v569
        %909 = vmatpush1.msra.mxu0 %v568
        %910 = vmatprep.subr.mxu0 %v561
        %911 = vmatpush1.msra.mxu0 %v560
        %912 = vmatprep.subr.mxu0 %v553
        %913 = vmatpush1.msra.mxu0 %v552
        %914 = vmatprep.subr.mxu0 %v545
        %915 = vmatpush1.msra.mxu0 %v544
        %916 = vmatprep.subr.mxu0 %v537
        %917 = vmatpush1.msra.mxu0 %v536
        %918 = vmatprep.subr.mxu0 0.0
        %919 = vmatpush2.msra.mxu0 0.0
        %920 = vmatprep.subr.mxu0 0.0
        %921 = vmatpush2.msra.mxu0 0.0
        %922 = vmatprep.subr.mxu0 0.0
        %923 = vmatpush2.msra.mxu0 0.0
        %924 = vmatprep.subr.mxu0 0.0
        %925 = vmatpush2.msra.mxu0 0.0
        %926 = vmatprep.subr.mxu0 0.0
        %927 = vmatpush2.msra.mxu0 0.0
        %928 = vmatprep.subr.mxu0 0.0
        %929 = vmatpush2.msra.mxu0 0.0
        %930 = vmatprep.subr.mxu0 0.0
        %931 = vmatpush2.msra.mxu0 0.0
        %932 = vmatprep.subr.mxu0 0.0
        %933 = vmatpush2.msra.mxu0 0.0
        %934 = vmatprep.subr.mxu0 0.0
        %935 = vmatpush2.msra.mxu0 0.0
        %936 = vmatprep.subr.mxu0 0.0
        %937 = vmatpush2.msra.mxu0 0.0
        %938 = vmatprep.subr.mxu0 0.0
        %939 = vmatpush2.msra.mxu0 0.0
        %940 = vmatprep.subr.mxu0 0.0
        %941 = vmatpush2.msra.mxu0 0.0
        %942 = vmatprep.subr.mxu0 0.0
        %943 = vmatpush2.msra.mxu0 0.0
        %944 = vmatprep.subr.mxu0 0.0
        %945 = vmatpush2.msra.mxu0 0.0
        %946 = vmatprep.subr.mxu0 0.0
        %947 = vmatpush2.msra.mxu0 0.0
        %948 = vmatprep.subr.mxu0 0.0
        %949 = vmatpush2.msra.mxu0 0.0
        %950 = vmatprep.mubr.f32.mxu0 0.0
        %951 = vmatmul.mubr.f32.gmra.mxu0 %v608
        %v952 = vpop.f32.mrf.mxu0
        %v953 = vadd.f32 %v589, %v952
        %v954 = vpop.f32.mrf.mxu0
        %v955 = vadd.f32 %v589, %v954
        %956 = vmatprep.mubr.f32.mxu0 0.0
        %957 = vmatmul.mubr.f32.gmra.mxu0 %v611
        %v958 = vpop.f32.mrf.mxu0
        %v959 = vadd.f32 %v594, %v958
        %v960 = vpop.f32.mrf.mxu0
        %v961 = vadd.f32 %v594, %v960
        %962 = vmatprep.mubr.f32.mxu0 0.0
        %963 = vmatmul.mubr.f32.gmra.mxu0 %v614
        %v964 = vpop.f32.mrf.mxu0
        %v965 = vadd.f32 %v599, %v964
        %v966 = vpop.f32.mrf.mxu0
        %v967 = vadd.f32 %v599, %v966
        %968 = vmatprep.mubr.f32.mxu0 0.0
        %969 = vmatmul.mubr.f32.gmra.mxu0 %v617
        %v970 = vpop.f32.mrf.mxu0
        %v971 = vadd.f32 %v604, %v970
        %v972 = vpop.f32.mrf.mxu0
        %v973 = vadd.f32 %v604, %v972
        %974 = vdwg.mxu0
        %v975 = vmax.f32 %v686, 0.0
        %v976 = vmax.f32 %v688, 0.0
        %v977 = vmax.f32 %v775, 0.0
        %v978 = vmax.f32 %v777, 0.0
        %v979 = vmax.f32 %v864, 0.0
        %v980 = vmax.f32 %v866, 0.0
        %v981 = vmax.f32 %v953, 0.0
        %v982 = vmax.f32 %v955, 0.0
        %v983 = vmax.f32 %v692, 0.0
        %v984 = vmax.f32 %v694, 0.0
        %v985 = vmax.f32 %v781, 0.0
        %v986 = vmax.f32 %v783, 0.0
        %v987 = vmax.f32 %v870, 0.0
        %v988 = vmax.f32 %v872, 0.0
        %v989 = vmax.f32 %v959, 0.0
        %v990 = vmax.f32 %v961, 0.0
        %v991 = vmax.f32 %v698, 0.0
        %v992 = vmax.f32 %v700, 0.0
        %v993 = vmax.f32 %v787, 0.0
        %v994 = vmax.f32 %v789, 0.0
        %v995 = vmax.f32 %v876, 0.0
        %v996 = vmax.f32 %v878, 0.0
        %v997 = vmax.f32 %v965, 0.0
        %v998 = vmax.f32 %v967, 0.0
        %v999 = vmax.f32 %v704, 0.0
        %v1000 = vmax.f32 %v706, 0.0
        %v1001 = vmax.f32 %v793, 0.0
        %v1002 = vmax.f32 %v795, 0.0
        %v1003 = vmax.f32 %v882, 0.0
        %v1004 = vmax.f32 %v884, 0.0
        %v1005 = vmax.f32 %v971, 0.0
        %v1006 = vmax.f32 %v973, 0.0
        %v1007 = vld [vmem:[%s4] sm:$0xff]
        %v1008 = vld [vmem:[%s4 + $0x8] sm:$0xff]
        %v1009 = vld [vmem:[%s4 + $0x10] sm:$0xff]
        %v1010 = vld [vmem:[%s4 + $0x18] sm:$0xff]
        %1011 = vset.pattern.permute.xlu0 1
        %1012 = vperm.xlu0 %1011, %v582
        %v1013 = vpop.permute.xlu0 %1012
        %1015 = vset.pattern.permute.xlu0 1
        %1016 = vperm.xlu0 %1015, %v583
        %v1017 = vpop.permute.xlu0 %1016
        %1019 = vset.pattern.permute.xlu0 1
        %1020 = vperm.xlu0 %1019, %v584
        %v1021 = vpop.permute.xlu0 %1020
        %1023 = vset.pattern.permute.xlu0 1
        %1024 = vperm.xlu0 %1023, %v585
        %v1025 = vpop.permute.xlu0 %1024
        %vm1027 = vcmask 261120
        %v1029 = vsel %vm1027, %v1007, 0
        %v1032 = vsel %vm1027, %v1008, 0
        %v1035 = vsel %vm1027, %v1009, 0
        %v1038 = vsel %vm1027, %v1010, 0
        %1040 = vmatprep.subr.mxu0 0.0
        %1041 = vmatpush1.msra.mxu0 0.0
        %1042 = vmatprep.subr.mxu0 0.0
        %1043 = vmatpush1.msra.mxu0 0.0
        %1044 = vmatprep.subr.mxu0 0.0
        %1045 = vmatpush1.msra.mxu0 0.0
        %1046 = vmatprep.subr.mxu0 0.0
        %1047 = vmatpush1.msra.mxu0 0.0
        %1048 = vmatprep.subr.mxu0 0.0
        %1049 = vmatpush1.msra.mxu0 0.0
        %1050 = vmatprep.subr.mxu0 0.0
        %1051 = vmatpush1.msra.mxu0 0.0
        %1052 = vmatprep.subr.mxu0 0.0
        %1053 = vmatpush1.msra.mxu0 0.0
        %1054 = vmatprep.subr.mxu0 0.0
        %1055 = vmatpush1.msra.mxu0 0.0
        %1056 = vmatprep.subr.mxu0 0.0
        %1057 = vmatpush1.msra.mxu0 0.0
        %1058 = vmatprep.subr.mxu0 0.0
        %1059 = vmatpush1.msra.mxu0 0.0
        %1060 = vmatprep.subr.mxu0 0.0
        %1061 = vmatpush1.msra.mxu0 0.0
        %1062 = vmatprep.subr.mxu0 0.0
        %1063 = vmatpush1.msra.mxu0 0.0
        %1064 = vmatprep.subr.mxu0 %v1000
        %1065 = vmatpush1.msra.mxu0 %v999
        %1066 = vmatprep.subr.mxu0 %v992
        %1067 = vmatpush1.msra.mxu0 %v991
        %1068 = vmatprep.subr.mxu0 %v984
        %1069 = vmatpush1.msra.mxu0 %v983
        %1070 = vmatprep.subr.mxu0 %v976
        %1071 = vmatpush1.msra.mxu0 %v975
        %1072 = vmatprep.subr.mxu0 0.0
        %1073 = vmatpush2.msra.mxu0 0.0
        %1074 = vmatprep.subr.mxu0 0.0
        %1075 = vmatpush2.msra.mxu0 0.0
        %1076 = vmatprep.subr.mxu0 0.0
        %1077 = vmatpush2.msra.mxu0 0.0
        %1078 = vmatprep.subr.mxu0 0.0
        %1079 = vmatpush2.msra.mxu0 0.0
        %1080 = vmatprep.subr.mxu0 0.0
        %1081 = vmatpush2.msra.mxu0 0.0
        %1082 = vmatprep.subr.mxu0 0.0
        %1083 = vmatpush2.msra.mxu0 0.0
        %1084 = vmatprep.subr.mxu0 0.0
        %1085 = vmatpush2.msra.mxu0 0.0
        %1086 = vmatprep.subr.mxu0 0.0
        %1087 = vmatpush2.msra.mxu0 0.0
        %1088 = vmatprep.subr.mxu0 0.0
        %1089 = vmatpush2.msra.mxu0 0.0
        %1090 = vmatprep.subr.mxu0 0.0
        %1091 = vmatpush2.msra.mxu0 0.0
        %1092 = vmatprep.subr.mxu0 0.0
        %1093 = vmatpush2.msra.mxu0 0.0
        %1094 = vmatprep.subr.mxu0 0.0
        %1095 = vmatpush2.msra.mxu0 0.0
        %1096 = vmatprep.subr.mxu0 0.0
        %1097 = vmatpush2.msra.mxu0 0.0
        %1098 = vmatprep.subr.mxu0 0.0
        %1099 = vmatpush2.msra.mxu0 0.0
        %1100 = vmatprep.subr.mxu0 0.0
        %1101 = vmatpush2.msra.mxu0 0.0
        %1102 = vmatprep.subr.mxu0 0.0
        %1103 = vmatpush2.msra.mxu0 0.0
        %1104 = vmatprep.mubr.f32.mxu0 0.0
        %1105 = vmatmul.mubr.f32.gmra.mxu0 %v1029
        %v1106 = vpop.f32.mrf.mxu0
        %v1107 = vadd.f32 %v1013, %v1106
        %v1108 = vpop.f32.mrf.mxu0
        %v1109 = vadd.f32 %v1013, %v1108
        %1110 = vmatprep.mubr.f32.mxu0 0.0
        %1111 = vmatmul.mubr.f32.gmra.mxu0 %v1032
        %v1112 = vpop.f32.mrf.mxu0
        %v1113 = vadd.f32 %v1017, %v1112
        %v1114 = vpop.f32.mrf.mxu0
        %v1115 = vadd.f32 %v1017, %v1114
        %1116 = vmatprep.mubr.f32.mxu0 0.0
        %1117 = vmatmul.mubr.f32.gmra.mxu0 %v1035
        %v1118 = vpop.f32.mrf.mxu0
        %v1119 = vadd.f32 %v1021, %v1118
        %v1120 = vpop.f32.mrf.mxu0
        %v1121 = vadd.f32 %v1021, %v1120
        %1122 = vmatprep.mubr.f32.mxu0 0.0
        %1123 = vmatmul.mubr.f32.gmra.mxu0 %v1038
        %v1124 = vpop.f32.mrf.mxu0
        %v1125 = vadd.f32 %v1025, %v1124
        %v1126 = vpop.f32.mrf.mxu0
        %v1127 = vadd.f32 %v1025, %v1126
        %1128 = vdwg.mxu0
        %1129 = vmatprep.subr.mxu0 0.0
        %1130 = vmatpush1.msra.mxu0 0.0
        %1131 = vmatprep.subr.mxu0 0.0
        %1132 = vmatpush1.msra.mxu0 0.0
        %1133 = vmatprep.subr.mxu0 0.0
        %1134 = vmatpush1.msra.mxu0 0.0
        %1135 = vmatprep.subr.mxu0 0.0
        %1136 = vmatpush1.msra.mxu0 0.0
        %1137 = vmatprep.subr.mxu0 0.0
        %1138 = vmatpush1.msra.mxu0 0.0
        %1139 = vmatprep.subr.mxu0 0.0
        %1140 = vmatpush1.msra.mxu0 0.0
        %1141 = vmatprep.subr.mxu0 0.0
        %1142 = vmatpush1.msra.mxu0 0.0
        %1143 = vmatprep.subr.mxu0 0.0
        %1144 = vmatpush1.msra.mxu0 0.0
        %1145 = vmatprep.subr.mxu0 0.0
        %1146 = vmatpush1.msra.mxu0 0.0
        %1147 = vmatprep.subr.mxu0 0.0
        %1148 = vmatpush1.msra.mxu0 0.0
        %1149 = vmatprep.subr.mxu0 0.0
        %1150 = vmatpush1.msra.mxu0 0.0
        %1151 = vmatprep.subr.mxu0 0.0
        %1152 = vmatpush1.msra.mxu0 0.0
        %1153 = vmatprep.subr.mxu0 %v1002
        %1154 = vmatpush1.msra.mxu0 %v1001
        %1155 = vmatprep.subr.mxu0 %v994
        %1156 = vmatpush1.msra.mxu0 %v993
        %1157 = vmatprep.subr.mxu0 %v986
        %1158 = vmatpush1.msra.mxu0 %v985
        %1159 = vmatprep.subr.mxu0 %v978
        %1160 = vmatpush1.msra.mxu0 %v977
        %1161 = vmatprep.subr.mxu0 0.0
        %1162 = vmatpush2.msra.mxu0 0.0
        %1163 = vmatprep.subr.mxu0 0.0
        %1164 = vmatpush2.msra.mxu0 0.0
        %1165 = vmatprep.subr.mxu0 0.0
        %1166 = vmatpush2.msra.mxu0 0.0
        %1167 = vmatprep.subr.mxu0 0.0
        %1168 = vmatpush2.msra.mxu0 0.0
        %1169 = vmatprep.subr.mxu0 0.0
        %1170 = vmatpush2.msra.mxu0 0.0
        %1171 = vmatprep.subr.mxu0 0.0
        %1172 = vmatpush2.msra.mxu0 0.0
        %1173 = vmatprep.subr.mxu0 0.0
        %1174 = vmatpush2.msra.mxu0 0.0
        %1175 = vmatprep.subr.mxu0 0.0
        %1176 = vmatpush2.msra.mxu0 0.0
        %1177 = vmatprep.subr.mxu0 0.0
        %1178 = vmatpush2.msra.mxu0 0.0
        %1179 = vmatprep.subr.mxu0 0.0
        %1180 = vmatpush2.msra.mxu0 0.0
        %1181 = vmatprep.subr.mxu0 0.0
        %1182 = vmatpush2.msra.mxu0 0.0
        %1183 = vmatprep.subr.mxu0 0.0
        %1184 = vmatpush2.msra.mxu0 0.0
        %1185 = vmatprep.subr.mxu0 0.0
        %1186 = vmatpush2.msra.mxu0 0.0
        %1187 = vmatprep.subr.mxu0 0.0
        %1188 = vmatpush2.msra.mxu0 0.0
        %1189 = vmatprep.subr.mxu0 0.0
        %1190 = vmatpush2.msra.mxu0 0.0
        %1191 = vmatprep.subr.mxu0 0.0
        %1192 = vmatpush2.msra.mxu0 0.0
        %1193 = vmatprep.mubr.f32.mxu0 0.0
        %1194 = vmatmul.mubr.f32.gmra.mxu0 %v1029
        %v1195 = vpop.f32.mrf.mxu0
        %v1196 = vadd.f32 %v1013, %v1195
        %v1197 = vpop.f32.mrf.mxu0
        %v1198 = vadd.f32 %v1013, %v1197
        %1199 = vmatprep.mubr.f32.mxu0 0.0
        %1200 = vmatmul.mubr.f32.gmra.mxu0 %v1032
        %v1201 = vpop.f32.mrf.mxu0
        %v1202 = vadd.f32 %v1017, %v1201
        %v1203 = vpop.f32.mrf.mxu0
        %v1204 = vadd.f32 %v1017, %v1203
        %1205 = vmatprep.mubr.f32.mxu0 0.0
        %1206 = vmatmul.mubr.f32.gmra.mxu0 %v1035
        %v1207 = vpop.f32.mrf.mxu0
        %v1208 = vadd.f32 %v1021, %v1207
        %v1209 = vpop.f32.mrf.mxu0
        %v1210 = vadd.f32 %v1021, %v1209
        %1211 = vmatprep.mubr.f32.mxu0 0.0
        %1212 = vmatmul.mubr.f32.gmra.mxu0 %v1038
        %v1213 = vpop.f32.mrf.mxu0
        %v1214 = vadd.f32 %v1025, %v1213
        %v1215 = vpop.f32.mrf.mxu0
        %v1216 = vadd.f32 %v1025, %v1215
        %1217 = vdwg.mxu0
        %1218 = vmatprep.subr.mxu0 0.0
        %1219 = vmatpush1.msra.mxu0 0.0
        %1220 = vmatprep.subr.mxu0 0.0
        %1221 = vmatpush1.msra.mxu0 0.0
        %1222 = vmatprep.subr.mxu0 0.0
        %1223 = vmatpush1.msra.mxu0 0.0
        %1224 = vmatprep.subr.mxu0 0.0
        %1225 = vmatpush1.msra.mxu0 0.0
        %1226 = vmatprep.subr.mxu0 0.0
        %1227 = vmatpush1.msra.mxu0 0.0
        %1228 = vmatprep.subr.mxu0 0.0
        %1229 = vmatpush1.msra.mxu0 0.0
        %1230 = vmatprep.subr.mxu0 0.0
        %1231 = vmatpush1.msra.mxu0 0.0
        %1232 = vmatprep.subr.mxu0 0.0
        %1233 = vmatpush1.msra.mxu0 0.0
        %1234 = vmatprep.subr.mxu0 0.0
        %1235 = vmatpush1.msra.mxu0 0.0
        %1236 = vmatprep.subr.mxu0 0.0
        %1237 = vmatpush1.msra.mxu0 0.0
        %1238 = vmatprep.subr.mxu0 0.0
        %1239 = vmatpush1.msra.mxu0 0.0
        %1240 = vmatprep.subr.mxu0 0.0
        %1241 = vmatpush1.msra.mxu0 0.0
        %1242 = vmatprep.subr.mxu0 %v1004
        %1243 = vmatpush1.msra.mxu0 %v1003
        %1244 = vmatprep.subr.mxu0 %v996
        %1245 = vmatpush1.msra.mxu0 %v995
        %1246 = vmatprep.subr.mxu0 %v988
        %1247 = vmatpush1.msra.mxu0 %v987
        %1248 = vmatprep.subr.mxu0 %v980
        %1249 = vmatpush1.msra.mxu0 %v979
        %1250 = vmatprep.subr.mxu0 0.0
        %1251 = vmatpush2.msra.mxu0 0.0
        %1252 = vmatprep.subr.mxu0 0.0
        %1253 = vmatpush2.msra.mxu0 0.0
        %1254 = vmatprep.subr.mxu0 0.0
        %1255 = vmatpush2.msra.mxu0 0.0
        %1256 = vmatprep.subr.mxu0 0.0
        %1257 = vmatpush2.msra.mxu0 0.0
        %1258 = vmatprep.subr.mxu0 0.0
        %1259 = vmatpush2.msra.mxu0 0.0
        %1260 = vmatprep.subr.mxu0 0.0
        %1261 = vmatpush2.msra.mxu0 0.0
        %1262 = vmatprep.subr.mxu0 0.0
        %1263 = vmatpush2.msra.mxu0 0.0
        %1264 = vmatprep.subr.mxu0 0.0
        %1265 = vmatpush2.msra.mxu0 0.0
        %1266 = vmatprep.subr.mxu0 0.0
        %1267 = vmatpush2.msra.mxu0 0.0
        %1268 = vmatprep.subr.mxu0 0.0
        %1269 = vmatpush2.msra.mxu0 0.0
        %1270 = vmatprep.subr.mxu0 0.0
        %1271 = vmatpush2.msra.mxu0 0.0
        %1272 = vmatprep.subr.mxu0 0.0
        %1273 = vmatpush2.msra.mxu0 0.0
        %1274 = vmatprep.subr.mxu0 0.0
        %1275 = vmatpush2.msra.mxu0 0.0
        %1276 = vmatprep.subr.mxu0 0.0
        %1277 = vmatpush2.msra.mxu0 0.0
        %1278 = vmatprep.subr.mxu0 0.0
        %1279 = vmatpush2.msra.mxu0 0.0
        %1280 = vmatprep.subr.mxu0 0.0
        %1281 = vmatpush2.msra.mxu0 0.0
        %1282 = vmatprep.mubr.f32.mxu0 0.0
        %1283 = vmatmul.mubr.f32.gmra.mxu0 %v1029
        %v1284 = vpop.f32.mrf.mxu0
        %v1285 = vadd.f32 %v1013, %v1284
        %v1286 = vpop.f32.mrf.mxu0
        %v1287 = vadd.f32 %v1013, %v1286
        %1288 = vmatprep.mubr.f32.mxu0 0.0
        %1289 = vmatmul.mubr.f32.gmra.mxu0 %v1032
        %v1290 = vpop.f32.mrf.mxu0
        %v1291 = vadd.f32 %v1017, %v1290
        %v1292 = vpop.f32.mrf.mxu0
        %v1293 = vadd.f32 %v1017, %v1292
        %1294 = vmatprep.mubr.f32.mxu0 0.0
        %1295 = vmatmul.mubr.f32.gmra.mxu0 %v1035
        %v1296 = vpop.f32.mrf.mxu0
        %v1297 = vadd.f32 %v1021, %v1296
        %v1298 = vpop.f32.mrf.mxu0
        %v1299 = vadd.f32 %v1021, %v1298
        %1300 = vmatprep.mubr.f32.mxu0 0.0
        %1301 = vmatmul.mubr.f32.gmra.mxu0 %v1038
        %v1302 = vpop.f32.mrf.mxu0
        %v1303 = vadd.f32 %v1025, %v1302
        %v1304 = vpop.f32.mrf.mxu0
        %v1305 = vadd.f32 %v1025, %v1304
        %1306 = vdwg.mxu0
        %1307 = vmatprep.subr.mxu0 0.0
        %1308 = vmatpush1.msra.mxu0 0.0
        %1309 = vmatprep.subr.mxu0 0.0
        %1310 = vmatpush1.msra.mxu0 0.0
        %1311 = vmatprep.subr.mxu0 0.0
        %1312 = vmatpush1.msra.mxu0 0.0
        %1313 = vmatprep.subr.mxu0 0.0
        %1314 = vmatpush1.msra.mxu0 0.0
        %1315 = vmatprep.subr.mxu0 0.0
        %1316 = vmatpush1.msra.mxu0 0.0
        %1317 = vmatprep.subr.mxu0 0.0
        %1318 = vmatpush1.msra.mxu0 0.0
        %1319 = vmatprep.subr.mxu0 0.0
        %1320 = vmatpush1.msra.mxu0 0.0
        %1321 = vmatprep.subr.mxu0 0.0
        %1322 = vmatpush1.msra.mxu0 0.0
        %1323 = vmatprep.subr.mxu0 0.0
        %1324 = vmatpush1.msra.mxu0 0.0
        %1325 = vmatprep.subr.mxu0 0.0
        %1326 = vmatpush1.msra.mxu0 0.0
        %1327 = vmatprep.subr.mxu0 0.0
        %1328 = vmatpush1.msra.mxu0 0.0
        %1329 = vmatprep.subr.mxu0 0.0
        %1330 = vmatpush1.msra.mxu0 0.0
        %1331 = vmatprep.subr.mxu0 %v1006
        %1332 = vmatpush1.msra.mxu0 %v1005
        %1333 = vmatprep.subr.mxu0 %v998
        %1334 = vmatpush1.msra.mxu0 %v997
        %1335 = vmatprep.subr.mxu0 %v990
        %1336 = vmatpush1.msra.mxu0 %v989
        %1337 = vmatprep.subr.mxu0 %v982
        %1338 = vmatpush1.msra.mxu0 %v981
        %1339 = vmatprep.subr.mxu0 0.0
        %1340 = vmatpush2.msra.mxu0 0.0
        %1341 = vmatprep.subr.mxu0 0.0
        %1342 = vmatpush2.msra.mxu0 0.0
        %1343 = vmatprep.subr.mxu0 0.0
        %1344 = vmatpush2.msra.mxu0 0.0
        %1345 = vmatprep.subr.mxu0 0.0
        %1346 = vmatpush2.msra.mxu0 0.0
        %1347 = vmatprep.subr.mxu0 0.0
        %1348 = vmatpush2.msra.mxu0 0.0
        %1349 = vmatprep.subr.mxu0 0.0
        %1350 = vmatpush2.msra.mxu0 0.0
        %1351 = vmatprep.subr.mxu0 0.0
        %1352 = vmatpush2.msra.mxu0 0.0
        %1353 = vmatprep.subr.mxu0 0.0
        %1354 = vmatpush2.msra.mxu0 0.0
        %1355 = vmatprep.subr.mxu0 0.0
        %1356 = vmatpush2.msra.mxu0 0.0
        %1357 = vmatprep.subr.mxu0 0.0
        %1358 = vmatpush2.msra.mxu0 0.0
        %1359 = vmatprep.subr.mxu0 0.0
        %1360 = vmatpush2.msra.mxu0 0.0
        %1361 = vmatprep.subr.mxu0 0.0
        %1362 = vmatpush2.msra.mxu0 0.0
        %1363 = vmatprep.subr.mxu0 0.0
        %1364 = vmatpush2.msra.mxu0 0.0
        %1365 = vmatprep.subr.mxu0 0.0
        %1366 = vmatpush2.msra.mxu0 0.0
        %1367 = vmatprep.subr.mxu0 0.0
        %1368 = vmatpush2.msra.mxu0 0.0
        %1369 = vmatprep.subr.mxu0 0.0
        %1370 = vmatpush2.msra.mxu0 0.0
        %1371 = vmatprep.mubr.f32.mxu0 0.0
        %1372 = vmatmul.mubr.f32.gmra.mxu0 %v1029
        %v1373 = vpop.f32.mrf.mxu0
        %v1374 = vadd.f32 %v1013, %v1373
        %v1375 = vpop.f32.mrf.mxu0
        %v1376 = vadd.f32 %v1013, %v1375
        %1377 = vmatprep.mubr.f32.mxu0 0.0
        %1378 = vmatmul.mubr.f32.gmra.mxu0 %v1032
        %v1379 = vpop.f32.mrf.mxu0
        %v1380 = vadd.f32 %v1017, %v1379
        %v1381 = vpop.f32.mrf.mxu0
        %v1382 = vadd.f32 %v1017, %v1381
        %1383 = vmatprep.mubr.f32.mxu0 0.0
        %1384 = vmatmul.mubr.f32.gmra.mxu0 %v1035
        %v1385 = vpop.f32.mrf.mxu0
        %v1386 = vadd.f32 %v1021, %v1385
        %v1387 = vpop.f32.mrf.mxu0
        %v1388 = vadd.f32 %v1021, %v1387
        %1389 = vmatprep.mubr.f32.mxu0 0.0
        %1390 = vmatmul.mubr.f32.gmra.mxu0 %v1038
        %v1391 = vpop.f32.mrf.mxu0
        %v1392 = vadd.f32 %v1025, %v1391
        %v1393 = vpop.f32.mrf.mxu0
        %v1394 = vadd.f32 %v1025, %v1393
        %1395 = vdwg.mxu0
        %v1396 = vld [vmem:[#allocation7] sm:$0xff]
        %v1397 = vld [vmem:[#allocation7 + $0x8] sm:$0xff]
        %v1398 = vld [vmem:[%s6] sm:$0xff]
        %v1399 = vld [vmem:[%s6 + $0x8] sm:$0xff]
        %1401 = vset.pattern.permute.xlu0 0
        %1402 = vperm.xlu0 %1401, %v1398
        %v1403 = vpop.permute.xlu0 %1402
        %1406 = vset.pattern.permute.xlu0 0
        %1407 = vperm.xlu0 %1406, %v1399
        %v1408 = vpop.permute.xlu0 %1407
        %v1411 = vsel %vm606, %v1396, 0
        %v1414 = vsel %vm606, %v1397, 0
        %1416 = vmatprep.subr.mxu0 0.0
        %1417 = vmatpush1.msra.mxu0 0.0
        %1418 = vmatprep.subr.mxu0 0.0
        %1419 = vmatpush1.msra.mxu0 0.0
        %1420 = vmatprep.subr.mxu0 0.0
        %1421 = vmatpush1.msra.mxu0 0.0
        %1422 = vmatprep.subr.mxu0 0.0
        %1423 = vmatpush1.msra.mxu0 0.0
        %1424 = vmatprep.subr.mxu0 0.0
        %1425 = vmatpush1.msra.mxu0 0.0
        %1426 = vmatprep.subr.mxu0 0.0
        %1427 = vmatpush1.msra.mxu0 0.0
        %1428 = vmatprep.subr.mxu0 0.0
        %1429 = vmatpush1.msra.mxu0 0.0
        %1430 = vmatprep.subr.mxu0 0.0
        %1431 = vmatpush1.msra.mxu0 0.0
        %1432 = vmatprep.subr.mxu0 0.0
        %1433 = vmatpush1.msra.mxu0 0.0
        %1434 = vmatprep.subr.mxu0 0.0
        %1435 = vmatpush1.msra.mxu0 0.0
        %1436 = vmatprep.subr.mxu0 %v1127
        %1437 = vmatpush1.msra.mxu0 %v1125
        %1438 = vmatprep.subr.mxu0 %v1121
        %1439 = vmatpush1.msra.mxu0 %v1119
        %1440 = vmatprep.subr.mxu0 %v1115
        %1441 = vmatpush1.msra.mxu0 %v1113
        %1442 = vmatprep.subr.mxu0 %v1109
        %1443 = vmatpush1.msra.mxu0 %v1107
        %1444 = vmatprep.subr.mxu0 %v539
        %1445 = vmatpush1.msra.mxu0 %v538
        %1446 = vmatprep.subr.mxu0 %v531
        %1447 = vmatpush1.msra.mxu0 %v530
        %1448 = vmatprep.subr.mxu0 0.0
        %1449 = vmatpush2.msra.mxu0 0.0
        %1450 = vmatprep.subr.mxu0 0.0
        %1451 = vmatpush2.msra.mxu0 0.0
        %1452 = vmatprep.subr.mxu0 0.0
        %1453 = vmatpush2.msra.mxu0 0.0
        %1454 = vmatprep.subr.mxu0 0.0
        %1455 = vmatpush2.msra.mxu0 0.0
        %1456 = vmatprep.subr.mxu0 0.0
        %1457 = vmatpush2.msra.mxu0 0.0
        %1458 = vmatprep.subr.mxu0 0.0
        %1459 = vmatpush2.msra.mxu0 0.0
        %1460 = vmatprep.subr.mxu0 0.0
        %1461 = vmatpush2.msra.mxu0 0.0
        %1462 = vmatprep.subr.mxu0 0.0
        %1463 = vmatpush2.msra.mxu0 0.0
        %1464 = vmatprep.subr.mxu0 0.0
        %1465 = vmatpush2.msra.mxu0 0.0
        %1466 = vmatprep.subr.mxu0 0.0
        %1467 = vmatpush2.msra.mxu0 0.0
        %1468 = vmatprep.subr.mxu0 0.0
        %1469 = vmatpush2.msra.mxu0 0.0
        %1470 = vmatprep.subr.mxu0 0.0
        %1471 = vmatpush2.msra.mxu0 0.0
        %1472 = vmatprep.subr.mxu0 0.0
        %1473 = vmatpush2.msra.mxu0 0.0
        %1474 = vmatprep.subr.mxu0 0.0
        %1475 = vmatpush2.msra.mxu0 0.0
        %1476 = vmatprep.subr.mxu0 0.0
        %1477 = vmatpush2.msra.mxu0 0.0
        %1478 = vmatprep.subr.mxu0 0.0
        %1479 = vmatpush2.msra.mxu0 0.0
        %1480 = vmatprep.mubr.f32.mxu0 0.0
        %1481 = vmatmul.mubr.f32.gmra.mxu0 %v1411
        %v1482 = vpop.f32.mrf.mxu0
        %v1483 = vadd.f32 %v1403, %v1482
        %v1484 = vpop.f32.mrf.mxu0
        %v1485 = vadd.f32 %v1403, %v1484
        %1486 = vmatprep.mubr.f32.mxu0 0.0
        %1487 = vmatmul.mubr.f32.gmra.mxu0 %v1414
        %v1488 = vpop.f32.mrf.mxu0
        %v1489 = vadd.f32 %v1408, %v1488
        %v1490 = vpop.f32.mrf.mxu0
        %v1491 = vadd.f32 %v1408, %v1490
        %1492 = vdwg.mxu0
        %1493 = vmatprep.subr.mxu0 0.0
        %1494 = vmatpush1.msra.mxu0 0.0
        %1495 = vmatprep.subr.mxu0 0.0
        %1496 = vmatpush1.msra.mxu0 0.0
        %1497 = vmatprep.subr.mxu0 0.0
        %1498 = vmatpush1.msra.mxu0 0.0
        %1499 = vmatprep.subr.mxu0 0.0
        %1500 = vmatpush1.msra.mxu0 0.0
        %1501 = vmatprep.subr.mxu0 0.0
        %1502 = vmatpush1.msra.mxu0 0.0
        %1503 = vmatprep.subr.mxu0 0.0
        %1504 = vmatpush1.msra.mxu0 0.0
        %1505 = vmatprep.subr.mxu0 0.0
        %1506 = vmatpush1.msra.mxu0 0.0
        %1507 = vmatprep.subr.mxu0 0.0
        %1508 = vmatpush1.msra.mxu0 0.0
        %1509 = vmatprep.subr.mxu0 0.0
        %1510 = vmatpush1.msra.mxu0 0.0
        %1511 = vmatprep.subr.mxu0 0.0
        %1512 = vmatpush1.msra.mxu0 0.0
        %1513 = vmatprep.subr.mxu0 %v1216
        %1514 = vmatpush1.msra.mxu0 %v1214
        %1515 = vmatprep.subr.mxu0 %v1210
        %1516 = vmatpush1.msra.mxu0 %v1208
        %1517 = vmatprep.subr.mxu0 %v1204
        %1518 = vmatpush1.msra.mxu0 %v1202
        %1519 = vmatprep.subr.mxu0 %v1198
        %1520 = vmatpush1.msra.mxu0 %v1196
        %1521 = vmatprep.subr.mxu0 %v541
        %1522 = vmatpush1.msra.mxu0 %v540
        %1523 = vmatprep.subr.mxu0 %v533
        %1524 = vmatpush1.msra.mxu0 %v532
        %1525 = vmatprep.subr.mxu0 0.0
        %1526 = vmatpush2.msra.mxu0 0.0
        %1527 = vmatprep.subr.mxu0 0.0
        %1528 = vmatpush2.msra.mxu0 0.0
        %1529 = vmatprep.subr.mxu0 0.0
        %1530 = vmatpush2.msra.mxu0 0.0
        %1531 = vmatprep.subr.mxu0 0.0
        %1532 = vmatpush2.msra.mxu0 0.0
        %1533 = vmatprep.subr.mxu0 0.0
        %1534 = vmatpush2.msra.mxu0 0.0
        %1535 = vmatprep.subr.mxu0 0.0
        %1536 = vmatpush2.msra.mxu0 0.0
        %1537 = vmatprep.subr.mxu0 0.0
        %1538 = vmatpush2.msra.mxu0 0.0
        %1539 = vmatprep.subr.mxu0 0.0
        %1540 = vmatpush2.msra.mxu0 0.0
        %1541 = vmatprep.subr.mxu0 0.0
        %1542 = vmatpush2.msra.mxu0 0.0
        %1543 = vmatprep.subr.mxu0 0.0
        %1544 = vmatpush2.msra.mxu0 0.0
        %1545 = vmatprep.subr.mxu0 0.0
        %1546 = vmatpush2.msra.mxu0 0.0
        %1547 = vmatprep.subr.mxu0 0.0
        %1548 = vmatpush2.msra.mxu0 0.0
        %1549 = vmatprep.subr.mxu0 0.0
        %1550 = vmatpush2.msra.mxu0 0.0
        %1551 = vmatprep.subr.mxu0 0.0
        %1552 = vmatpush2.msra.mxu0 0.0
        %1553 = vmatprep.subr.mxu0 0.0
        %1554 = vmatpush2.msra.mxu0 0.0
        %1555 = vmatprep.subr.mxu0 0.0
        %1556 = vmatpush2.msra.mxu0 0.0
        %1557 = vmatprep.mubr.f32.mxu0 0.0
        %1558 = vmatmul.mubr.f32.gmra.mxu0 %v1411
        %v1559 = vpop.f32.mrf.mxu0
        %v1560 = vadd.f32 %v1403, %v1559
        %v1561 = vpop.f32.mrf.mxu0
        %v1562 = vadd.f32 %v1403, %v1561
        %1563 = vmatprep.mubr.f32.mxu0 0.0
        %1564 = vmatmul.mubr.f32.gmra.mxu0 %v1414
        %v1565 = vpop.f32.mrf.mxu0
        %v1566 = vadd.f32 %v1408, %v1565
        %v1567 = vpop.f32.mrf.mxu0
        %v1568 = vadd.f32 %v1408, %v1567
        %1569 = vdwg.mxu0
        %1570 = vmatprep.subr.mxu0 0.0
        %1571 = vmatpush1.msra.mxu0 0.0
        %1572 = vmatprep.subr.mxu0 0.0
        %1573 = vmatpush1.msra.mxu0 0.0
        %1574 = vmatprep.subr.mxu0 0.0
        %1575 = vmatpush1.msra.mxu0 0.0
        %1576 = vmatprep.subr.mxu0 0.0
        %1577 = vmatpush1.msra.mxu0 0.0
        %1578 = vmatprep.subr.mxu0 0.0
        %1579 = vmatpush1.msra.mxu0 0.0
        %1580 = vmatprep.subr.mxu0 0.0
        %1581 = vmatpush1.msra.mxu0 0.0
        %1582 = vmatprep.subr.mxu0 0.0
        %1583 = vmatpush1.msra.mxu0 0.0
        %1584 = vmatprep.subr.mxu0 0.0
        %1585 = vmatpush1.msra.mxu0 0.0
        %1586 = vmatprep.subr.mxu0 0.0
        %1587 = vmatpush1.msra.mxu0 0.0
        %1588 = vmatprep.subr.mxu0 0.0
        %1589 = vmatpush1.msra.mxu0 0.0
        %1590 = vmatprep.subr.mxu0 %v1305
        %1591 = vmatpush1.msra.mxu0 %v1303
        %1592 = vmatprep.subr.mxu0 %v1299
        %1593 = vmatpush1.msra.mxu0 %v1297
        %1594 = vmatprep.subr.mxu0 %v1293
        %1595 = vmatpush1.msra.mxu0 %v1291
        %1596 = vmatprep.subr.mxu0 %v1287
        %1597 = vmatpush1.msra.mxu0 %v1285
        %1598 = vmatprep.subr.mxu0 %v543
        %1599 = vmatpush1.msra.mxu0 %v542
        %1600 = vmatprep.subr.mxu0 %v535
        %1601 = vmatpush1.msra.mxu0 %v534
        %1602 = vmatprep.subr.mxu0 0.0
        %1603 = vmatpush2.msra.mxu0 0.0
        %1604 = vmatprep.subr.mxu0 0.0
        %1605 = vmatpush2.msra.mxu0 0.0
        %1606 = vmatprep.subr.mxu0 0.0
        %1607 = vmatpush2.msra.mxu0 0.0
        %1608 = vmatprep.subr.mxu0 0.0
        %1609 = vmatpush2.msra.mxu0 0.0
        %1610 = vmatprep.subr.mxu0 0.0
        %1611 = vmatpush2.msra.mxu0 0.0
        %1612 = vmatprep.subr.mxu0 0.0
        %1613 = vmatpush2.msra.mxu0 0.0
        %1614 = vmatprep.subr.mxu0 0.0
        %1615 = vmatpush2.msra.mxu0 0.0
        %1616 = vmatprep.subr.mxu0 0.0
        %1617 = vmatpush2.msra.mxu0 0.0
        %1618 = vmatprep.subr.mxu0 0.0
        %1619 = vmatpush2.msra.mxu0 0.0
        %1620 = vmatprep.subr.mxu0 0.0
        %1621 = vmatpush2.msra.mxu0 0.0
        %1622 = vmatprep.subr.mxu0 0.0
        %1623 = vmatpush2.msra.mxu0 0.0
        %1624 = vmatprep.subr.mxu0 0.0
        %1625 = vmatpush2.msra.mxu0 0.0
        %1626 = vmatprep.subr.mxu0 0.0
        %1627 = vmatpush2.msra.mxu0 0.0
        %1628 = vmatprep.subr.mxu0 0.0
        %1629 = vmatpush2.msra.mxu0 0.0
        %1630 = vmatprep.subr.mxu0 0.0
        %1631 = vmatpush2.msra.mxu0 0.0
        %1632 = vmatprep.subr.mxu0 0.0
        %1633 = vmatpush2.msra.mxu0 0.0
        %1634 = vmatprep.mubr.f32.mxu0 0.0
        %1635 = vmatmul.mubr.f32.gmra.mxu0 %v1411
        %v1636 = vpop.f32.mrf.mxu0
        %v1637 = vadd.f32 %v1403, %v1636
        %v1638 = vpop.f32.mrf.mxu0
        %v1639 = vadd.f32 %v1403, %v1638
        %1640 = vmatprep.mubr.f32.mxu0 0.0
        %1641 = vmatmul.mubr.f32.gmra.mxu0 %v1414
        %v1642 = vpop.f32.mrf.mxu0
        %v1643 = vadd.f32 %v1408, %v1642
        %v1644 = vpop.f32.mrf.mxu0
        %v1645 = vadd.f32 %v1408, %v1644
        %1646 = vdwg.mxu0
        %1647 = vmatprep.subr.mxu0 0.0
        %1648 = vmatpush1.msra.mxu0 0.0
        %1649 = vmatprep.subr.mxu0 0.0
        %1650 = vmatpush1.msra.mxu0 0.0
        %1651 = vmatprep.subr.mxu0 0.0
        %1652 = vmatpush1.msra.mxu0 0.0
        %1653 = vmatprep.subr.mxu0 0.0
        %1654 = vmatpush1.msra.mxu0 0.0
        %1655 = vmatprep.subr.mxu0 0.0
        %1656 = vmatpush1.msra.mxu0 0.0
        %1657 = vmatprep.subr.mxu0 0.0
        %1658 = vmatpush1.msra.mxu0 0.0
        %1659 = vmatprep.subr.mxu0 0.0
        %1660 = vmatpush1.msra.mxu0 0.0
        %1661 = vmatprep.subr.mxu0 0.0
        %1662 = vmatpush1.msra.mxu0 0.0
        %1663 = vmatprep.subr.mxu0 0.0
        %1664 = vmatpush1.msra.mxu0 0.0
        %1665 = vmatprep.subr.mxu0 0.0
        %1666 = vmatpush1.msra.mxu0 0.0
        %1667 = vmatprep.subr.mxu0 %v1394
        %1668 = vmatpush1.msra.mxu0 %v1392
        %1669 = vmatprep.subr.mxu0 %v1388
        %1670 = vmatpush1.msra.mxu0 %v1386
        %1671 = vmatprep.subr.mxu0 %v1382
        %1672 = vmatpush1.msra.mxu0 %v1380
        %1673 = vmatprep.subr.mxu0 %v1376
        %1674 = vmatpush1.msra.mxu0 %v1374
        %1675 = vmatprep.subr.mxu0 %v545
        %1676 = vmatpush1.msra.mxu0 %v544
        %1677 = vmatprep.subr.mxu0 %v537
        %1678 = vmatpush1.msra.mxu0 %v536
        %1679 = vmatprep.subr.mxu0 0.0
        %1680 = vmatpush2.msra.mxu0 0.0
        %1681 = vmatprep.subr.mxu0 0.0
        %1682 = vmatpush2.msra.mxu0 0.0
        %1683 = vmatprep.subr.mxu0 0.0
        %1684 = vmatpush2.msra.mxu0 0.0
        %1685 = vmatprep.subr.mxu0 0.0
        %1686 = vmatpush2.msra.mxu0 0.0
        %1687 = vmatprep.subr.mxu0 0.0
        %1688 = vmatpush2.msra.mxu0 0.0
        %1689 = vmatprep.subr.mxu0 0.0
        %1690 = vmatpush2.msra.mxu0 0.0
        %1691 = vmatprep.subr.mxu0 0.0
        %1692 = vmatpush2.msra.mxu0 0.0
        %1693 = vmatprep.subr.mxu0 0.0
        %1694 = vmatpush2.msra.mxu0 0.0
        %1695 = vmatprep.subr.mxu0 0.0
        %1696 = vmatpush2.msra.mxu0 0.0
        %1697 = vmatprep.subr.mxu0 0.0
        %1698 = vmatpush2.msra.mxu0 0.0
        %1699 = vmatprep.subr.mxu0 0.0
        %1700 = vmatpush2.msra.mxu0 0.0
        %1701 = vmatprep.subr.mxu0 0.0
        %1702 = vmatpush2.msra.mxu0 0.0
        %1703 = vmatprep.subr.mxu0 0.0
        %1704 = vmatpush2.msra.mxu0 0.0
        %1705 = vmatprep.subr.mxu0 0.0
        %1706 = vmatpush2.msra.mxu0 0.0
        %1707 = vmatprep.subr.mxu0 0.0
        %1708 = vmatpush2.msra.mxu0 0.0
        %1709 = vmatprep.subr.mxu0 0.0
        %1710 = vmatpush2.msra.mxu0 0.0
        %1711 = vmatprep.mubr.f32.mxu0 0.0
        %1712 = vmatmul.mubr.f32.gmra.mxu0 %v1411
        %v1713 = vpop.f32.mrf.mxu0
        %v1714 = vadd.f32 %v1403, %v1713
        %v1715 = vpop.f32.mrf.mxu0
        %v1716 = vadd.f32 %v1403, %v1715
        %1717 = vmatprep.mubr.f32.mxu0 0.0
        %1718 = vmatmul.mubr.f32.gmra.mxu0 %v1414
        %v1719 = vpop.f32.mrf.mxu0
        %v1720 = vadd.f32 %v1408, %v1719
        %v1721 = vpop.f32.mrf.mxu0
        %v1722 = vadd.f32 %v1408, %v1721
        %1723 = vdwg.mxu0
        %v1724 = vmax.f32 %v1483, 0.0
        %v1725 = vmax.f32 %v1485, 0.0
        %v1726 = vmax.f32 %v1560, 0.0
        %v1727 = vmax.f32 %v1562, 0.0
        %v1728 = vmax.f32 %v1637, 0.0
        %v1729 = vmax.f32 %v1639, 0.0
        %v1730 = vmax.f32 %v1714, 0.0
        %v1731 = vmax.f32 %v1716, 0.0
        %v1732 = vmax.f32 %v1489, 0.0
        %v1733 = vmax.f32 %v1491, 0.0
        %v1734 = vmax.f32 %v1566, 0.0
        %v1735 = vmax.f32 %v1568, 0.0
        %v1736 = vmax.f32 %v1643, 0.0
        %v1737 = vmax.f32 %v1645, 0.0
        %v1738 = vmax.f32 %v1720, 0.0
        %v1739 = vmax.f32 %v1722, 0.0
        %v1740 = vld [vmem:[#allocation8] sm:$0xff]
        %v1741 = vld [vmem:[#allocation8 + $0x8] sm:$0xff]
        %1742 = vset.pattern.permute.xlu0 1
        %1743 = vperm.xlu0 %1742, %v1398
        %v1744 = vpop.permute.xlu0 %1743
        %1746 = vset.pattern.permute.xlu0 1
        %1747 = vperm.xlu0 %1746, %v1399
        %v1748 = vpop.permute.xlu0 %1747
        %vm1750 = vcmask 130048
        %v1752 = vsel %vm1750, %v1740, 0
        %v1755 = vsel %vm1750, %v1741, 0
        %1757 = vmatprep.subr.mxu0 0.0
        %1758 = vmatpush1.msra.mxu0 0.0
        %1759 = vmatprep.subr.mxu0 0.0
        %1760 = vmatpush1.msra.mxu0 0.0
        %1761 = vmatprep.subr.mxu0 0.0
        %1762 = vmatpush1.msra.mxu0 0.0
        %1763 = vmatprep.subr.mxu0 0.0
        %1764 = vmatpush1.msra.mxu0 0.0
        %1765 = vmatprep.subr.mxu0 0.0
        %1766 = vmatpush1.msra.mxu0 0.0
        %1767 = vmatprep.subr.mxu0 0.0
        %1768 = vmatpush1.msra.mxu0 0.0
        %1769 = vmatprep.subr.mxu0 0.0
        %1770 = vmatpush1.msra.mxu0 0.0
        %1771 = vmatprep.subr.mxu0 0.0
        %1772 = vmatpush1.msra.mxu0 0.0
        %1773 = vmatprep.subr.mxu0 0.0
        %1774 = vmatpush1.msra.mxu0 0.0
        %1775 = vmatprep.subr.mxu0 0.0
        %1776 = vmatpush1.msra.mxu0 0.0
        %1777 = vmatprep.subr.mxu0 0.0
        %1778 = vmatpush1.msra.mxu0 0.0
        %1779 = vmatprep.subr.mxu0 0.0
        %1780 = vmatpush1.msra.mxu0 0.0
        %1781 = vmatprep.subr.mxu0 0.0
        %1782 = vmatpush1.msra.mxu0 0.0
        %1783 = vmatprep.subr.mxu0 0.0
        %1784 = vmatpush1.msra.mxu0 0.0
        %1785 = vmatprep.subr.mxu0 %v1733
        %1786 = vmatpush1.msra.mxu0 %v1732
        %1787 = vmatprep.subr.mxu0 %v1725
        %1788 = vmatpush1.msra.mxu0 %v1724
        %1789 = vmatprep.subr.mxu0 0.0
        %1790 = vmatpush2.msra.mxu0 0.0
        %1791 = vmatprep.subr.mxu0 0.0
        %1792 = vmatpush2.msra.mxu0 0.0
        %1793 = vmatprep.subr.mxu0 0.0
        %1794 = vmatpush2.msra.mxu0 0.0
        %1795 = vmatprep.subr.mxu0 0.0
        %1796 = vmatpush2.msra.mxu0 0.0
        %1797 = vmatprep.subr.mxu0 0.0
        %1798 = vmatpush2.msra.mxu0 0.0
        %1799 = vmatprep.subr.mxu0 0.0
        %1800 = vmatpush2.msra.mxu0 0.0
        %1801 = vmatprep.subr.mxu0 0.0
        %1802 = vmatpush2.msra.mxu0 0.0
        %1803 = vmatprep.subr.mxu0 0.0
        %1804 = vmatpush2.msra.mxu0 0.0
        %1805 = vmatprep.subr.mxu0 0.0
        %1806 = vmatpush2.msra.mxu0 0.0
        %1807 = vmatprep.subr.mxu0 0.0
        %1808 = vmatpush2.msra.mxu0 0.0
        %1809 = vmatprep.subr.mxu0 0.0
        %1810 = vmatpush2.msra.mxu0 0.0
        %1811 = vmatprep.subr.mxu0 0.0
        %1812 = vmatpush2.msra.mxu0 0.0
        %1813 = vmatprep.subr.mxu0 0.0
        %1814 = vmatpush2.msra.mxu0 0.0
        %1815 = vmatprep.subr.mxu0 0.0
        %1816 = vmatpush2.msra.mxu0 0.0
        %1817 = vmatprep.subr.mxu0 0.0
        %1818 = vmatpush2.msra.mxu0 0.0
        %1819 = vmatprep.subr.mxu0 0.0
        %1820 = vmatpush2.msra.mxu0 0.0
        %1821 = vmatprep.mubr.f32.mxu0 0.0
        %1822 = vmatmul.mubr.f32.gmra.mxu0 %v1752
        %v1823 = vpop.f32.mrf.mxu0
        %v1824 = vadd.f32 %v1744, %v1823
        %v1825 = vpop.f32.mrf.mxu0
        %v1826 = vadd.f32 %v1744, %v1825
        %1827 = vmatprep.mubr.f32.mxu0 0.0
        %1828 = vmatmul.mubr.f32.gmra.mxu0 %v1755
        %v1829 = vpop.f32.mrf.mxu0
        %v1830 = vadd.f32 %v1748, %v1829
        %v1831 = vpop.f32.mrf.mxu0
        %v1832 = vadd.f32 %v1748, %v1831
        %1833 = vdwg.mxu0
        %1834 = vmatprep.subr.mxu0 0.0
        %1835 = vmatpush1.msra.mxu0 0.0
        %1836 = vmatprep.subr.mxu0 0.0
        %1837 = vmatpush1.msra.mxu0 0.0
        %1838 = vmatprep.subr.mxu0 0.0
        %1839 = vmatpush1.msra.mxu0 0.0
        %1840 = vmatprep.subr.mxu0 0.0
        %1841 = vmatpush1.msra.mxu0 0.0
        %1842 = vmatprep.subr.mxu0 0.0
        %1843 = vmatpush1.msra.mxu0 0.0
        %1844 = vmatprep.subr.mxu0 0.0
        %1845 = vmatpush1.msra.mxu0 0.0
        %1846 = vmatprep.subr.mxu0 0.0
        %1847 = vmatpush1.msra.mxu0 0.0
        %1848 = vmatprep.subr.mxu0 0.0
        %1849 = vmatpush1.msra.mxu0 0.0
        %1850 = vmatprep.subr.mxu0 0.0
        %1851 = vmatpush1.msra.mxu0 0.0
        %1852 = vmatprep.subr.mxu0 0.0
        %1853 = vmatpush1.msra.mxu0 0.0
        %1854 = vmatprep.subr.mxu0 0.0
        %1855 = vmatpush1.msra.mxu0 0.0
        %1856 = vmatprep.subr.mxu0 0.0
        %1857 = vmatpush1.msra.mxu0 0.0
        %1858 = vmatprep.subr.mxu0 0.0
        %1859 = vmatpush1.msra.mxu0 0.0
        %1860 = vmatprep.subr.mxu0 0.0
        %1861 = vmatpush1.msra.mxu0 0.0
        %1862 = vmatprep.subr.mxu0 %v1735
        %1863 = vmatpush1.msra.mxu0 %v1734
        %1864 = vmatprep.subr.mxu0 %v1727
        %1865 = vmatpush1.msra.mxu0 %v1726
        %1866 = vmatprep.subr.mxu0 0.0
        %1867 = vmatpush2.msra.mxu0 0.0
        %1868 = vmatprep.subr.mxu0 0.0
        %1869 = vmatpush2.msra.mxu0 0.0
        %1870 = vmatprep.subr.mxu0 0.0
        %1871 = vmatpush2.msra.mxu0 0.0
        %1872 = vmatprep.subr.mxu0 0.0
        %1873 = vmatpush2.msra.mxu0 0.0
        %1874 = vmatprep.subr.mxu0 0.0
        %1875 = vmatpush2.msra.mxu0 0.0
        %1876 = vmatprep.subr.mxu0 0.0
        %1877 = vmatpush2.msra.mxu0 0.0
        %1878 = vmatprep.subr.mxu0 0.0
        %1879 = vmatpush2.msra.mxu0 0.0
        %1880 = vmatprep.subr.mxu0 0.0
        %1881 = vmatpush2.msra.mxu0 0.0
        %1882 = vmatprep.subr.mxu0 0.0
        %1883 = vmatpush2.msra.mxu0 0.0
        %1884 = vmatprep.subr.mxu0 0.0
        %1885 = vmatpush2.msra.mxu0 0.0
        %1886 = vmatprep.subr.mxu0 0.0
        %1887 = vmatpush2.msra.mxu0 0.0
        %1888 = vmatprep.subr.mxu0 0.0
        %1889 = vmatpush2.msra.mxu0 0.0
        %1890 = vmatprep.subr.mxu0 0.0
        %1891 = vmatpush2.msra.mxu0 0.0
        %1892 = vmatprep.subr.mxu0 0.0
        %1893 = vmatpush2.msra.mxu0 0.0
        %1894 = vmatprep.subr.mxu0 0.0
        %1895 = vmatpush2.msra.mxu0 0.0
        %1896 = vmatprep.subr.mxu0 0.0
        %1897 = vmatpush2.msra.mxu0 0.0
        %1898 = vmatprep.mubr.f32.mxu0 0.0
        %1899 = vmatmul.mubr.f32.gmra.mxu0 %v1752
        %v1900 = vpop.f32.mrf.mxu0
        %v1901 = vadd.f32 %v1744, %v1900
        %v1902 = vpop.f32.mrf.mxu0
        %v1903 = vadd.f32 %v1744, %v1902
        %1904 = vmatprep.mubr.f32.mxu0 0.0
        %1905 = vmatmul.mubr.f32.gmra.mxu0 %v1755
        %v1906 = vpop.f32.mrf.mxu0
        %v1907 = vadd.f32 %v1748, %v1906
        %v1908 = vpop.f32.mrf.mxu0
        %v1909 = vadd.f32 %v1748, %v1908
        %1910 = vdwg.mxu0
        %1911 = vmatprep.subr.mxu0 0.0
        %1912 = vmatpush1.msra.mxu0 0.0
        %1913 = vmatprep.subr.mxu0 0.0
        %1914 = vmatpush1.msra.mxu0 0.0
        %1915 = vmatprep.subr.mxu0 0.0
        %1916 = vmatpush1.msra.mxu0 0.0
        %1917 = vmatprep.subr.mxu0 0.0
        %1918 = vmatpush1.msra.mxu0 0.0
        %1919 = vmatprep.subr.mxu0 0.0
        %1920 = vmatpush1.msra.mxu0 0.0
        %1921 = vmatprep.subr.mxu0 0.0
        %1922 = vmatpush1.msra.mxu0 0.0
        %1923 = vmatprep.subr.mxu0 0.0
        %1924 = vmatpush1.msra.mxu0 0.0
        %1925 = vmatprep.subr.mxu0 0.0
        %1926 = vmatpush1.msra.mxu0 0.0
        %1927 = vmatprep.subr.mxu0 0.0
        %1928 = vmatpush1.msra.mxu0 0.0
        %1929 = vmatprep.subr.mxu0 0.0
        %1930 = vmatpush1.msra.mxu0 0.0
        %1931 = vmatprep.subr.mxu0 0.0
        %1932 = vmatpush1.msra.mxu0 0.0
        %1933 = vmatprep.subr.mxu0 0.0
        %1934 = vmatpush1.msra.mxu0 0.0
        %1935 = vmatprep.subr.mxu0 0.0
        %1936 = vmatpush1.msra.mxu0 0.0
        %1937 = vmatprep.subr.mxu0 0.0
        %1938 = vmatpush1.msra.mxu0 0.0
        %1939 = vmatprep.subr.mxu0 %v1737
        %1940 = vmatpush1.msra.mxu0 %v1736
        %1941 = vmatprep.subr.mxu0 %v1729
        %1942 = vmatpush1.msra.mxu0 %v1728
        %1943 = vmatprep.subr.mxu0 0.0
        %1944 = vmatpush2.msra.mxu0 0.0
        %1945 = vmatprep.subr.mxu0 0.0
        %1946 = vmatpush2.msra.mxu0 0.0
        %1947 = vmatprep.subr.mxu0 0.0
        %1948 = vmatpush2.msra.mxu0 0.0
        %1949 = vmatprep.subr.mxu0 0.0
        %1950 = vmatpush2.msra.mxu0 0.0
        %1951 = vmatprep.subr.mxu0 0.0
        %1952 = vmatpush2.msra.mxu0 0.0
        %1953 = vmatprep.subr.mxu0 0.0
        %1954 = vmatpush2.msra.mxu0 0.0
        %1955 = vmatprep.subr.mxu0 0.0
        %1956 = vmatpush2.msra.mxu0 0.0
        %1957 = vmatprep.subr.mxu0 0.0
        %1958 = vmatpush2.msra.mxu0 0.0
        %1959 = vmatprep.subr.mxu0 0.0
        %1960 = vmatpush2.msra.mxu0 0.0
        %1961 = vmatprep.subr.mxu0 0.0
        %1962 = vmatpush2.msra.mxu0 0.0
        %1963 = vmatprep.subr.mxu0 0.0
        %1964 = vmatpush2.msra.mxu0 0.0
        %1965 = vmatprep.subr.mxu0 0.0
        %1966 = vmatpush2.msra.mxu0 0.0
        %1967 = vmatprep.subr.mxu0 0.0
        %1968 = vmatpush2.msra.mxu0 0.0
        %1969 = vmatprep.subr.mxu0 0.0
        %1970 = vmatpush2.msra.mxu0 0.0
        %1971 = vmatprep.subr.mxu0 0.0
        %1972 = vmatpush2.msra.mxu0 0.0
        %1973 = vmatprep.subr.mxu0 0.0
        %1974 = vmatpush2.msra.mxu0 0.0
        %1975 = vmatprep.mubr.f32.mxu0 0.0
        %1976 = vmatmul.mubr.f32.gmra.mxu0 %v1752
        %v1977 = vpop.f32.mrf.mxu0
        %v1978 = vadd.f32 %v1744, %v1977
        %v1979 = vpop.f32.mrf.mxu0
        %v1980 = vadd.f32 %v1744, %v1979
        %1981 = vmatprep.mubr.f32.mxu0 0.0
        %1982 = vmatmul.mubr.f32.gmra.mxu0 %v1755
        %v1983 = vpop.f32.mrf.mxu0
        %v1984 = vadd.f32 %v1748, %v1983
        %v1985 = vpop.f32.mrf.mxu0
        %v1986 = vadd.f32 %v1748, %v1985
        %1987 = vdwg.mxu0
        %1988 = vmatprep.subr.mxu0 0.0
        %1989 = vmatpush1.msra.mxu0 0.0
        %1990 = vmatprep.subr.mxu0 0.0
        %1991 = vmatpush1.msra.mxu0 0.0
        %1992 = vmatprep.subr.mxu0 0.0
        %1993 = vmatpush1.msra.mxu0 0.0
        %1994 = vmatprep.subr.mxu0 0.0
        %1995 = vmatpush1.msra.mxu0 0.0
        %1996 = vmatprep.subr.mxu0 0.0
        %1997 = vmatpush1.msra.mxu0 0.0
        %1998 = vmatprep.subr.mxu0 0.0
        %1999 = vmatpush1.msra.mxu0 0.0
        %2000 = vmatprep.subr.mxu0 0.0
        %2001 = vmatpush1.msra.mxu0 0.0
        %2002 = vmatprep.subr.mxu0 0.0
        %2003 = vmatpush1.msra.mxu0 0.0
        %2004 = vmatprep.subr.mxu0 0.0
        %2005 = vmatpush1.msra.mxu0 0.0
        %2006 = vmatprep.subr.mxu0 0.0
        %2007 = vmatpush1.msra.mxu0 0.0
        %2008 = vmatprep.subr.mxu0 0.0
        %2009 = vmatpush1.msra.mxu0 0.0
        %2010 = vmatprep.subr.mxu0 0.0
        %2011 = vmatpush1.msra.mxu0 0.0
        %2012 = vmatprep.subr.mxu0 0.0
        %2013 = vmatpush1.msra.mxu0 0.0
        %2014 = vmatprep.subr.mxu0 0.0
        %2015 = vmatpush1.msra.mxu0 0.0
        %2016 = vmatprep.subr.mxu0 %v1739
        %2017 = vmatpush1.msra.mxu0 %v1738
        %2018 = vmatprep.subr.mxu0 %v1731
        %2019 = vmatpush1.msra.mxu0 %v1730
        %2020 = vmatprep.subr.mxu0 0.0
        %2021 = vmatpush2.msra.mxu0 0.0
        %2022 = vmatprep.subr.mxu0 0.0
        %2023 = vmatpush2.msra.mxu0 0.0
        %2024 = vmatprep.subr.mxu0 0.0
        %2025 = vmatpush2.msra.mxu0 0.0
        %2026 = vmatprep.subr.mxu0 0.0
        %2027 = vmatpush2.msra.mxu0 0.0
        %2028 = vmatprep.subr.mxu0 0.0
        %2029 = vmatpush2.msra.mxu0 0.0
        %2030 = vmatprep.subr.mxu0 0.0
        %2031 = vmatpush2.msra.mxu0 0.0
        %2032 = vmatprep.subr.mxu0 0.0
        %2033 = vmatpush2.msra.mxu0 0.0
        %2034 = vmatprep.subr.mxu0 0.0
        %2035 = vmatpush2.msra.mxu0 0.0
        %2036 = vmatprep.subr.mxu0 0.0
        %2037 = vmatpush2.msra.mxu0 0.0
        %2038 = vmatprep.subr.mxu0 0.0
        %2039 = vmatpush2.msra.mxu0 0.0
        %2040 = vmatprep.subr.mxu0 0.0
        %2041 = vmatpush2.msra.mxu0 0.0
        %2042 = vmatprep.subr.mxu0 0.0
        %2043 = vmatpush2.msra.mxu0 0.0
        %2044 = vmatprep.subr.mxu0 0.0
        %2045 = vmatpush2.msra.mxu0 0.0
        %2046 = vmatprep.subr.mxu0 0.0
        %2047 = vmatpush2.msra.mxu0 0.0
        %2048 = vmatprep.subr.mxu0 0.0
        %2049 = vmatpush2.msra.mxu0 0.0
        %2050 = vmatprep.subr.mxu0 0.0
        %2051 = vmatpush2.msra.mxu0 0.0
        %2052 = vmatprep.mubr.f32.mxu0 0.0
        %2053 = vmatmul.mubr.f32.gmra.mxu0 %v1752
        %v2054 = vpop.f32.mrf.mxu0
        %v2055 = vadd.f32 %v1744, %v2054
        %v2056 = vpop.f32.mrf.mxu0
        %v2057 = vadd.f32 %v1744, %v2056
        %2058 = vmatprep.mubr.f32.mxu0 0.0
        %2059 = vmatmul.mubr.f32.gmra.mxu0 %v1755
        %v2060 = vpop.f32.mrf.mxu0
        %v2061 = vadd.f32 %v1748, %v2060
        %v2062 = vpop.f32.mrf.mxu0
        %v2063 = vadd.f32 %v1748, %v2062
        %2064 = vdwg.mxu0
        %2065 = vst [vmem:[%s518] sm:$0xff] %v1824
        %2066 = vst [vmem:[%s518 + $0x8] sm:$0xff] %v1826
        %2067 = vst [vmem:[%s518 + $0x10] sm:$0xff] %v1901
        %2068 = vst [vmem:[%s518 + $0x18] sm:$0xff] %v1903
        %2069 = vst [vmem:[%s518 + $0x20] sm:$0xff] %v1978
        %2070 = vst [vmem:[%s518 + $0x28] sm:$0xff] %v1980
        %2071 = vst [vmem:[%s518 + $0x30] sm:$0xff] %v2055
        %2072 = vst [vmem:[%s518 + $0x38] sm:$0xff] %v2057
        %2073 = vst [vmem:[%s518 + $0x40] sm:$0xff] %v1830
        %2074 = vst [vmem:[%s518 + $0x48] sm:$0xff] %v1832
        %2075 = vst [vmem:[%s518 + $0x50] sm:$0xff] %v1907
        %2076 = vst [vmem:[%s518 + $0x58] sm:$0xff] %v1909
        %2077 = vst [vmem:[%s518 + $0x60] sm:$0xff] %v1984
        %2078 = vst [vmem:[%s518 + $0x68] sm:$0xff] %v1986
        %2079 = vst [vmem:[%s518 + $0x70] sm:$0xff] %v2061
        %2080 = vst [vmem:[%s518 + $0x78] sm:$0xff] %v2063
        %v2081 = vld [vmem:[%s8] sm:$0xff]
        %v2082 = vld [vmem:[%s8 + $0x8] sm:$0xff]
        %v2083 = vld [vmem:[%s8 + $0x10] sm:$0xff]
        %v2084 = vld [vmem:[%s8 + $0x18] sm:$0xff]
        %v2085 = vld [vmem:[%s9] sm:$0xff]
        %v2086 = vld [vmem:[%s9 + $0x8] sm:$0xff]
        %v2087 = vld [vmem:[%s9 + $0x10] sm:$0xff]
        %v2088 = vld [vmem:[%s9 + $0x18] sm:$0xff]
        %2090 = vset.pattern.permute.xlu0 0
        %2091 = vperm.xlu0 %2090, %v2085
        %v2092 = vpop.permute.xlu0 %2091
        %2095 = vset.pattern.permute.xlu0 0
        %2096 = vperm.xlu0 %2095, %v2086
        %v2097 = vpop.permute.xlu0 %2096
        %2100 = vset.pattern.permute.xlu0 0
        %2101 = vperm.xlu0 %2100, %v2087
        %v2102 = vpop.permute.xlu0 %2101
        %2105 = vset.pattern.permute.xlu0 0
        %2106 = vperm.xlu0 %2105, %v2088
        %v2107 = vpop.permute.xlu0 %2106
        %vm2109 = vcmask 654336
        %v2111 = vsel %vm2109, %v2081, 0
        %v2114 = vsel %vm2109, %v2082, 0
        %v2117 = vsel %vm2109, %v2083, 0
        %v2120 = vsel %vm2109, %v2084, 0
        %2122 = vmatprep.subr.mxu0 0.0
        %2123 = vmatpush1.msra.mxu0 0.0
        %2124 = vmatprep.subr.mxu0 0.0
        %2125 = vmatpush1.msra.mxu0 0.0
        %2126 = vmatprep.subr.mxu0 0.0
        %2127 = vmatpush1.msra.mxu0 0.0
        %2128 = vmatprep.subr.mxu0 0.0
        %2129 = vmatpush1.msra.mxu0 0.0
        %2130 = vmatprep.subr.mxu0 0.0
        %2131 = vmatpush1.msra.mxu0 0.0
        %2132 = vmatprep.subr.mxu0 0.0
        %2133 = vmatpush1.msra.mxu0 0.0
        %2134 = vmatprep.subr.mxu0 %v1832
        %2135 = vmatpush1.msra.mxu0 %v1830
        %2136 = vmatprep.subr.mxu0 %v1826
        %2137 = vmatpush1.msra.mxu0 %v1824
        %2138 = vmatprep.subr.mxu0 %v1127
        %2139 = vmatpush1.msra.mxu0 %v1125
        %2140 = vmatprep.subr.mxu0 %v1121
        %2141 = vmatpush1.msra.mxu0 %v1119
        %2142 = vmatprep.subr.mxu0 %v1115
        %2143 = vmatpush1.msra.mxu0 %v1113
        %2144 = vmatprep.subr.mxu0 %v1109
        %2145 = vmatpush1.msra.mxu0 %v1107
        %2146 = vmatprep.subr.mxu0 %v571
        %2147 = vmatpush1.msra.mxu0 %v570
        %2148 = vmatprep.subr.mxu0 %v563
        %2149 = vmatpush1.msra.mxu0 %v562
        %2150 = vmatprep.subr.mxu0 %v555
        %2151 = vmatpush1.msra.mxu0 %v554
        %2152 = vmatprep.subr.mxu0 %v547
        %2153 = vmatpush1.msra.mxu0 %v546
        %2154 = vmatprep.subr.mxu0 0.0
        %2155 = vmatpush2.msra.mxu0 0.0
        %2156 = vmatprep.subr.mxu0 0.0
        %2157 = vmatpush2.msra.mxu0 0.0
        %2158 = vmatprep.subr.mxu0 0.0
        %2159 = vmatpush2.msra.mxu0 0.0
        %2160 = vmatprep.subr.mxu0 0.0
        %2161 = vmatpush2.msra.mxu0 0.0
        %2162 = vmatprep.subr.mxu0 0.0
        %2163 = vmatpush2.msra.mxu0 0.0
        %2164 = vmatprep.subr.mxu0 0.0
        %2165 = vmatpush2.msra.mxu0 0.0
        %2166 = vmatprep.subr.mxu0 0.0
        %2167 = vmatpush2.msra.mxu0 0.0
        %2168 = vmatprep.subr.mxu0 0.0
        %2169 = vmatpush2.msra.mxu0 0.0
        %2170 = vmatprep.subr.mxu0 0.0
        %2171 = vmatpush2.msra.mxu0 0.0
        %2172 = vmatprep.subr.mxu0 0.0
        %2173 = vmatpush2.msra.mxu0 0.0
        %2174 = vmatprep.subr.mxu0 0.0
        %2175 = vmatpush2.msra.mxu0 0.0
        %2176 = vmatprep.subr.mxu0 0.0
        %2177 = vmatpush2.msra.mxu0 0.0
        %2178 = vmatprep.subr.mxu0 0.0
        %2179 = vmatpush2.msra.mxu0 0.0
        %2180 = vmatprep.subr.mxu0 0.0
        %2181 = vmatpush2.msra.mxu0 0.0
        %2182 = vmatprep.subr.mxu0 0.0
        %2183 = vmatpush2.msra.mxu0 0.0
        %2184 = vmatprep.subr.mxu0 0.0
        %2185 = vmatpush2.msra.mxu0 0.0
        %2186 = vmatprep.mubr.f32.mxu0 0.0
        %2187 = vmatmul.mubr.f32.gmra.mxu0 %v2111
        %v2188 = vpop.f32.mrf.mxu0
        %v2189 = vadd.f32 %v2092, %v2188
        %v2190 = vpop.f32.mrf.mxu0
        %v2191 = vadd.f32 %v2092, %v2190
        %2192 = vmatprep.mubr.f32.mxu0 0.0
        %2193 = vmatmul.mubr.f32.gmra.mxu0 %v2114
        %v2194 = vpop.f32.mrf.mxu0
        %v2195 = vadd.f32 %v2097, %v2194
        %v2196 = vpop.f32.mrf.mxu0
        %v2197 = vadd.f32 %v2097, %v2196
        %2198 = vmatprep.mubr.f32.mxu0 0.0
        %2199 = vmatmul.mubr.f32.gmra.mxu0 %v2117
        %v2200 = vpop.f32.mrf.mxu0
        %v2201 = vadd.f32 %v2102, %v2200
        %v2202 = vpop.f32.mrf.mxu0
        %v2203 = vadd.f32 %v2102, %v2202
        %2204 = vmatprep.mubr.f32.mxu0 0.0
        %2205 = vmatmul.mubr.f32.gmra.mxu0 %v2120
        %v2206 = vpop.f32.mrf.mxu0
        %v2207 = vadd.f32 %v2107, %v2206
        %v2208 = vpop.f32.mrf.mxu0
        %v2209 = vadd.f32 %v2107, %v2208
        %2210 = vdwg.mxu0
        %2211 = vmatprep.subr.mxu0 0.0
        %2212 = vmatpush1.msra.mxu0 0.0
        %2213 = vmatprep.subr.mxu0 0.0
        %2214 = vmatpush1.msra.mxu0 0.0
        %2215 = vmatprep.subr.mxu0 0.0
        %2216 = vmatpush1.msra.mxu0 0.0
        %2217 = vmatprep.subr.mxu0 0.0
        %2218 = vmatpush1.msra.mxu0 0.0
        %2219 = vmatprep.subr.mxu0 0.0
        %2220 = vmatpush1.msra.mxu0 0.0
        %2221 = vmatprep.subr.mxu0 0.0
        %2222 = vmatpush1.msra.mxu0 0.0
        %2223 = vmatprep.subr.mxu0 %v1909
        %2224 = vmatpush1.msra.mxu0 %v1907
        %2225 = vmatprep.subr.mxu0 %v1903
        %2226 = vmatpush1.msra.mxu0 %v1901
        %2227 = vmatprep.subr.mxu0 %v1216
        %2228 = vmatpush1.msra.mxu0 %v1214
        %2229 = vmatprep.subr.mxu0 %v1210
        %2230 = vmatpush1.msra.mxu0 %v1208
        %2231 = vmatprep.subr.mxu0 %v1204
        %2232 = vmatpush1.msra.mxu0 %v1202
        %2233 = vmatprep.subr.mxu0 %v1198
        %2234 = vmatpush1.msra.mxu0 %v1196
        %2235 = vmatprep.subr.mxu0 %v573
        %2236 = vmatpush1.msra.mxu0 %v572
        %2237 = vmatprep.subr.mxu0 %v565
        %2238 = vmatpush1.msra.mxu0 %v564
        %2239 = vmatprep.subr.mxu0 %v557
        %2240 = vmatpush1.msra.mxu0 %v556
        %2241 = vmatprep.subr.mxu0 %v549
        %2242 = vmatpush1.msra.mxu0 %v548
        %2243 = vmatprep.subr.mxu0 0.0
        %2244 = vmatpush2.msra.mxu0 0.0
        %2245 = vmatprep.subr.mxu0 0.0
        %2246 = vmatpush2.msra.mxu0 0.0
        %2247 = vmatprep.subr.mxu0 0.0
        %2248 = vmatpush2.msra.mxu0 0.0
        %2249 = vmatprep.subr.mxu0 0.0
        %2250 = vmatpush2.msra.mxu0 0.0
        %2251 = vmatprep.subr.mxu0 0.0
        %2252 = vmatpush2.msra.mxu0 0.0
        %2253 = vmatprep.subr.mxu0 0.0
        %2254 = vmatpush2.msra.mxu0 0.0
        %2255 = vmatprep.subr.mxu0 0.0
        %2256 = vmatpush2.msra.mxu0 0.0
        %2257 = vmatprep.subr.mxu0 0.0
        %2258 = vmatpush2.msra.mxu0 0.0
        %2259 = vmatprep.subr.mxu0 0.0
        %2260 = vmatpush2.msra.mxu0 0.0
        %2261 = vmatprep.subr.mxu0 0.0
        %2262 = vmatpush2.msra.mxu0 0.0
        %2263 = vmatprep.subr.mxu0 0.0
        %2264 = vmatpush2.msra.mxu0 0.0
        %2265 = vmatprep.subr.mxu0 0.0
        %2266 = vmatpush2.msra.mxu0 0.0
        %2267 = vmatprep.subr.mxu0 0.0
        %2268 = vmatpush2.msra.mxu0 0.0
        %2269 = vmatprep.subr.mxu0 0.0
        %2270 = vmatpush2.msra.mxu0 0.0
        %2271 = vmatprep.subr.mxu0 0.0
        %2272 = vmatpush2.msra.mxu0 0.0
        %2273 = vmatprep.subr.mxu0 0.0
        %2274 = vmatpush2.msra.mxu0 0.0
        %2275 = vmatprep.mubr.f32.mxu0 0.0
        %2276 = vmatmul.mubr.f32.gmra.mxu0 %v2111
        %v2277 = vpop.f32.mrf.mxu0
        %v2278 = vadd.f32 %v2092, %v2277
        %v2279 = vpop.f32.mrf.mxu0
        %v2280 = vadd.f32 %v2092, %v2279
        %2281 = vmatprep.mubr.f32.mxu0 0.0
        %2282 = vmatmul.mubr.f32.gmra.mxu0 %v2114
        %v2283 = vpop.f32.mrf.mxu0
        %v2284 = vadd.f32 %v2097, %v2283
        %v2285 = vpop.f32.mrf.mxu0
        %v2286 = vadd.f32 %v2097, %v2285
        %2287 = vmatprep.mubr.f32.mxu0 0.0
        %2288 = vmatmul.mubr.f32.gmra.mxu0 %v2117
        %v2289 = vpop.f32.mrf.mxu0
        %v2290 = vadd.f32 %v2102, %v2289
        %v2291 = vpop.f32.mrf.mxu0
        %v2292 = vadd.f32 %v2102, %v2291
        %2293 = vmatprep.mubr.f32.mxu0 0.0
        %2294 = vmatmul.mubr.f32.gmra.mxu0 %v2120
        %v2295 = vpop.f32.mrf.mxu0
        %v2296 = vadd.f32 %v2107, %v2295
        %v2297 = vpop.f32.mrf.mxu0
        %v2298 = vadd.f32 %v2107, %v2297
        %2299 = vdwg.mxu0
        %2300 = vmatprep.subr.mxu0 0.0
        %2301 = vmatpush1.msra.mxu0 0.0
        %2302 = vmatprep.subr.mxu0 0.0
        %2303 = vmatpush1.msra.mxu0 0.0
        %2304 = vmatprep.subr.mxu0 0.0
        %2305 = vmatpush1.msra.mxu0 0.0
        %2306 = vmatprep.subr.mxu0 0.0
        %2307 = vmatpush1.msra.mxu0 0.0
        %2308 = vmatprep.subr.mxu0 0.0
        %2309 = vmatpush1.msra.mxu0 0.0
        %2310 = vmatprep.subr.mxu0 0.0
        %2311 = vmatpush1.msra.mxu0 0.0
        %2312 = vmatprep.subr.mxu0 %v1986
        %2313 = vmatpush1.msra.mxu0 %v1984
        %2314 = vmatprep.subr.mxu0 %v1980
        %2315 = vmatpush1.msra.mxu0 %v1978
        %2316 = vmatprep.subr.mxu0 %v1305
        %2317 = vmatpush1.msra.mxu0 %v1303
        %2318 = vmatprep.subr.mxu0 %v1299
        %2319 = vmatpush1.msra.mxu0 %v1297
        %2320 = vmatprep.subr.mxu0 %v1293
        %2321 = vmatpush1.msra.mxu0 %v1291
        %2322 = vmatprep.subr.mxu0 %v1287
        %2323 = vmatpush1.msra.mxu0 %v1285
        %2324 = vmatprep.subr.mxu0 %v575
        %2325 = vmatpush1.msra.mxu0 %v574
        %2326 = vmatprep.subr.mxu0 %v567
        %2327 = vmatpush1.msra.mxu0 %v566
        %2328 = vmatprep.subr.mxu0 %v559
        %2329 = vmatpush1.msra.mxu0 %v558
        %2330 = vmatprep.subr.mxu0 %v551
        %2331 = vmatpush1.msra.mxu0 %v550
        %2332 = vmatprep.subr.mxu0 0.0
        %2333 = vmatpush2.msra.mxu0 0.0
        %2334 = vmatprep.subr.mxu0 0.0
        %2335 = vmatpush2.msra.mxu0 0.0
        %2336 = vmatprep.subr.mxu0 0.0
        %2337 = vmatpush2.msra.mxu0 0.0
        %2338 = vmatprep.subr.mxu0 0.0
        %2339 = vmatpush2.msra.mxu0 0.0
        %2340 = vmatprep.subr.mxu0 0.0
        %2341 = vmatpush2.msra.mxu0 0.0
        %2342 = vmatprep.subr.mxu0 0.0
        %2343 = vmatpush2.msra.mxu0 0.0
        %2344 = vmatprep.subr.mxu0 0.0
        %2345 = vmatpush2.msra.mxu0 0.0
        %2346 = vmatprep.subr.mxu0 0.0
        %2347 = vmatpush2.msra.mxu0 0.0
        %2348 = vmatprep.subr.mxu0 0.0
        %2349 = vmatpush2.msra.mxu0 0.0
        %2350 = vmatprep.subr.mxu0 0.0
        %2351 = vmatpush2.msra.mxu0 0.0
        %2352 = vmatprep.subr.mxu0 0.0
        %2353 = vmatpush2.msra.mxu0 0.0
        %2354 = vmatprep.subr.mxu0 0.0
        %2355 = vmatpush2.msra.mxu0 0.0
        %2356 = vmatprep.subr.mxu0 0.0
        %2357 = vmatpush2.msra.mxu0 0.0
        %2358 = vmatprep.subr.mxu0 0.0
        %2359 = vmatpush2.msra.mxu0 0.0
        %2360 = vmatprep.subr.mxu0 0.0
        %2361 = vmatpush2.msra.mxu0 0.0
        %2362 = vmatprep.subr.mxu0 0.0
        %2363 = vmatpush2.msra.mxu0 0.0
        %2364 = vmatprep.mubr.f32.mxu0 0.0
        %2365 = vmatmul.mubr.f32.gmra.mxu0 %v2111
        %v2366 = vpop.f32.mrf.mxu0
        %v2367 = vadd.f32 %v2092, %v2366
        %v2368 = vpop.f32.mrf.mxu0
        %v2369 = vadd.f32 %v2092, %v2368
        %2370 = vmatprep.mubr.f32.mxu0 0.0
        %2371 = vmatmul.mubr.f32.gmra.mxu0 %v2114
        %v2372 = vpop.f32.mrf.mxu0
        %v2373 = vadd.f32 %v2097, %v2372
        %v2374 = vpop.f32.mrf.mxu0
        %v2375 = vadd.f32 %v2097, %v2374
        %2376 = vmatprep.mubr.f32.mxu0 0.0
        %2377 = vmatmul.mubr.f32.gmra.mxu0 %v2117
        %v2378 = vpop.f32.mrf.mxu0
        %v2379 = vadd.f32 %v2102, %v2378
        %v2380 = vpop.f32.mrf.mxu0
        %v2381 = vadd.f32 %v2102, %v2380
        %2382 = vmatprep.mubr.f32.mxu0 0.0
        %2383 = vmatmul.mubr.f32.gmra.mxu0 %v2120
        %v2384 = vpop.f32.mrf.mxu0
        %v2385 = vadd.f32 %v2107, %v2384
        %v2386 = vpop.f32.mrf.mxu0
        %v2387 = vadd.f32 %v2107, %v2386
        %2388 = vdwg.mxu0
        %2389 = vmatprep.subr.mxu0 0.0
        %2390 = vmatpush1.msra.mxu0 0.0
        %2391 = vmatprep.subr.mxu0 0.0
        %2392 = vmatpush1.msra.mxu0 0.0
        %2393 = vmatprep.subr.mxu0 0.0
        %2394 = vmatpush1.msra.mxu0 0.0
        %2395 = vmatprep.subr.mxu0 0.0
        %2396 = vmatpush1.msra.mxu0 0.0
        %2397 = vmatprep.subr.mxu0 0.0
        %2398 = vmatpush1.msra.mxu0 0.0
        %2399 = vmatprep.subr.mxu0 0.0
        %2400 = vmatpush1.msra.mxu0 0.0
        %2401 = vmatprep.subr.mxu0 %v2063
        %2402 = vmatpush1.msra.mxu0 %v2061
        %2403 = vmatprep.subr.mxu0 %v2057
        %2404 = vmatpush1.msra.mxu0 %v2055
        %2405 = vmatprep.subr.mxu0 %v1394
        %2406 = vmatpush1.msra.mxu0 %v1392
        %2407 = vmatprep.subr.mxu0 %v1388
        %2408 = vmatpush1.msra.mxu0 %v1386
        %2409 = vmatprep.subr.mxu0 %v1382
        %2410 = vmatpush1.msra.mxu0 %v1380
        %2411 = vmatprep.subr.mxu0 %v1376
        %2412 = vmatpush1.msra.mxu0 %v1374
        %2413 = vmatprep.subr.mxu0 %v577
        %2414 = vmatpush1.msra.mxu0 %v576
        %2415 = vmatprep.subr.mxu0 %v569
        %2416 = vmatpush1.msra.mxu0 %v568
        %2417 = vmatprep.subr.mxu0 %v561
        %2418 = vmatpush1.msra.mxu0 %v560
        %2419 = vmatprep.subr.mxu0 %v553
        %2420 = vmatpush1.msra.mxu0 %v552
        %2421 = vmatprep.subr.mxu0 0.0
        %2422 = vmatpush2.msra.mxu0 0.0
        %2423 = vmatprep.subr.mxu0 0.0
        %2424 = vmatpush2.msra.mxu0 0.0
        %2425 = vmatprep.subr.mxu0 0.0
        %2426 = vmatpush2.msra.mxu0 0.0
        %2427 = vmatprep.subr.mxu0 0.0
        %2428 = vmatpush2.msra.mxu0 0.0
        %2429 = vmatprep.subr.mxu0 0.0
        %2430 = vmatpush2.msra.mxu0 0.0
        %2431 = vmatprep.subr.mxu0 0.0
        %2432 = vmatpush2.msra.mxu0 0.0
        %2433 = vmatprep.subr.mxu0 0.0
        %2434 = vmatpush2.msra.mxu0 0.0
        %2435 = vmatprep.subr.mxu0 0.0
        %2436 = vmatpush2.msra.mxu0 0.0
        %2437 = vmatprep.subr.mxu0 0.0
        %2438 = vmatpush2.msra.mxu0 0.0
        %2439 = vmatprep.subr.mxu0 0.0
        %2440 = vmatpush2.msra.mxu0 0.0
        %2441 = vmatprep.subr.mxu0 0.0
        %2442 = vmatpush2.msra.mxu0 0.0
        %2443 = vmatprep.subr.mxu0 0.0
        %2444 = vmatpush2.msra.mxu0 0.0
        %2445 = vmatprep.subr.mxu0 0.0
        %2446 = vmatpush2.msra.mxu0 0.0
        %2447 = vmatprep.subr.mxu0 0.0
        %2448 = vmatpush2.msra.mxu0 0.0
        %2449 = vmatprep.subr.mxu0 0.0
        %2450 = vmatpush2.msra.mxu0 0.0
        %2451 = vmatprep.subr.mxu0 0.0
        %2452 = vmatpush2.msra.mxu0 0.0
        %2453 = vmatprep.mubr.f32.mxu0 0.0
        %2454 = vmatmul.mubr.f32.gmra.mxu0 %v2111
        %v2455 = vpop.f32.mrf.mxu0
        %v2456 = vadd.f32 %v2092, %v2455
        %v2457 = vpop.f32.mrf.mxu0
        %v2458 = vadd.f32 %v2092, %v2457
        %2459 = vmatprep.mubr.f32.mxu0 0.0
        %2460 = vmatmul.mubr.f32.gmra.mxu0 %v2114
        %v2461 = vpop.f32.mrf.mxu0
        %v2462 = vadd.f32 %v2097, %v2461
        %v2463 = vpop.f32.mrf.mxu0
        %v2464 = vadd.f32 %v2097, %v2463
        %2465 = vmatprep.mubr.f32.mxu0 0.0
        %2466 = vmatmul.mubr.f32.gmra.mxu0 %v2117
        %v2467 = vpop.f32.mrf.mxu0
        %v2468 = vadd.f32 %v2102, %v2467
        %v2469 = vpop.f32.mrf.mxu0
        %v2470 = vadd.f32 %v2102, %v2469
        %2471 = vmatprep.mubr.f32.mxu0 0.0
        %2472 = vmatmul.mubr.f32.gmra.mxu0 %v2120
        %v2473 = vpop.f32.mrf.mxu0
        %v2474 = vadd.f32 %v2107, %v2473
        %v2475 = vpop.f32.mrf.mxu0
        %v2476 = vadd.f32 %v2107, %v2475
        %2477 = vdwg.mxu0
        %v2478 = vmax.f32 %v2189, 0.0
        %v2479 = vmax.f32 %v2191, 0.0
        %v2480 = vmax.f32 %v2278, 0.0
        %v2481 = vmax.f32 %v2280, 0.0
        %v2482 = vmax.f32 %v2367, 0.0
        %v2483 = vmax.f32 %v2369, 0.0
        %v2484 = vmax.f32 %v2456, 0.0
        %v2485 = vmax.f32 %v2458, 0.0
        %v2486 = vmax.f32 %v2195, 0.0
        %v2487 = vmax.f32 %v2197, 0.0
        %v2488 = vmax.f32 %v2284, 0.0
        %v2489 = vmax.f32 %v2286, 0.0
        %v2490 = vmax.f32 %v2373, 0.0
        %v2491 = vmax.f32 %v2375, 0.0
        %v2492 = vmax.f32 %v2462, 0.0
        %v2493 = vmax.f32 %v2464, 0.0
        %v2494 = vmax.f32 %v2201, 0.0
        %v2495 = vmax.f32 %v2203, 0.0
        %v2496 = vmax.f32 %v2290, 0.0
        %v2497 = vmax.f32 %v2292, 0.0
        %v2498 = vmax.f32 %v2379, 0.0
        %v2499 = vmax.f32 %v2381, 0.0
        %v2500 = vmax.f32 %v2468, 0.0
        %v2501 = vmax.f32 %v2470, 0.0
        %v2502 = vmax.f32 %v2207, 0.0
        %v2503 = vmax.f32 %v2209, 0.0
        %v2504 = vmax.f32 %v2296, 0.0
        %v2505 = vmax.f32 %v2298, 0.0
        %v2506 = vmax.f32 %v2385, 0.0
        %v2507 = vmax.f32 %v2387, 0.0
        %v2508 = vmax.f32 %v2474, 0.0
        %v2509 = vmax.f32 %v2476, 0.0
        %v2510 = vld [vmem:[#allocation10] sm:$0xff]
        %v2511 = vld [vmem:[#allocation10 + $0x8] sm:$0xff]
        %v2512 = vld [vmem:[#allocation10 + $0x10] sm:$0xff]
        %v2513 = vld [vmem:[#allocation10 + $0x18] sm:$0xff]
        %2514 = vset.pattern.permute.xlu0 1
        %2515 = vperm.xlu0 %2514, %v2085
        %v2516 = vpop.permute.xlu0 %2515
        %2518 = vset.pattern.permute.xlu0 1
        %2519 = vperm.xlu0 %2518, %v2086
        %v2520 = vpop.permute.xlu0 %2519
        %2522 = vset.pattern.permute.xlu0 1
        %2523 = vperm.xlu0 %2522, %v2087
        %v2524 = vpop.permute.xlu0 %2523
        %2526 = vset.pattern.permute.xlu0 1
        %2527 = vperm.xlu0 %2526, %v2088
        %v2528 = vpop.permute.xlu0 %2527
        %v2531 = vsel %vm1027, %v2510, 0
        %v2534 = vsel %vm1027, %v2511, 0
        %v2537 = vsel %vm1027, %v2512, 0
        %v2540 = vsel %vm1027, %v2513, 0
        %2542 = vmatprep.subr.mxu0 0.0
        %2543 = vmatpush1.msra.mxu0 0.0
        %2544 = vmatprep.subr.mxu0 0.0
        %2545 = vmatpush1.msra.mxu0 0.0
        %2546 = vmatprep.subr.mxu0 0.0
        %2547 = vmatpush1.msra.mxu0 0.0
        %2548 = vmatprep.subr.mxu0 0.0
        %2549 = vmatpush1.msra.mxu0 0.0
        %2550 = vmatprep.subr.mxu0 0.0
        %2551 = vmatpush1.msra.mxu0 0.0
        %2552 = vmatprep.subr.mxu0 0.0
        %2553 = vmatpush1.msra.mxu0 0.0
        %2554 = vmatprep.subr.mxu0 0.0
        %2555 = vmatpush1.msra.mxu0 0.0
        %2556 = vmatprep.subr.mxu0 0.0
        %2557 = vmatpush1.msra.mxu0 0.0
        %2558 = vmatprep.subr.mxu0 0.0
        %2559 = vmatpush1.msra.mxu0 0.0
        %2560 = vmatprep.subr.mxu0 0.0
        %2561 = vmatpush1.msra.mxu0 0.0
        %2562 = vmatprep.subr.mxu0 0.0
        %2563 = vmatpush1.msra.mxu0 0.0
        %2564 = vmatprep.subr.mxu0 0.0
        %2565 = vmatpush1.msra.mxu0 0.0
        %2566 = vmatprep.subr.mxu0 %v2503
        %2567 = vmatpush1.msra.mxu0 %v2502
        %2568 = vmatprep.subr.mxu0 %v2495
        %2569 = vmatpush1.msra.mxu0 %v2494
        %2570 = vmatprep.subr.mxu0 %v2487
        %2571 = vmatpush1.msra.mxu0 %v2486
        %2572 = vmatprep.subr.mxu0 %v2479
        %2573 = vmatpush1.msra.mxu0 %v2478
        %2574 = vmatprep.subr.mxu0 0.0
        %2575 = vmatpush2.msra.mxu0 0.0
        %2576 = vmatprep.subr.mxu0 0.0
        %2577 = vmatpush2.msra.mxu0 0.0
        %2578 = vmatprep.subr.mxu0 0.0
        %2579 = vmatpush2.msra.mxu0 0.0
        %2580 = vmatprep.subr.mxu0 0.0
        %2581 = vmatpush2.msra.mxu0 0.0
        %2582 = vmatprep.subr.mxu0 0.0
        %2583 = vmatpush2.msra.mxu0 0.0
        %2584 = vmatprep.subr.mxu0 0.0
        %2585 = vmatpush2.msra.mxu0 0.0
        %2586 = vmatprep.subr.mxu0 0.0
        %2587 = vmatpush2.msra.mxu0 0.0
        %2588 = vmatprep.subr.mxu0 0.0
        %2589 = vmatpush2.msra.mxu0 0.0
        %2590 = vmatprep.subr.mxu0 0.0
        %2591 = vmatpush2.msra.mxu0 0.0
        %2592 = vmatprep.subr.mxu0 0.0
        %2593 = vmatpush2.msra.mxu0 0.0
        %2594 = vmatprep.subr.mxu0 0.0
        %2595 = vmatpush2.msra.mxu0 0.0
        %2596 = vmatprep.subr.mxu0 0.0
        %2597 = vmatpush2.msra.mxu0 0.0
        %2598 = vmatprep.subr.mxu0 0.0
        %2599 = vmatpush2.msra.mxu0 0.0
        %2600 = vmatprep.subr.mxu0 0.0
        %2601 = vmatpush2.msra.mxu0 0.0
        %2602 = vmatprep.subr.mxu0 0.0
        %2603 = vmatpush2.msra.mxu0 0.0
        %2604 = vmatprep.subr.mxu0 0.0
        %2605 = vmatpush2.msra.mxu0 0.0
        %2606 = vmatprep.mubr.f32.mxu0 0.0
        %2607 = vmatmul.mubr.f32.gmra.mxu0 %v2531
        %v2608 = vpop.f32.mrf.mxu0
        %v2609 = vadd.f32 %v2516, %v2608
        %v2610 = vpop.f32.mrf.mxu0
        %v2611 = vadd.f32 %v2516, %v2610
        %2612 = vmatprep.mubr.f32.mxu0 0.0
        %2613 = vmatmul.mubr.f32.gmra.mxu0 %v2534
        %v2614 = vpop.f32.mrf.mxu0
        %v2615 = vadd.f32 %v2520, %v2614
        %v2616 = vpop.f32.mrf.mxu0
        %v2617 = vadd.f32 %v2520, %v2616
        %2618 = vmatprep.mubr.f32.mxu0 0.0
        %2619 = vmatmul.mubr.f32.gmra.mxu0 %v2537
        %v2620 = vpop.f32.mrf.mxu0
        %v2621 = vadd.f32 %v2524, %v2620
        %v2622 = vpop.f32.mrf.mxu0
        %v2623 = vadd.f32 %v2524, %v2622
        %2624 = vmatprep.mubr.f32.mxu0 0.0
        %2625 = vmatmul.mubr.f32.gmra.mxu0 %v2540
        %v2626 = vpop.f32.mrf.mxu0
        %v2627 = vadd.f32 %v2528, %v2626
        %v2628 = vpop.f32.mrf.mxu0
        %v2629 = vadd.f32 %v2528, %v2628
        %2630 = vdwg.mxu0
        %2631 = vmatprep.subr.mxu0 0.0
        %2632 = vmatpush1.msra.mxu0 0.0
        %2633 = vmatprep.subr.mxu0 0.0
        %2634 = vmatpush1.msra.mxu0 0.0
        %2635 = vmatprep.subr.mxu0 0.0
        %2636 = vmatpush1.msra.mxu0 0.0
        %2637 = vmatprep.subr.mxu0 0.0
        %2638 = vmatpush1.msra.mxu0 0.0
        %2639 = vmatprep.subr.mxu0 0.0
        %2640 = vmatpush1.msra.mxu0 0.0
        %2641 = vmatprep.subr.mxu0 0.0
        %2642 = vmatpush1.msra.mxu0 0.0
        %2643 = vmatprep.subr.mxu0 0.0
        %2644 = vmatpush1.msra.mxu0 0.0
        %2645 = vmatprep.subr.mxu0 0.0
        %2646 = vmatpush1.msra.mxu0 0.0
        %2647 = vmatprep.subr.mxu0 0.0
        %2648 = vmatpush1.msra.mxu0 0.0
        %2649 = vmatprep.subr.mxu0 0.0
        %2650 = vmatpush1.msra.mxu0 0.0
        %2651 = vmatprep.subr.mxu0 0.0
        %2652 = vmatpush1.msra.mxu0 0.0
        %2653 = vmatprep.subr.mxu0 0.0
        %2654 = vmatpush1.msra.mxu0 0.0
        %2655 = vmatprep.subr.mxu0 %v2505
        %2656 = vmatpush1.msra.mxu0 %v2504
        %2657 = vmatprep.subr.mxu0 %v2497
        %2658 = vmatpush1.msra.mxu0 %v2496
        %2659 = vmatprep.subr.mxu0 %v2489
        %2660 = vmatpush1.msra.mxu0 %v2488
        %2661 = vmatprep.subr.mxu0 %v2481
        %2662 = vmatpush1.msra.mxu0 %v2480
        %2663 = vmatprep.subr.mxu0 0.0
        %2664 = vmatpush2.msra.mxu0 0.0
        %2665 = vmatprep.subr.mxu0 0.0
        %2666 = vmatpush2.msra.mxu0 0.0
        %2667 = vmatprep.subr.mxu0 0.0
        %2668 = vmatpush2.msra.mxu0 0.0
        %2669 = vmatprep.subr.mxu0 0.0
        %2670 = vmatpush2.msra.mxu0 0.0
        %2671 = vmatprep.subr.mxu0 0.0
        %2672 = vmatpush2.msra.mxu0 0.0
        %2673 = vmatprep.subr.mxu0 0.0
        %2674 = vmatpush2.msra.mxu0 0.0
        %2675 = vmatprep.subr.mxu0 0.0
        %2676 = vmatpush2.msra.mxu0 0.0
        %2677 = vmatprep.subr.mxu0 0.0
        %2678 = vmatpush2.msra.mxu0 0.0
        %2679 = vmatprep.subr.mxu0 0.0
        %2680 = vmatpush2.msra.mxu0 0.0
        %2681 = vmatprep.subr.mxu0 0.0
        %2682 = vmatpush2.msra.mxu0 0.0
        %2683 = vmatprep.subr.mxu0 0.0
        %2684 = vmatpush2.msra.mxu0 0.0
        %2685 = vmatprep.subr.mxu0 0.0
        %2686 = vmatpush2.msra.mxu0 0.0
        %2687 = vmatprep.subr.mxu0 0.0
        %2688 = vmatpush2.msra.mxu0 0.0
        %2689 = vmatprep.subr.mxu0 0.0
        %2690 = vmatpush2.msra.mxu0 0.0
        %2691 = vmatprep.subr.mxu0 0.0
        %2692 = vmatpush2.msra.mxu0 0.0
        %2693 = vmatprep.subr.mxu0 0.0
        %2694 = vmatpush2.msra.mxu0 0.0
        %2695 = vmatprep.mubr.f32.mxu0 0.0
        %2696 = vmatmul.mubr.f32.gmra.mxu0 %v2531
        %v2697 = vpop.f32.mrf.mxu0
        %v2698 = vadd.f32 %v2516, %v2697
        %v2699 = vpop.f32.mrf.mxu0
        %v2700 = vadd.f32 %v2516, %v2699
        %2701 = vmatprep.mubr.f32.mxu0 0.0
        %2702 = vmatmul.mubr.f32.gmra.mxu0 %v2534
        %v2703 = vpop.f32.mrf.mxu0
        %v2704 = vadd.f32 %v2520, %v2703
        %v2705 = vpop.f32.mrf.mxu0
        %v2706 = vadd.f32 %v2520, %v2705
        %2707 = vmatprep.mubr.f32.mxu0 0.0
        %2708 = vmatmul.mubr.f32.gmra.mxu0 %v2537
        %v2709 = vpop.f32.mrf.mxu0
        %v2710 = vadd.f32 %v2524, %v2709
        %v2711 = vpop.f32.mrf.mxu0
        %v2712 = vadd.f32 %v2524, %v2711
        %2713 = vmatprep.mubr.f32.mxu0 0.0
        %2714 = vmatmul.mubr.f32.gmra.mxu0 %v2540
        %v2715 = vpop.f32.mrf.mxu0
        %v2716 = vadd.f32 %v2528, %v2715
        %v2717 = vpop.f32.mrf.mxu0
        %v2718 = vadd.f32 %v2528, %v2717
        %2719 = vdwg.mxu0
        %2720 = vmatprep.subr.mxu0 0.0
        %2721 = vmatpush1.msra.mxu0 0.0
        %2722 = vmatprep.subr.mxu0 0.0
        %2723 = vmatpush1.msra.mxu0 0.0
        %2724 = vmatprep.subr.mxu0 0.0
        %2725 = vmatpush1.msra.mxu0 0.0
        %2726 = vmatprep.subr.mxu0 0.0
        %2727 = vmatpush1.msra.mxu0 0.0
        %2728 = vmatprep.subr.mxu0 0.0
        %2729 = vmatpush1.msra.mxu0 0.0
        %2730 = vmatprep.subr.mxu0 0.0
        %2731 = vmatpush1.msra.mxu0 0.0
        %2732 = vmatprep.subr.mxu0 0.0
        %2733 = vmatpush1.msra.mxu0 0.0
        %2734 = vmatprep.subr.mxu0 0.0
        %2735 = vmatpush1.msra.mxu0 0.0
        %2736 = vmatprep.subr.mxu0 0.0
        %2737 = vmatpush1.msra.mxu0 0.0
        %2738 = vmatprep.subr.mxu0 0.0
        %2739 = vmatpush1.msra.mxu0 0.0
        %2740 = vmatprep.subr.mxu0 0.0
        %2741 = vmatpush1.msra.mxu0 0.0
        %2742 = vmatprep.subr.mxu0 0.0
        %2743 = vmatpush1.msra.mxu0 0.0
        %2744 = vmatprep.subr.mxu0 %v2507
        %2745 = vmatpush1.msra.mxu0 %v2506
        %2746 = vmatprep.subr.mxu0 %v2499
        %2747 = vmatpush1.msra.mxu0 %v2498
        %2748 = vmatprep.subr.mxu0 %v2491
        %2749 = vmatpush1.msra.mxu0 %v2490
        %2750 = vmatprep.subr.mxu0 %v2483
        %2751 = vmatpush1.msra.mxu0 %v2482
        %2752 = vmatprep.subr.mxu0 0.0
        %2753 = vmatpush2.msra.mxu0 0.0
        %2754 = vmatprep.subr.mxu0 0.0
        %2755 = vmatpush2.msra.mxu0 0.0
        %2756 = vmatprep.subr.mxu0 0.0
        %2757 = vmatpush2.msra.mxu0 0.0
        %2758 = vmatprep.subr.mxu0 0.0
        %2759 = vmatpush2.msra.mxu0 0.0
        %2760 = vmatprep.subr.mxu0 0.0
        %2761 = vmatpush2.msra.mxu0 0.0
        %2762 = vmatprep.subr.mxu0 0.0
        %2763 = vmatpush2.msra.mxu0 0.0
        %2764 = vmatprep.subr.mxu0 0.0
        %2765 = vmatpush2.msra.mxu0 0.0
        %2766 = vmatprep.subr.mxu0 0.0
        %2767 = vmatpush2.msra.mxu0 0.0
        %2768 = vmatprep.subr.mxu0 0.0
        %2769 = vmatpush2.msra.mxu0 0.0
        %2770 = vmatprep.subr.mxu0 0.0
        %2771 = vmatpush2.msra.mxu0 0.0
        %2772 = vmatprep.subr.mxu0 0.0
        %2773 = vmatpush2.msra.mxu0 0.0
        %2774 = vmatprep.subr.mxu0 0.0
        %2775 = vmatpush2.msra.mxu0 0.0
        %2776 = vmatprep.subr.mxu0 0.0
        %2777 = vmatpush2.msra.mxu0 0.0
        %2778 = vmatprep.subr.mxu0 0.0
        %2779 = vmatpush2.msra.mxu0 0.0
        %2780 = vmatprep.subr.mxu0 0.0
        %2781 = vmatpush2.msra.mxu0 0.0
        %2782 = vmatprep.subr.mxu0 0.0
        %2783 = vmatpush2.msra.mxu0 0.0
        %2784 = vmatprep.mubr.f32.mxu0 0.0
        %2785 = vmatmul.mubr.f32.gmra.mxu0 %v2531
        %v2786 = vpop.f32.mrf.mxu0
        %v2787 = vadd.f32 %v2516, %v2786
        %v2788 = vpop.f32.mrf.mxu0
        %v2789 = vadd.f32 %v2516, %v2788
        %2790 = vmatprep.mubr.f32.mxu0 0.0
        %2791 = vmatmul.mubr.f32.gmra.mxu0 %v2534
        %v2792 = vpop.f32.mrf.mxu0
        %v2793 = vadd.f32 %v2520, %v2792
        %v2794 = vpop.f32.mrf.mxu0
        %v2795 = vadd.f32 %v2520, %v2794
        %2796 = vmatprep.mubr.f32.mxu0 0.0
        %2797 = vmatmul.mubr.f32.gmra.mxu0 %v2537
        %v2798 = vpop.f32.mrf.mxu0
        %v2799 = vadd.f32 %v2524, %v2798
        %v2800 = vpop.f32.mrf.mxu0
        %v2801 = vadd.f32 %v2524, %v2800
        %2802 = vmatprep.mubr.f32.mxu0 0.0
        %2803 = vmatmul.mubr.f32.gmra.mxu0 %v2540
        %v2804 = vpop.f32.mrf.mxu0
        %v2805 = vadd.f32 %v2528, %v2804
        %v2806 = vpop.f32.mrf.mxu0
        %v2807 = vadd.f32 %v2528, %v2806
        %2808 = vdwg.mxu0
        %2809 = vmatprep.subr.mxu0 0.0
        %2810 = vmatpush1.msra.mxu0 0.0
        %2811 = vmatprep.subr.mxu0 0.0
        %2812 = vmatpush1.msra.mxu0 0.0
        %2813 = vmatprep.subr.mxu0 0.0
        %2814 = vmatpush1.msra.mxu0 0.0
        %2815 = vmatprep.subr.mxu0 0.0
        %2816 = vmatpush1.msra.mxu0 0.0
        %2817 = vmatprep.subr.mxu0 0.0
        %2818 = vmatpush1.msra.mxu0 0.0
        %2819 = vmatprep.subr.mxu0 0.0
        %2820 = vmatpush1.msra.mxu0 0.0
        %2821 = vmatprep.subr.mxu0 0.0
        %2822 = vmatpush1.msra.mxu0 0.0
        %2823 = vmatprep.subr.mxu0 0.0
        %2824 = vmatpush1.msra.mxu0 0.0
        %2825 = vmatprep.subr.mxu0 0.0
        %2826 = vmatpush1.msra.mxu0 0.0
        %2827 = vmatprep.subr.mxu0 0.0
        %2828 = vmatpush1.msra.mxu0 0.0
        %2829 = vmatprep.subr.mxu0 0.0
        %2830 = vmatpush1.msra.mxu0 0.0
        %2831 = vmatprep.subr.mxu0 0.0
        %2832 = vmatpush1.msra.mxu0 0.0
        %2833 = vmatprep.subr.mxu0 %v2509
        %2834 = vmatpush1.msra.mxu0 %v2508
        %2835 = vmatprep.subr.mxu0 %v2501
        %2836 = vmatpush1.msra.mxu0 %v2500
        %2837 = vmatprep.subr.mxu0 %v2493
        %2838 = vmatpush1.msra.mxu0 %v2492
        %2839 = vmatprep.subr.mxu0 %v2485
        %2840 = vmatpush1.msra.mxu0 %v2484
        %2841 = vmatprep.subr.mxu0 0.0
        %2842 = vmatpush2.msra.mxu0 0.0
        %2843 = vmatprep.subr.mxu0 0.0
        %2844 = vmatpush2.msra.mxu0 0.0
        %2845 = vmatprep.subr.mxu0 0.0
        %2846 = vmatpush2.msra.mxu0 0.0
        %2847 = vmatprep.subr.mxu0 0.0
        %2848 = vmatpush2.msra.mxu0 0.0
        %2849 = vmatprep.subr.mxu0 0.0
        %2850 = vmatpush2.msra.mxu0 0.0
        %2851 = vmatprep.subr.mxu0 0.0
        %2852 = vmatpush2.msra.mxu0 0.0
        %2853 = vmatprep.subr.mxu0 0.0
        %2854 = vmatpush2.msra.mxu0 0.0
        %2855 = vmatprep.subr.mxu0 0.0
        %2856 = vmatpush2.msra.mxu0 0.0
        %2857 = vmatprep.subr.mxu0 0.0
        %2858 = vmatpush2.msra.mxu0 0.0
        %2859 = vmatprep.subr.mxu0 0.0
        %2860 = vmatpush2.msra.mxu0 0.0
        %2861 = vmatprep.subr.mxu0 0.0
        %2862 = vmatpush2.msra.mxu0 0.0
        %2863 = vmatprep.subr.mxu0 0.0
        %2864 = vmatpush2.msra.mxu0 0.0
        %2865 = vmatprep.subr.mxu0 0.0
        %2866 = vmatpush2.msra.mxu0 0.0
        %2867 = vmatprep.subr.mxu0 0.0
        %2868 = vmatpush2.msra.mxu0 0.0
        %2869 = vmatprep.subr.mxu0 0.0
        %2870 = vmatpush2.msra.mxu0 0.0
        %2871 = vmatprep.subr.mxu0 0.0
        %2872 = vmatpush2.msra.mxu0 0.0
        %2873 = vmatprep.mubr.f32.mxu0 0.0
        %2874 = vmatmul.mubr.f32.gmra.mxu0 %v2531
        %v2875 = vpop.f32.mrf.mxu0
        %v2876 = vadd.f32 %v2516, %v2875
        %v2877 = vpop.f32.mrf.mxu0
        %v2878 = vadd.f32 %v2516, %v2877
        %2879 = vmatprep.mubr.f32.mxu0 0.0
        %2880 = vmatmul.mubr.f32.gmra.mxu0 %v2534
        %v2881 = vpop.f32.mrf.mxu0
        %v2882 = vadd.f32 %v2520, %v2881
        %v2883 = vpop.f32.mrf.mxu0
        %v2884 = vadd.f32 %v2520, %v2883
        %2885 = vmatprep.mubr.f32.mxu0 0.0
        %2886 = vmatmul.mubr.f32.gmra.mxu0 %v2537
        %v2887 = vpop.f32.mrf.mxu0
        %v2888 = vadd.f32 %v2524, %v2887
        %v2889 = vpop.f32.mrf.mxu0
        %v2890 = vadd.f32 %v2524, %v2889
        %2891 = vmatprep.mubr.f32.mxu0 0.0
        %2892 = vmatmul.mubr.f32.gmra.mxu0 %v2540
        %v2893 = vpop.f32.mrf.mxu0
        %v2894 = vadd.f32 %v2528, %v2893
        %v2895 = vpop.f32.mrf.mxu0
        %v2896 = vadd.f32 %v2528, %v2895
        %2897 = vdwg.mxu0
        %2898 = vst [vmem:[%s525] sm:$0xff] %v2609
        %2899 = vst [vmem:[%s525 + $0x8] sm:$0xff] %v2611
        %2900 = vst [vmem:[%s525 + $0x10] sm:$0xff] %v2698
        %2901 = vst [vmem:[%s525 + $0x18] sm:$0xff] %v2700
        %2902 = vst [vmem:[%s525 + $0x20] sm:$0xff] %v2787
        %2903 = vst [vmem:[%s525 + $0x28] sm:$0xff] %v2789
        %2904 = vst [vmem:[%s525 + $0x30] sm:$0xff] %v2876
        %2905 = vst [vmem:[%s525 + $0x38] sm:$0xff] %v2878
        %2906 = vst [vmem:[%s525 + $0x40] sm:$0xff] %v2615
        %2907 = vst [vmem:[%s525 + $0x48] sm:$0xff] %v2617
        %2908 = vst [vmem:[%s525 + $0x50] sm:$0xff] %v2704
        %2909 = vst [vmem:[%s525 + $0x58] sm:$0xff] %v2706
        %2910 = vst [vmem:[%s525 + $0x60] sm:$0xff] %v2793
        %2911 = vst [vmem:[%s525 + $0x68] sm:$0xff] %v2795
        %2912 = vst [vmem:[%s525 + $0x70] sm:$0xff] %v2882
        %2913 = vst [vmem:[%s525 + $0x78] sm:$0xff] %v2884
        %2914 = vst [vmem:[%s525 + $0x80] sm:$0xff] %v2621
        %2915 = vst [vmem:[%s525 + $0x88] sm:$0xff] %v2623
        %2916 = vst [vmem:[%s525 + $0x90] sm:$0xff] %v2710
        %2917 = vst [vmem:[%s525 + $0x98] sm:$0xff] %v2712
        %2918 = vst [vmem:[%s525 + $0xa0] sm:$0xff] %v2799
        %2919 = vst [vmem:[%s525 + $0xa8] sm:$0xff] %v2801
        %2920 = vst [vmem:[%s525 + $0xb0] sm:$0xff] %v2888
        %2921 = vst [vmem:[%s525 + $0xb8] sm:$0xff] %v2890
        %2922 = vst [vmem:[%s525 + $0xc0] sm:$0xff] %v2627
        %2923 = vst [vmem:[%s525 + $0xc8] sm:$0xff] %v2629
        %2924 = vst [vmem:[%s525 + $0xd0] sm:$0xff] %v2716
        %2925 = vst [vmem:[%s525 + $0xd8] sm:$0xff] %v2718
        %2926 = vst [vmem:[%s525 + $0xe0] sm:$0xff] %v2805
        %2927 = vst [vmem:[%s525 + $0xe8] sm:$0xff] %v2807
        %2928 = vst [vmem:[%s525 + $0xf0] sm:$0xff] %v2894
        %2929 = vst [vmem:[%s525 + $0xf8] sm:$0xff] %v2896
        %s2930 = sand.u32 %s286, 1
        %s2931 = scalar_lea.sflag [#allocation4], %s2930
        %s2932 = sand.u32 %s286, 1
        %s2933 = smul.addr %s2932, 128
        %s2934 = scalar_lea.vmem [#allocation11], %s2933
        %s2935 = sand.u32 %s312, 1
        %s2936 = scalar_lea.sflag [#allocation13], %s2935
        %s2937 = sand.u32 %s312, 1
        %s2938 = smul.addr %s2937, 256
        %s2939 = scalar_lea.vmem [#allocation12], %s2938
        // Predicated region
        $region85: #{tpu_custom_call.1} parent=63 // pred_check
          %p2940 = pneg %p296
        $region86: #{tpu_custom_call.1} parent=63 // pred_check_branch
          %2942 = sbr.rel (%p2940) target = $region88
        $region87: #{tpu_custom_call.1} parent=63 // pred_region
          %s2943 = smul.u32 8, %s37
          %s2945 = ssub.s32 2048, 2048
          %2946 = vsyncadd %s2931, %s2945
          %s2947 = smul.addr %s2943, 128
          %s2948 = scalar_lea.hbm %s11, %s2947
          %s2949 = sshll.u32 %s2934, 4
          %s2950 = int_to_ptr.vmem [resolvable:$true] %s2949
          %2955 = dma.vmem_to_hbm [thread:$0]  %s2950, 2048, %s2948, %s2931, 1024, 2048, 64
        $region88: #{tpu_custom_call.1} parent=63 // pred_fallthru
          _
        // Predicated region
        $region89: #{tpu_custom_call.1} parent=63 // pred_check
          %p2956 = pneg %p322
        $region90: #{tpu_custom_call.1} parent=63 // pred_check_branch
          %2958 = sbr.rel (%p2956) target = $region92
        $region91: #{tpu_custom_call.1} parent=63 // pred_region
          %s2959 = smul.u32 8, %s37
          %s2961 = ssub.s32 4096, 4096
          %2962 = vsyncadd %s2936, %s2961
          %s2963 = smul.addr %s2959, 128
          %s2964 = scalar_lea.hbm %s12, %s2963
          %s2965 = sshll.u32 %s2939, 4
          %s2966 = int_to_ptr.vmem [resolvable:$true] %s2965
          %2971 = dma.vmem_to_hbm [thread:$0]  %s2966, 4096, %s2964, %s2936, 1024, 2048, 64
        $region92: #{tpu_custom_call.1} parent=63 // pred_fallthru
          _
      $region64: #{tpu_custom_call.1} parent=5 // pred_fallthru
        _
      %p2972 = scmp.le.s32.totalorder 2, %s32
      // Predicated region
      $region93: #{tpu_custom_call.1} parent=5 // pred_check
        %p2973 = pneg %p2972
      $region94: #{tpu_custom_call.1} parent=5 // pred_check_branch
        %2975 = sbr.rel (%p2973) target = $region96
      $region95: #{tpu_custom_call.1} parent=5 // pred_region
        %s2976 = ssub.s32 %s32, 2
        // Predicated region
        $region97: #{tpu_custom_call.1} parent=95 // pred_check
          %p2977 = pneg %p302
        $region98: #{tpu_custom_call.1} parent=95 // pred_check_branch
          %2979 = sbr.rel (%p2977) target = $region100
        $region99: #{tpu_custom_call.1} parent=95 // pred_region
          %s2980 = sand.u32 %s287, 1
          %s2981 = scalar_lea.sflag [#allocation4], %s2980
          %s2982 = sand.u32 %s287, 1
          %s2983 = smul.addr %s2982, 128
          %s2984 = scalar_lea.vmem [#allocation11], %s2983
          %2985 = dma.done %s2981, 2048
        $region100: #{tpu_custom_call.1} parent=95 // pred_fallthru
          _
        // Predicated region
        $region101: #{tpu_custom_call.1} parent=95 // pred_check
          %p2986 = pneg %p328
        $region102: #{tpu_custom_call.1} parent=95 // pred_check_branch
          %2988 = sbr.rel (%p2986) target = $region104
        $region103: #{tpu_custom_call.1} parent=95 // pred_region
          %s2989 = sand.u32 %s313, 1
          %s2990 = scalar_lea.sflag [#allocation13], %s2989
          %s2991 = sand.u32 %s313, 1
          %s2992 = smul.addr %s2991, 256
          %s2993 = scalar_lea.vmem [#allocation12], %s2992
          %2994 = dma.done %s2990, 4096
        $region104: #{tpu_custom_call.1} parent=95 // pred_fallthru
          _
      $region96: #{tpu_custom_call.1} parent=5 // pred_fallthru
        _
    $region6: #{tpu_custom_call.1} parent=1 // loop_footer
      %s36 = sadd.s32 1, %s32
    $region7: #{tpu_custom_call.1} parent=1 // loop_footer_branch
      %31 = sbr.rel target = $region3
    $region8: #{tpu_custom_call.1} parent=1 // loop_exit
      _
    %2995 = vsyncpa [#allocation3], 1
    %s2996 = scalar_lea.sflag [#allocation3], 1
    %2997 = vsyncpa %s2996, 1
    %2998 = vsyncpa [#allocation6], 1
    %s2999 = scalar_lea.sflag [#allocation6], 1
    %3000 = vsyncpa %s2999, 1
    %3001 = vsyncpa [#allocation9], 1
    %3002 = vsyncpa [#allocation4], 1
    %s3003 = scalar_lea.sflag [#allocation4], 1
    %3004 = vsyncpa %s3003, 1
    %3005 = vsyncpa [#allocation13], 1
    %s3006 = scalar_lea.sflag [#allocation13], 1
    %3007 = vsyncpa %s3006, 1

</llo_original>
